<compile_context>
chip_gen: v6e
topology: v6e:2x2x1
jax: 0.10.0
libtpu: 0.0.40
codegen_flags: <defaults>
</compile_context>

<pallas_src>
import functools

import jax
import jax.numpy as jnp
from jax.experimental import pallas as pl
from jax.experimental.pallas import tpu as pltpu

LANE = 128
SUBLANE = 8
# PyTorch gate order is [i | f | g | o]; kernel uses [i | f | o | g] so the three
# sigmoid gates form one contiguous 3*H_pad slab.
GATE_PERM = (0, 1, 3, 2)


def _round_up(x, m):
    return ((x + m - 1) // m) * m


# ---------------------- fused LSTM-stack + FC kernel -------------------------
def _lstm_fc_kernel(*refs, num_layers, T, B, H_pad):
    """Fused multi-layer LSTM over the full sequence + final Linear.

    refs layout (all VMEM):
      inputs : x        (T*B, D0)                    time-major, flattened
               per layer l: w_ih_l (D_l, 4*H_pad)    gates [i|f|o|g], lane-padded
                            w_hh_l (H_pad, 4*H_pad)
                            b_l    (1, 4*H_pad)      = b_ih + b_hh, pre-summed
               fc_w     (H_pad, O_pad)
               fc_b     (1, O_pad)
      outputs: out      (B, O_pad)
      scratch: seq      (T*B, H_pad)                 inter-layer activations
    """
    x_ref = refs[0]
    layer_refs = refs[1:1 + 3 * num_layers]
    fc_w_ref, fc_b_ref, out_ref, seq_ref = refs[1 + 3 * num_layers:]

    h_last = None
    for layer in range(num_layers):
        w_ih = layer_refs[3 * layer][...]
        w_hh = layer_refs[3 * layer + 1][...]
        bias = layer_refs[3 * layer + 2][...]                        # (1, 4*H_pad)

        x_all = x_ref[...] if layer == 0 else seq_ref[...]           # (T*B, D_l)
        # Hoisted input projection: one big matmul + one bias add, outside the loop.
        gi_all = jnp.dot(x_all, w_ih,
                         preferred_element_type=jnp.float32) + bias  # (T*B, 4*H_pad) f32

        h = jnp.zeros((B, H_pad), jnp.float32)
        c = jnp.zeros((B, H_pad), jnp.float32)
        for t in range(T):  # static T -> fully unrolled; h/c stay in vregs
            gates = gi_all[t * B:(t + 1) * B, :] + jnp.dot(
                h.astype(w_hh.dtype), w_hh, preferred_element_type=jnp.float32)
            # 128-lane-aligned gate slices, kernel order [i | f | o | g]:
            # one sigmoid over the contiguous (B, 3*H_pad) slab, one tanh for g.
            sig = jax.nn.sigmoid(gates[:, 0:3 * H_pad])
            i_g = sig[:, 0 * H_pad:1 * H_pad]
            f_g = sig[:, 1 * H_pad:2 * H_pad]
            o_g = sig[:, 2 * H_pad:3 * H_pad]
            g_g = jnp.tanh(gates[:, 3 * H_pad:4 * H_pad])
            c = f_g * c + i_g * g_g
            h = o_g * jnp.tanh(c)
            if layer < num_layers - 1:
                # lane-dense (B, 128) store at an 8-sublane-aligned offset
                seq_ref[t * B:(t + 1) * B, :] = h.astype(seq_ref.dtype)
        h_last = h

    # FC epilogue on output[:, -1, :] == last layer's final hidden state.
    out_ref[...] = jnp.dot(h_last.astype(fc_w_ref.dtype), fc_w_ref[...],
                           preferred_element_type=jnp.float32) + fc_b_ref[...]


# --------------------------------- wrapper -----------------------------------
def lstm_model_forward(x, params, *, compute_dtype=jnp.float32):
    """x: (B, T, input_dim) batch-first (like the PyTorch module).

    Returns (B*output_dim, 1, 1), matching `out.view(-1, 1, 1)`.
    compute_dtype: dtype of matmul operands (bf16 recommended on v6e/v7x);
    accumulation and gate elementwise math stay float32.
    """
    B, T, D = x.shape
    num_layers = len(params["layers"])
    H = params["layers"][0]["w_hh"].shape[1]
    O = params["fc_w"].shape[0]

    H_pad = _round_up(H, LANE)
    O_pad = _round_up(O, LANE)
    B_pad = _round_up(max(B, SUBLANE), SUBLANE)

    perm = jnp.array(GATE_PERM, dtype=jnp.int32)

    # Time-major, batch-padded, flattened so each layer's input projection is a
    # single (T*B_pad, D_l) x (D_l, 4*H_pad) matmul.
    x_tm = jnp.transpose(x, (1, 0, 2))                          # (T, B, D)
    x_tm = jnp.pad(x_tm, ((0, 0), (0, B_pad - B), (0, 0)))
    x_flat = x_tm.reshape(T * B_pad, D).astype(compute_dtype)

    def pad_gate_cols(w_4h_x):
        """(4H, X) PyTorch weight -> (X, 4*H_pad): gates reordered [i|f|o|g],
        each gate zero-padded to 128 lanes."""
        wt = w_4h_x.T                                            # (X, 4H)
        wt = wt.reshape(wt.shape[0], 4, H)[:, perm, :]           # reorder gates
        wt = jnp.pad(wt, ((0, 0), (0, 0), (0, H_pad - H)))
        return wt.reshape(wt.shape[0], 4 * H_pad)

    inputs = [x_flat]
    for layer, lp in enumerate(params["layers"]):
        w_ih = pad_gate_cols(lp["w_ih"])                         # (D_l, 4*H_pad)
        if layer > 0:                                            # pad input rows H -> H_pad
            w_ih = jnp.pad(w_ih, ((0, H_pad - H), (0, 0)))
        w_hh = pad_gate_cols(lp["w_hh"])                         # (H, 4*H_pad)
        w_hh = jnp.pad(w_hh, ((0, H_pad - H), (0, 0)))           # (H_pad, 4*H_pad)
        b = (lp["b_ih"] + lp["b_hh"]).reshape(4, H)[perm, :]     # pre-summed, reordered
        b = jnp.pad(b, ((0, 0), (0, H_pad - H))).reshape(1, 4 * H_pad)
        inputs += [w_ih.astype(compute_dtype), w_hh.astype(compute_dtype),
                   b.astype(jnp.float32)]

    fc_w = jnp.pad(params["fc_w"].T, ((0, H_pad - H), (0, O_pad - O)))   # (H_pad, O_pad)
    fc_b = jnp.pad(params["fc_b"].reshape(1, -1), ((0, 0), (0, O_pad - O)))
    inputs += [fc_w.astype(compute_dtype), fc_b.astype(jnp.float32)]

    vmem = pl.BlockSpec(memory_space=pltpu.MemorySpace.VMEM)
    kernel = functools.partial(_lstm_fc_kernel, num_layers=num_layers,
                               T=T, B=B_pad, H_pad=H_pad)
    out = pl.pallas_call(
        kernel,
        out_shape=jax.ShapeDtypeStruct((B_pad, O_pad), jnp.float32),
        in_specs=[vmem] * len(inputs),
        out_specs=vmem,
        scratch_shapes=[pltpu.VMEM((T * B_pad, H_pad), compute_dtype)],
    )(*inputs)
    return out[:B, :O].reshape(-1, 1, 1)


# ----------------------------- params / reference ----------------------------
def init_params(key, input_dim, hidden_dim, output_dim, num_layers):
    """Deterministic PyTorch-like init: U(-1/sqrt(H), 1/sqrt(H))."""
    k = 1.0 / jnp.sqrt(hidden_dim)
    params = {"layers": []}
    for layer in range(num_layers):
        d_in = input_dim if layer == 0 else hidden_dim
        key, k1, k2, k3, k4 = jax.random.split(key, 5)
        params["layers"].append({
            "w_ih": jax.random.uniform(k1, (4 * hidden_dim, d_in), jnp.float32, -k, k),
            "w_hh": jax.random.uniform(k2, (4 * hidden_dim, hidden_dim), jnp.float32, -k, k),
            "b_ih": jax.random.uniform(k3, (4 * hidden_dim,), jnp.float32, -k, k),
            "b_hh": jax.random.uniform(k4, (4 * hidden_dim,), jnp.float32, -k, k),
        })
    key, k1, k2 = jax.random.split(key, 3)
    params["fc_w"] = jax.random.uniform(k1, (output_dim, hidden_dim), jnp.float32, -k, k)
    params["fc_b"] = jax.random.uniform(k2, (output_dim,), jnp.float32, -k, k)
    return params


def _reference_forward(x, params):
    """Pure-JAX nn.LSTM(batch_first) + fc reference (float32, PyTorch gate order)."""
    seq = x  # (B, T, D)
    B = x.shape[0]
    for lp in params["layers"]:
        H = lp["w_hh"].shape[1]
        h = jnp.zeros((B, H), jnp.float32)
        c = jnp.zeros((B, H), jnp.float32)
        outs = []
        for t in range(seq.shape[1]):
            gates = (seq[:, t, :] @ lp["w_ih"].T + lp["b_ih"]
                     + h @ lp["w_hh"].T + lp["b_hh"])
            i_g, f_g, g_g, o_g = jnp.split(gates, 4, axis=1)
            i_g = jax.nn.sigmoid(i_g)
            f_g = jax.nn.sigmoid(f_g)
            g_g = jnp.tanh(g_g)
            o_g = jax.nn.sigmoid(o_g)
            c = f_g * c + i_g * g_g
            h = o_g * jnp.tanh(c)
            outs.append(h)
        seq = jnp.stack(outs, axis=1)
    out = seq[:, -1, :] @ params["fc_w"].T + params["fc_b"]
    return out.reshape(-1, 1, 1)


if __name__ == "__main__":
    # Small shapes consistent with the module: batch=2, seq=8, input_dim=4,
    # hidden_dim=32, output_dim=1, num_layers=2.
    B, T, INPUT_DIM, HIDDEN_DIM, OUTPUT_DIM, NUM_LAYERS = 2, 8, 4, 32, 1, 2

    key = jax.random.PRNGKey(0)
    key, xk = jax.random.split(key)
    x = jax.random.normal(xk, (B, T, INPUT_DIM), jnp.float32)
    params = init_params(key, INPUT_DIM, HIDDEN_DIM, OUTPUT_DIM, NUM_LAYERS)

    ref = _reference_forward(x, params)

    # float32 matmul path (v5e-safe default).
    out = jax.block_until_ready(lstm_model_forward(x, params))
    assert out.shape == (B * OUTPUT_DIM, 1, 1), out.shape
    assert jnp.allclose(out, ref, atol=1e-4, rtol=1e-4), "f32 mismatch vs reference"

    # bf16 matmul-operand path (native MXU dtype on v6e/v7x; f32 accumulation and
    # f32 gate elementwise math). Looser tolerance for the reduced-precision inputs.
    out_bf16 = jax.block_until_ready(
        lstm_model_forward(x, params, compute_dtype=jnp.bfloat16))
    assert out_bf16.shape == (B * OUTPUT_DIM, 1, 1), out_bf16.shape
    assert jnp.allclose(out_bf16, ref, atol=1e-1, rtol=1e-1), "bf16 mismatch vs reference"

    print("KERNEL_OK")
</pallas_src>

<mosaic_0001>
module attributes {stable_mosaic.version = 11 : i64} {
  func.func @_lstm_fc_kernel(%arg0: memref<64x4xf32, #tpu.memory_space<vmem>>, %arg1: memref<4x512xf32, #tpu.memory_space<vmem>>, %arg2: memref<128x512xf32, #tpu.memory_space<vmem>>, %arg3: memref<1x512xf32, #tpu.memory_space<vmem>>, %arg4: memref<128x512xf32, #tpu.memory_space<vmem>>, %arg5: memref<128x512xf32, #tpu.memory_space<vmem>>, %arg6: memref<1x512xf32, #tpu.memory_space<vmem>>, %arg7: memref<128x128xf32, #tpu.memory_space<vmem>>, %arg8: memref<1x128xf32, #tpu.memory_space<vmem>>, %arg9: memref<8x128xf32, #tpu.memory_space<vmem>>, %arg10: memref<64x128xf32, #tpu.memory_space<vmem>>) attributes {dimension_semantics = [], scalar_prefetch = 0 : i64, scratch_operands = 1 : i64, tpu.core_type = #tpu.core_type<tc>} {
    %c0 = arith.constant 0 : index
    %c0_0 = arith.constant 0 : index
    %0 = vector.load %arg1[%c0, %c0_0] : memref<4x512xf32, #tpu.memory_space<vmem>>, vector<4x512xf32>
    %c0_1 = arith.constant 0 : index
    %c0_2 = arith.constant 0 : index
    %1 = vector.load %arg2[%c0_1, %c0_2] : memref<128x512xf32, #tpu.memory_space<vmem>>, vector<128x512xf32>
    %c0_3 = arith.constant 0 : index
    %c0_4 = arith.constant 0 : index
    %2 = vector.load %arg3[%c0_3, %c0_4] : memref<1x512xf32, #tpu.memory_space<vmem>>, vector<1x512xf32>
    %c0_5 = arith.constant 0 : index
    %c0_6 = arith.constant 0 : index
    %3 = vector.load %arg0[%c0_5, %c0_6] : memref<64x4xf32, #tpu.memory_space<vmem>>, vector<64x4xf32>
    %cst = arith.constant dense<0.000000e+00> : vector<64x512xf32>
    %4 = tpu.matmul %3, %0, %cst {dimension_numbers = #tpu.dot_dimension_numbers<[1], [0], [0], [1], [0, 0, 1, 1], [], []>} : vector<64x4xf32>, vector<4x512xf32>, vector<64x512xf32> -> vector<64x512xf32>
    %5 = vector.broadcast %2 : vector<1x512xf32> to vector<64x512xf32>
    %6 = arith.addf %4, %5 : vector<64x512xf32>
    %cst_7 = arith.constant 0.000000e+00 : f32
    %7 = vector.broadcast %cst_7 : f32 to vector<8x128xf32>
    %cst_8 = arith.constant 0.000000e+00 : f32
    %8 = vector.broadcast %cst_8 : f32 to vector<8x128xf32>
    %9 = vector.extract_strided_slice %6 {offsets = [0, 0], sizes = [8, 512], strides = [1, 1]} : vector<64x512xf32> to vector<8x512xf32>
    %cst_9 = arith.constant dense<0.000000e+00> : vector<8x512xf32>
    %10 = tpu.matmul %7, %1, %cst_9 {dimension_numbers = #tpu.dot_dimension_numbers<[1], [0], [0], [1], [0, 0, 1, 1], [], []>} : vector<8x128xf32>, vector<128x512xf32>, vector<8x512xf32> -> vector<8x512xf32>
    %11 = arith.addf %9, %10 : vector<8x512xf32>
    %12 = vector.extract_strided_slice %11 {offsets = [0, 0], sizes = [8, 384], strides = [1, 1]} : vector<8x512xf32> to vector<8x384xf32>
    %13 = arith.negf %12 : vector<8x384xf32>
    %14 = math.exp %13 : vector<8x384xf32>
    %cst_10 = arith.constant 1.000000e+00 : f32
    %15 = vector.broadcast %cst_10 : f32 to vector<8x384xf32>
    %16 = arith.addf %15, %14 : vector<8x384xf32>
    %17 = arith.divf %15, %16 : vector<8x384xf32>
    %18 = vector.extract_strided_slice %17 {offsets = [0, 0], sizes = [8, 128], strides = [1, 1]} : vector<8x384xf32> to vector<8x128xf32>
    %19 = vector.extract_strided_slice %17 {offsets = [0, 128], sizes = [8, 128], strides = [1, 1]} : vector<8x384xf32> to vector<8x128xf32>
    %20 = vector.extract_strided_slice %17 {offsets = [0, 256], sizes = [8, 128], strides = [1, 1]} : vector<8x384xf32> to vector<8x128xf32>
    %21 = vector.extract_strided_slice %11 {offsets = [0, 384], sizes = [8, 128], strides = [1, 1]} : vector<8x512xf32> to vector<8x128xf32>
    %22 = math.tanh %21 : vector<8x128xf32>
    %23 = arith.mulf %19, %8 : vector<8x128xf32>
    %24 = arith.mulf %18, %22 : vector<8x128xf32>
    %25 = arith.addf %23, %24 : vector<8x128xf32>
    %26 = math.tanh %25 : vector<8x128xf32>
    %27 = arith.mulf %20, %26 : vector<8x128xf32>
    %c0_11 = arith.constant 0 : index
    %c0_12 = arith.constant 0 : index
    %28 = vector.load %arg10[%c0_11, %c0_12] : memref<64x128xf32, #tpu.memory_space<vmem>>, vector<8x128xf32>
    tpu.vector_store %arg10[%c0_11, %c0_12], %27 {strides = array<i32>} : memref<64x128xf32, #tpu.memory_space<vmem>>, vector<8x128xf32>,
    %29 = vector.extract_strided_slice %6 {offsets = [8, 0], sizes = [8, 512], strides = [1, 1]} : vector<64x512xf32> to vector<8x512xf32>
    %cst_13 = arith.constant dense<0.000000e+00> : vector<8x512xf32>
    %30 = tpu.matmul %27, %1, %cst_13 {dimension_numbers = #tpu.dot_dimension_numbers<[1], [0], [0], [1], [0, 0, 1, 1], [], []>} : vector<8x128xf32>, vector<128x512xf32>, vector<8x512xf32> -> vector<8x512xf32>
    %31 = arith.addf %29, %30 : vector<8x512xf32>
    %32 = vector.extract_strided_slice %31 {offsets = [0, 0], sizes = [8, 384], strides = [1, 1]} : vector<8x512xf32> to vector<8x384xf32>
    %33 = arith.negf %32 : vector<8x384xf32>
    %34 = math.exp %33 : vector<8x384xf32>
    %cst_14 = arith.constant 1.000000e+00 : f32
    %35 = vector.broadcast %cst_14 : f32 to vector<8x384xf32>
    %36 = arith.addf %35, %34 : vector<8x384xf32>
    %37 = arith.divf %35, %36 : vector<8x384xf32>
    %38 = vector.extract_strided_slice %37 {offsets = [0, 0], sizes = [8, 128], strides = [1, 1]} : vector<8x384xf32> to vector<8x128xf32>
    %39 = vector.extract_strided_slice %37 {offsets = [0, 128], sizes = [8, 128], strides = [1, 1]} : vector<8x384xf32> to vector<8x128xf32>
    %40 = vector.extract_strided_slice %37 {offsets = [0, 256], sizes = [8, 128], strides = [1, 1]} : vector<8x384xf32> to vector<8x128xf32>
    %41 = vector.extract_strided_slice %31 {offsets = [0, 384], sizes = [8, 128], strides = [1, 1]} : vector<8x512xf32> to vector<8x128xf32>
    %42 = math.tanh %41 : vector<8x128xf32>
    %43 = arith.mulf %39, %25 : vector<8x128xf32>
    %44 = arith.mulf %38, %42 : vector<8x128xf32>
    %45 = arith.addf %43, %44 : vector<8x128xf32>
    %46 = math.tanh %45 : vector<8x128xf32>
    %47 = arith.mulf %40, %46 : vector<8x128xf32>
    %c8 = arith.constant 8 : index
    %c0_15 = arith.constant 0 : index
    %48 = vector.load %arg10[%c8, %c0_15] : memref<64x128xf32, #tpu.memory_space<vmem>>, vector<8x128xf32>
    tpu.vector_store %arg10[%c8, %c0_15], %47 {strides = array<i32>} : memref<64x128xf32, #tpu.memory_space<vmem>>, vector<8x128xf32>,
    %49 = vector.extract_strided_slice %6 {offsets = [16, 0], sizes = [8, 512], strides = [1, 1]} : vector<64x512xf32> to vector<8x512xf32>
    %cst_16 = arith.constant dense<0.000000e+00> : vector<8x512xf32>
    %50 = tpu.matmul %47, %1, %cst_16 {dimension_numbers = #tpu.dot_dimension_numbers<[1], [0], [0], [1], [0, 0, 1, 1], [], []>} : vector<8x128xf32>, vector<128x512xf32>, vector<8x512xf32> -> vector<8x512xf32>
    %51 = arith.addf %49, %50 : vector<8x512xf32>
    %52 = vector.extract_strided_slice %51 {offsets = [0, 0], sizes = [8, 384], strides = [1, 1]} : vector<8x512xf32> to vector<8x384xf32>
    %53 = arith.negf %52 : vector<8x384xf32>
    %54 = math.exp %53 : vector<8x384xf32>
    %cst_17 = arith.constant 1.000000e+00 : f32
    %55 = vector.broadcast %cst_17 : f32 to vector<8x384xf32>
    %56 = arith.addf %55, %54 : vector<8x384xf32>
    %57 = arith.divf %55, %56 : vector<8x384xf32>
    %58 = vector.extract_strided_slice %57 {offsets = [0, 0], sizes = [8, 128], strides = [1, 1]} : vector<8x384xf32> to vector<8x128xf32>
    %59 = vector.extract_strided_slice %57 {offsets = [0, 128], sizes = [8, 128], strides = [1, 1]} : vector<8x384xf32> to vector<8x128xf32>
    %60 = vector.extract_strided_slice %57 {offsets = [0, 256], sizes = [8, 128], strides = [1, 1]} : vector<8x384xf32> to vector<8x128xf32>
    %61 = vector.extract_strided_slice %51 {offsets = [0, 384], sizes = [8, 128], strides = [1, 1]} : vector<8x512xf32> to vector<8x128xf32>
    %62 = math.tanh %61 : vector<8x128xf32>
    %63 = arith.mulf %59, %45 : vector<8x128xf32>
    %64 = arith.mulf %58, %62 : vector<8x128xf32>
    %65 = arith.addf %63, %64 : vector<8x128xf32>
    %66 = math.tanh %65 : vector<8x128xf32>
    %67 = arith.mulf %60, %66 : vector<8x128xf32>
    %c16 = arith.constant 16 : index
    %c0_18 = arith.constant 0 : index
    %68 = vector.load %arg10[%c16, %c0_18] : memref<64x128xf32, #tpu.memory_space<vmem>>, vector<8x128xf32>
    tpu.vector_store %arg10[%c16, %c0_18], %67 {strides = array<i32>} : memref<64x128xf32, #tpu.memory_space<vmem>>, vector<8x128xf32>,
    %69 = vector.extract_strided_slice %6 {offsets = [24, 0], sizes = [8, 512], strides = [1, 1]} : vector<64x512xf32> to vector<8x512xf32>
    %cst_19 = arith.constant dense<0.000000e+00> : vector<8x512xf32>
    %70 = tpu.matmul %67, %1, %cst_19 {dimension_numbers = #tpu.dot_dimension_numbers<[1], [0], [0], [1], [0, 0, 1, 1], [], []>} : vector<8x128xf32>, vector<128x512xf32>, vector<8x512xf32> -> vector<8x512xf32>
    %71 = arith.addf %69, %70 : vector<8x512xf32>
    %72 = vector.extract_strided_slice %71 {offsets = [0, 0], sizes = [8, 384], strides = [1, 1]} : vector<8x512xf32> to vector<8x384xf32>
    %73 = arith.negf %72 : vector<8x384xf32>
    %74 = math.exp %73 : vector<8x384xf32>
    %cst_20 = arith.constant 1.000000e+00 : f32
    %75 = vector.broadcast %cst_20 : f32 to vector<8x384xf32>
    %76 = arith.addf %75, %74 : vector<8x384xf32>
    %77 = arith.divf %75, %76 : vector<8x384xf32>
    %78 = vector.extract_strided_slice %77 {offsets = [0, 0], sizes = [8, 128], strides = [1, 1]} : vector<8x384xf32> to vector<8x128xf32>
    %79 = vector.extract_strided_slice %77 {offsets = [0, 128], sizes = [8, 128], strides = [1, 1]} : vector<8x384xf32> to vector<8x128xf32>
    %80 = vector.extract_strided_slice %77 {offsets = [0, 256], sizes = [8, 128], strides = [1, 1]} : vector<8x384xf32> to vector<8x128xf32>
    %81 = vector.extract_strided_slice %71 {offsets = [0, 384], sizes = [8, 128], strides = [1, 1]} : vector<8x512xf32> to vector<8x128xf32>
    %82 = math.tanh %81 : vector<8x128xf32>
    %83 = arith.mulf %79, %65 : vector<8x128xf32>
    %84 = arith.mulf %78, %82 : vector<8x128xf32>
    %85 = arith.addf %83, %84 : vector<8x128xf32>
    %86 = math.tanh %85 : vector<8x128xf32>
    %87 = arith.mulf %80, %86 : vector<8x128xf32>
    %c24 = arith.constant 24 : index
    %c0_21 = arith.constant 0 : index
    %88 = vector.load %arg10[%c24, %c0_21] : memref<64x128xf32, #tpu.memory_space<vmem>>, vector<8x128xf32>
    tpu.vector_store %arg10[%c24, %c0_21], %87 {strides = array<i32>} : memref<64x128xf32, #tpu.memory_space<vmem>>, vector<8x128xf32>,
    %89 = vector.extract_strided_slice %6 {offsets = [32, 0], sizes = [8, 512], strides = [1, 1]} : vector<64x512xf32> to vector<8x512xf32>
    %cst_22 = arith.constant dense<0.000000e+00> : vector<8x512xf32>
    %90 = tpu.matmul %87, %1, %cst_22 {dimension_numbers = #tpu.dot_dimension_numbers<[1], [0], [0], [1], [0, 0, 1, 1], [], []>} : vector<8x128xf32>, vector<128x512xf32>, vector<8x512xf32> -> vector<8x512xf32>
    %91 = arith.addf %89, %90 : vector<8x512xf32>
    %92 = vector.extract_strided_slice %91 {offsets = [0, 0], sizes = [8, 384], strides = [1, 1]} : vector<8x512xf32> to vector<8x384xf32>
    %93 = arith.negf %92 : vector<8x384xf32>
    %94 = math.exp %93 : vector<8x384xf32>
    %cst_23 = arith.constant 1.000000e+00 : f32
    %95 = vector.broadcast %cst_23 : f32 to vector<8x384xf32>
    %96 = arith.addf %95, %94 : vector<8x384xf32>
    %97 = arith.divf %95, %96 : vector<8x384xf32>
    %98 = vector.extract_strided_slice %97 {offsets = [0, 0], sizes = [8, 128], strides = [1, 1]} : vector<8x384xf32> to vector<8x128xf32>
    %99 = vector.extract_strided_slice %97 {offsets = [0, 128], sizes = [8, 128], strides = [1, 1]} : vector<8x384xf32> to vector<8x128xf32>
    %100 = vector.extract_strided_slice %97 {offsets = [0, 256], sizes = [8, 128], strides = [1, 1]} : vector<8x384xf32> to vector<8x128xf32>
    %101 = vector.extract_strided_slice %91 {offsets = [0, 384], sizes = [8, 128], strides = [1, 1]} : vector<8x512xf32> to vector<8x128xf32>
    %102 = math.tanh %101 : vector<8x128xf32>
    %103 = arith.mulf %99, %85 : vector<8x128xf32>
    %104 = arith.mulf %98, %102 : vector<8x128xf32>
    %105 = arith.addf %103, %104 : vector<8x128xf32>
    %106 = math.tanh %105 : vector<8x128xf32>
    %107 = arith.mulf %100, %106 : vector<8x128xf32>
    %c32 = arith.constant 32 : index
    %c0_24 = arith.constant 0 : index
    %108 = vector.load %arg10[%c32, %c0_24] : memref<64x128xf32, #tpu.memory_space<vmem>>, vector<8x128xf32>
    tpu.vector_store %arg10[%c32, %c0_24], %107 {strides = array<i32>} : memref<64x128xf32, #tpu.memory_space<vmem>>, vector<8x128xf32>,
    %109 = vector.extract_strided_slice %6 {offsets = [40, 0], sizes = [8, 512], strides = [1, 1]} : vector<64x512xf32> to vector<8x512xf32>
    %cst_25 = arith.constant dense<0.000000e+00> : vector<8x512xf32>
    %110 = tpu.matmul %107, %1, %cst_25 {dimension_numbers = #tpu.dot_dimension_numbers<[1], [0], [0], [1], [0, 0, 1, 1], [], []>} : vector<8x128xf32>, vector<128x512xf32>, vector<8x512xf32> -> vector<8x512xf32>
    %111 = arith.addf %109, %110 : vector<8x512xf32>
    %112 = vector.extract_strided_slice %111 {offsets = [0, 0], sizes = [8, 384], strides = [1, 1]} : vector<8x512xf32> to vector<8x384xf32>
    %113 = arith.negf %112 : vector<8x384xf32>
    %114 = math.exp %113 : vector<8x384xf32>
    %cst_26 = arith.constant 1.000000e+00 : f32
    %115 = vector.broadcast %cst_26 : f32 to vector<8x384xf32>
    %116 = arith.addf %115, %114 : vector<8x384xf32>
    %117 = arith.divf %115, %116 : vector<8x384xf32>
    %118 = vector.extract_strided_slice %117 {offsets = [0, 0], sizes = [8, 128], strides = [1, 1]} : vector<8x384xf32> to vector<8x128xf32>
    %119 = vector.extract_strided_slice %117 {offsets = [0, 128], sizes = [8, 128], strides = [1, 1]} : vector<8x384xf32> to vector<8x128xf32>
    %120 = vector.extract_strided_slice %117 {offsets = [0, 256], sizes = [8, 128], strides = [1, 1]} : vector<8x384xf32> to vector<8x128xf32>
    %121 = vector.extract_strided_slice %111 {offsets = [0, 384], sizes = [8, 128], strides = [1, 1]} : vector<8x512xf32> to vector<8x128xf32>
    %122 = math.tanh %121 : vector<8x128xf32>
    %123 = arith.mulf %119, %105 : vector<8x128xf32>
    %124 = arith.mulf %118, %122 : vector<8x128xf32>
    %125 = arith.addf %123, %124 : vector<8x128xf32>
    %126 = math.tanh %125 : vector<8x128xf32>
    %127 = arith.mulf %120, %126 : vector<8x128xf32>
    %c40 = arith.constant 40 : index
    %c0_27 = arith.constant 0 : index
    %128 = vector.load %arg10[%c40, %c0_27] : memref<64x128xf32, #tpu.memory_space<vmem>>, vector<8x128xf32>
    tpu.vector_store %arg10[%c40, %c0_27], %127 {strides = array<i32>} : memref<64x128xf32, #tpu.memory_space<vmem>>, vector<8x128xf32>,
    %129 = vector.extract_strided_slice %6 {offsets = [48, 0], sizes = [8, 512], strides = [1, 1]} : vector<64x512xf32> to vector<8x512xf32>
    %cst_28 = arith.constant dense<0.000000e+00> : vector<8x512xf32>
    %130 = tpu.matmul %127, %1, %cst_28 {dimension_numbers = #tpu.dot_dimension_numbers<[1], [0], [0], [1], [0, 0, 1, 1], [], []>} : vector<8x128xf32>, vector<128x512xf32>, vector<8x512xf32> -> vector<8x512xf32>
    %131 = arith.addf %129, %130 : vector<8x512xf32>
    %132 = vector.extract_strided_slice %131 {offsets = [0, 0], sizes = [8, 384], strides = [1, 1]} : vector<8x512xf32> to vector<8x384xf32>
    %133 = arith.negf %132 : vector<8x384xf32>
    %134 = math.exp %133 : vector<8x384xf32>
    %cst_29 = arith.constant 1.000000e+00 : f32
    %135 = vector.broadcast %cst_29 : f32 to vector<8x384xf32>
    %136 = arith.addf %135, %134 : vector<8x384xf32>
    %137 = arith.divf %135, %136 : vector<8x384xf32>
    %138 = vector.extract_strided_slice %137 {offsets = [0, 0], sizes = [8, 128], strides = [1, 1]} : vector<8x384xf32> to vector<8x128xf32>
    %139 = vector.extract_strided_slice %137 {offsets = [0, 128], sizes = [8, 128], strides = [1, 1]} : vector<8x384xf32> to vector<8x128xf32>
    %140 = vector.extract_strided_slice %137 {offsets = [0, 256], sizes = [8, 128], strides = [1, 1]} : vector<8x384xf32> to vector<8x128xf32>
    %141 = vector.extract_strided_slice %131 {offsets = [0, 384], sizes = [8, 128], strides = [1, 1]} : vector<8x512xf32> to vector<8x128xf32>
    %142 = math.tanh %141 : vector<8x128xf32>
    %143 = arith.mulf %139, %125 : vector<8x128xf32>
    %144 = arith.mulf %138, %142 : vector<8x128xf32>
    %145 = arith.addf %143, %144 : vector<8x128xf32>
    %146 = math.tanh %145 : vector<8x128xf32>
    %147 = arith.mulf %140, %146 : vector<8x128xf32>
    %c48 = arith.constant 48 : index
    %c0_30 = arith.constant 0 : index
    %148 = vector.load %arg10[%c48, %c0_30] : memref<64x128xf32, #tpu.memory_space<vmem>>, vector<8x128xf32>
    tpu.vector_store %arg10[%c48, %c0_30], %147 {strides = array<i32>} : memref<64x128xf32, #tpu.memory_space<vmem>>, vector<8x128xf32>,
    %149 = vector.extract_strided_slice %6 {offsets = [56, 0], sizes = [8, 512], strides = [1, 1]} : vector<64x512xf32> to vector<8x512xf32>
    %cst_31 = arith.constant dense<0.000000e+00> : vector<8x512xf32>
    %150 = tpu.matmul %147, %1, %cst_31 {dimension_numbers = #tpu.dot_dimension_numbers<[1], [0], [0], [1], [0, 0, 1, 1], [], []>} : vector<8x128xf32>, vector<128x512xf32>, vector<8x512xf32> -> vector<8x512xf32>
    %151 = arith.addf %149, %150 : vector<8x512xf32>
    %152 = vector.extract_strided_slice %151 {offsets = [0, 0], sizes = [8, 384], strides = [1, 1]} : vector<8x512xf32> to vector<8x384xf32>
    %153 = arith.negf %152 : vector<8x384xf32>
    %154 = math.exp %153 : vector<8x384xf32>
    %cst_32 = arith.constant 1.000000e+00 : f32
    %155 = vector.broadcast %cst_32 : f32 to vector<8x384xf32>
    %156 = arith.addf %155, %154 : vector<8x384xf32>
    %157 = arith.divf %155, %156 : vector<8x384xf32>
    %158 = vector.extract_strided_slice %157 {offsets = [0, 0], sizes = [8, 128], strides = [1, 1]} : vector<8x384xf32> to vector<8x128xf32>
    %159 = vector.extract_strided_slice %157 {offsets = [0, 128], sizes = [8, 128], strides = [1, 1]} : vector<8x384xf32> to vector<8x128xf32>
    %160 = vector.extract_strided_slice %157 {offsets = [0, 256], sizes = [8, 128], strides = [1, 1]} : vector<8x384xf32> to vector<8x128xf32>
    %161 = vector.extract_strided_slice %151 {offsets = [0, 384], sizes = [8, 128], strides = [1, 1]} : vector<8x512xf32> to vector<8x128xf32>
    %162 = math.tanh %161 : vector<8x128xf32>
    %163 = arith.mulf %159, %145 : vector<8x128xf32>
    %164 = arith.mulf %158, %162 : vector<8x128xf32>
    %165 = arith.addf %163, %164 : vector<8x128xf32>
    %166 = math.tanh %165 : vector<8x128xf32>
    %167 = arith.mulf %160, %166 : vector<8x128xf32>
    %c56 = arith.constant 56 : index
    %c0_33 = arith.constant 0 : index
    %168 = vector.load %arg10[%c56, %c0_33] : memref<64x128xf32, #tpu.memory_space<vmem>>, vector<8x128xf32>
    tpu.vector_store %arg10[%c56, %c0_33], %167 {strides = array<i32>} : memref<64x128xf32, #tpu.memory_space<vmem>>, vector<8x128xf32>,
    %c0_34 = arith.constant 0 : index
    %c0_35 = arith.constant 0 : index
    %169 = vector.load %arg4[%c0_34, %c0_35] : memref<128x512xf32, #tpu.memory_space<vmem>>, vector<128x512xf32>
    %c0_36 = arith.constant 0 : index
    %c0_37 = arith.constant 0 : index
    %170 = vector.load %arg5[%c0_36, %c0_37] : memref<128x512xf32, #tpu.memory_space<vmem>>, vector<128x512xf32>
    %c0_38 = arith.constant 0 : index
    %c0_39 = arith.constant 0 : index
    %171 = vector.load %arg6[%c0_38, %c0_39] : memref<1x512xf32, #tpu.memory_space<vmem>>, vector<1x512xf32>
    %c0_40 = arith.constant 0 : index
    %c0_41 = arith.constant 0 : index
    %172 = vector.load %arg10[%c0_40, %c0_41] : memref<64x128xf32, #tpu.memory_space<vmem>>, vector<64x128xf32>
    %cst_42 = arith.constant dense<0.000000e+00> : vector<64x512xf32>
    %173 = tpu.matmul %172, %169, %cst_42 {dimension_numbers = #tpu.dot_dimension_numbers<[1], [0], [0], [1], [0, 0, 1, 1], [], []>} : vector<64x128xf32>, vector<128x512xf32>, vector<64x512xf32> -> vector<64x512xf32>
    %174 = vector.broadcast %171 : vector<1x512xf32> to vector<64x512xf32>
    %175 = arith.addf %173, %174 : vector<64x512xf32>
    %cst_43 = arith.constant 0.000000e+00 : f32
    %176 = vector.broadcast %cst_43 : f32 to vector<8x128xf32>
    %cst_44 = arith.constant 0.000000e+00 : f32
    %177 = vector.broadcast %cst_44 : f32 to vector<8x128xf32>
    %178 = vector.extract_strided_slice %175 {offsets = [0, 0], sizes = [8, 512], strides = [1, 1]} : vector<64x512xf32> to vector<8x512xf32>
    %cst_45 = arith.constant dense<0.000000e+00> : vector<8x512xf32>
    %179 = tpu.matmul %176, %170, %cst_45 {dimension_numbers = #tpu.dot_dimension_numbers<[1], [0], [0], [1], [0, 0, 1, 1], [], []>} : vector<8x128xf32>, vector<128x512xf32>, vector<8x512xf32> -> vector<8x512xf32>
    %180 = arith.addf %178, %179 : vector<8x512xf32>
    %181 = vector.extract_strided_slice %180 {offsets = [0, 0], sizes = [8, 384], strides = [1, 1]} : vector<8x512xf32> to vector<8x384xf32>
    %182 = arith.negf %181 : vector<8x384xf32>
    %183 = math.exp %182 : vector<8x384xf32>
    %cst_46 = arith.constant 1.000000e+00 : f32
    %184 = vector.broadcast %cst_46 : f32 to vector<8x384xf32>
    %185 = arith.addf %184, %183 : vector<8x384xf32>
    %186 = arith.divf %184, %185 : vector<8x384xf32>
    %187 = vector.extract_strided_slice %186 {offsets = [0, 0], sizes = [8, 128], strides = [1, 1]} : vector<8x384xf32> to vector<8x128xf32>
    %188 = vector.extract_strided_slice %186 {offsets = [0, 128], sizes = [8, 128], strides = [1, 1]} : vector<8x384xf32> to vector<8x128xf32>
    %189 = vector.extract_strided_slice %186 {offsets = [0, 256], sizes = [8, 128], strides = [1, 1]} : vector<8x384xf32> to vector<8x128xf32>
    %190 = vector.extract_strided_slice %180 {offsets = [0, 384], sizes = [8, 128], strides = [1, 1]} : vector<8x512xf32> to vector<8x128xf32>
    %191 = math.tanh %190 : vector<8x128xf32>
    %192 = arith.mulf %188, %177 : vector<8x128xf32>
    %193 = arith.mulf %187, %191 : vector<8x128xf32>
    %194 = arith.addf %192, %193 : vector<8x128xf32>
    %195 = math.tanh %194 : vector<8x128xf32>
    %196 = arith.mulf %189, %195 : vector<8x128xf32>
    %197 = vector.extract_strided_slice %175 {offsets = [8, 0], sizes = [8, 512], strides = [1, 1]} : vector<64x512xf32> to vector<8x512xf32>
    %cst_47 = arith.constant dense<0.000000e+00> : vector<8x512xf32>
    %198 = tpu.matmul %196, %170, %cst_47 {dimension_numbers = #tpu.dot_dimension_numbers<[1], [0], [0], [1], [0, 0, 1, 1], [], []>} : vector<8x128xf32>, vector<128x512xf32>, vector<8x512xf32> -> vector<8x512xf32>
    %199 = arith.addf %197, %198 : vector<8x512xf32>
    %200 = vector.extract_strided_slice %199 {offsets = [0, 0], sizes = [8, 384], strides = [1, 1]} : vector<8x512xf32> to vector<8x384xf32>
    %201 = arith.negf %200 : vector<8x384xf32>
    %202 = math.exp %201 : vector<8x384xf32>
    %cst_48 = arith.constant 1.000000e+00 : f32
    %203 = vector.broadcast %cst_48 : f32 to vector<8x384xf32>
    %204 = arith.addf %203, %202 : vector<8x384xf32>
    %205 = arith.divf %203, %204 : vector<8x384xf32>
    %206 = vector.extract_strided_slice %205 {offsets = [0, 0], sizes = [8, 128], strides = [1, 1]} : vector<8x384xf32> to vector<8x128xf32>
    %207 = vector.extract_strided_slice %205 {offsets = [0, 128], sizes = [8, 128], strides = [1, 1]} : vector<8x384xf32> to vector<8x128xf32>
    %208 = vector.extract_strided_slice %205 {offsets = [0, 256], sizes = [8, 128], strides = [1, 1]} : vector<8x384xf32> to vector<8x128xf32>
    %209 = vector.extract_strided_slice %199 {offsets = [0, 384], sizes = [8, 128], strides = [1, 1]} : vector<8x512xf32> to vector<8x128xf32>
    %210 = math.tanh %209 : vector<8x128xf32>
    %211 = arith.mulf %207, %194 : vector<8x128xf32>
    %212 = arith.mulf %206, %210 : vector<8x128xf32>
    %213 = arith.addf %211, %212 : vector<8x128xf32>
    %214 = math.tanh %213 : vector<8x128xf32>
    %215 = arith.mulf %208, %214 : vector<8x128xf32>
    %216 = vector.extract_strided_slice %175 {offsets = [16, 0], sizes = [8, 512], strides = [1, 1]} : vector<64x512xf32> to vector<8x512xf32>
    %cst_49 = arith.constant dense<0.000000e+00> : vector<8x512xf32>
    %217 = tpu.matmul %215, %170, %cst_49 {dimension_numbers = #tpu.dot_dimension_numbers<[1], [0], [0], [1], [0, 0, 1, 1], [], []>} : vector<8x128xf32>, vector<128x512xf32>, vector<8x512xf32> -> vector<8x512xf32>
    %218 = arith.addf %216, %217 : vector<8x512xf32>
    %219 = vector.extract_strided_slice %218 {offsets = [0, 0], sizes = [8, 384], strides = [1, 1]} : vector<8x512xf32> to vector<8x384xf32>
    %220 = arith.negf %219 : vector<8x384xf32>
    %221 = math.exp %220 : vector<8x384xf32>
    %cst_50 = arith.constant 1.000000e+00 : f32
    %222 = vector.broadcast %cst_50 : f32 to vector<8x384xf32>
    %223 = arith.addf %222, %221 : vector<8x384xf32>
    %224 = arith.divf %222, %223 : vector<8x384xf32>
    %225 = vector.extract_strided_slice %224 {offsets = [0, 0], sizes = [8, 128], strides = [1, 1]} : vector<8x384xf32> to vector<8x128xf32>
    %226 = vector.extract_strided_slice %224 {offsets = [0, 128], sizes = [8, 128], strides = [1, 1]} : vector<8x384xf32> to vector<8x128xf32>
    %227 = vector.extract_strided_slice %224 {offsets = [0, 256], sizes = [8, 128], strides = [1, 1]} : vector<8x384xf32> to vector<8x128xf32>
    %228 = vector.extract_strided_slice %218 {offsets = [0, 384], sizes = [8, 128], strides = [1, 1]} : vector<8x512xf32> to vector<8x128xf32>
    %229 = math.tanh %228 : vector<8x128xf32>
    %230 = arith.mulf %226, %213 : vector<8x128xf32>
    %231 = arith.mulf %225, %229 : vector<8x128xf32>
    %232 = arith.addf %230, %231 : vector<8x128xf32>
    %233 = math.tanh %232 : vector<8x128xf32>
    %234 = arith.mulf %227, %233 : vector<8x128xf32>
    %235 = vector.extract_strided_slice %175 {offsets = [24, 0], sizes = [8, 512], strides = [1, 1]} : vector<64x512xf32> to vector<8x512xf32>
    %cst_51 = arith.constant dense<0.000000e+00> : vector<8x512xf32>
    %236 = tpu.matmul %234, %170, %cst_51 {dimension_numbers = #tpu.dot_dimension_numbers<[1], [0], [0], [1], [0, 0, 1, 1], [], []>} : vector<8x128xf32>, vector<128x512xf32>, vector<8x512xf32> -> vector<8x512xf32>
    %237 = arith.addf %235, %236 : vector<8x512xf32>
    %238 = vector.extract_strided_slice %237 {offsets = [0, 0], sizes = [8, 384], strides = [1, 1]} : vector<8x512xf32> to vector<8x384xf32>
    %239 = arith.negf %238 : vector<8x384xf32>
    %240 = math.exp %239 : vector<8x384xf32>
    %cst_52 = arith.constant 1.000000e+00 : f32
    %241 = vector.broadcast %cst_52 : f32 to vector<8x384xf32>
    %242 = arith.addf %241, %240 : vector<8x384xf32>
    %243 = arith.divf %241, %242 : vector<8x384xf32>
    %244 = vector.extract_strided_slice %243 {offsets = [0, 0], sizes = [8, 128], strides = [1, 1]} : vector<8x384xf32> to vector<8x128xf32>
    %245 = vector.extract_strided_slice %243 {offsets = [0, 128], sizes = [8, 128], strides = [1, 1]} : vector<8x384xf32> to vector<8x128xf32>
    %246 = vector.extract_strided_slice %243 {offsets = [0, 256], sizes = [8, 128], strides = [1, 1]} : vector<8x384xf32> to vector<8x128xf32>
    %247 = vector.extract_strided_slice %237 {offsets = [0, 384], sizes = [8, 128], strides = [1, 1]} : vector<8x512xf32> to vector<8x128xf32>
    %248 = math.tanh %247 : vector<8x128xf32>
    %249 = arith.mulf %245, %232 : vector<8x128xf32>
    %250 = arith.mulf %244, %248 : vector<8x128xf32>
    %251 = arith.addf %249, %250 : vector<8x128xf32>
    %252 = math.tanh %251 : vector<8x128xf32>
    %253 = arith.mulf %246, %252 : vector<8x128xf32>
    %254 = vector.extract_strided_slice %175 {offsets = [32, 0], sizes = [8, 512], strides = [1, 1]} : vector<64x512xf32> to vector<8x512xf32>
    %cst_53 = arith.constant dense<0.000000e+00> : vector<8x512xf32>
    %255 = tpu.matmul %253, %170, %cst_53 {dimension_numbers = #tpu.dot_dimension_numbers<[1], [0], [0], [1], [0, 0, 1, 1], [], []>} : vector<8x128xf32>, vector<128x512xf32>, vector<8x512xf32> -> vector<8x512xf32>
    %256 = arith.addf %254, %255 : vector<8x512xf32>
    %257 = vector.extract_strided_slice %256 {offsets = [0, 0], sizes = [8, 384], strides = [1, 1]} : vector<8x512xf32> to vector<8x384xf32>
    %258 = arith.negf %257 : vector<8x384xf32>
    %259 = math.exp %258 : vector<8x384xf32>
    %cst_54 = arith.constant 1.000000e+00 : f32
    %260 = vector.broadcast %cst_54 : f32 to vector<8x384xf32>
    %261 = arith.addf %260, %259 : vector<8x384xf32>
    %262 = arith.divf %260, %261 : vector<8x384xf32>
    %263 = vector.extract_strided_slice %262 {offsets = [0, 0], sizes = [8, 128], strides = [1, 1]} : vector<8x384xf32> to vector<8x128xf32>
    %264 = vector.extract_strided_slice %262 {offsets = [0, 128], sizes = [8, 128], strides = [1, 1]} : vector<8x384xf32> to vector<8x128xf32>
    %265 = vector.extract_strided_slice %262 {offsets = [0, 256], sizes = [8, 128], strides = [1, 1]} : vector<8x384xf32> to vector<8x128xf32>
    %266 = vector.extract_strided_slice %256 {offsets = [0, 384], sizes = [8, 128], strides = [1, 1]} : vector<8x512xf32> to vector<8x128xf32>
    %267 = math.tanh %266 : vector<8x128xf32>
    %268 = arith.mulf %264, %251 : vector<8x128xf32>
    %269 = arith.mulf %263, %267 : vector<8x128xf32>
    %270 = arith.addf %268, %269 : vector<8x128xf32>
    %271 = math.tanh %270 : vector<8x128xf32>
    %272 = arith.mulf %265, %271 : vector<8x128xf32>
    %273 = vector.extract_strided_slice %175 {offsets = [40, 0], sizes = [8, 512], strides = [1, 1]} : vector<64x512xf32> to vector<8x512xf32>
    %cst_55 = arith.constant dense<0.000000e+00> : vector<8x512xf32>
    %274 = tpu.matmul %272, %170, %cst_55 {dimension_numbers = #tpu.dot_dimension_numbers<[1], [0], [0], [1], [0, 0, 1, 1], [], []>} : vector<8x128xf32>, vector<128x512xf32>, vector<8x512xf32> -> vector<8x512xf32>
    %275 = arith.addf %273, %274 : vector<8x512xf32>
    %276 = vector.extract_strided_slice %275 {offsets = [0, 0], sizes = [8, 384], strides = [1, 1]} : vector<8x512xf32> to vector<8x384xf32>
    %277 = arith.negf %276 : vector<8x384xf32>
    %278 = math.exp %277 : vector<8x384xf32>
    %cst_56 = arith.constant 1.000000e+00 : f32
    %279 = vector.broadcast %cst_56 : f32 to vector<8x384xf32>
    %280 = arith.addf %279, %278 : vector<8x384xf32>
    %281 = arith.divf %279, %280 : vector<8x384xf32>
    %282 = vector.extract_strided_slice %281 {offsets = [0, 0], sizes = [8, 128], strides = [1, 1]} : vector<8x384xf32> to vector<8x128xf32>
    %283 = vector.extract_strided_slice %281 {offsets = [0, 128], sizes = [8, 128], strides = [1, 1]} : vector<8x384xf32> to vector<8x128xf32>
    %284 = vector.extract_strided_slice %281 {offsets = [0, 256], sizes = [8, 128], strides = [1, 1]} : vector<8x384xf32> to vector<8x128xf32>
    %285 = vector.extract_strided_slice %275 {offsets = [0, 384], sizes = [8, 128], strides = [1, 1]} : vector<8x512xf32> to vector<8x128xf32>
    %286 = math.tanh %285 : vector<8x128xf32>
    %287 = arith.mulf %283, %270 : vector<8x128xf32>
    %288 = arith.mulf %282, %286 : vector<8x128xf32>
    %289 = arith.addf %287, %288 : vector<8x128xf32>
    %290 = math.tanh %289 : vector<8x128xf32>
    %291 = arith.mulf %284, %290 : vector<8x128xf32>
    %292 = vector.extract_strided_slice %175 {offsets = [48, 0], sizes = [8, 512], strides = [1, 1]} : vector<64x512xf32> to vector<8x512xf32>
    %cst_57 = arith.constant dense<0.000000e+00> : vector<8x512xf32>
    %293 = tpu.matmul %291, %170, %cst_57 {dimension_numbers = #tpu.dot_dimension_numbers<[1], [0], [0], [1], [0, 0, 1, 1], [], []>} : vector<8x128xf32>, vector<128x512xf32>, vector<8x512xf32> -> vector<8x512xf32>
    %294 = arith.addf %292, %293 : vector<8x512xf32>
    %295 = vector.extract_strided_slice %294 {offsets = [0, 0], sizes = [8, 384], strides = [1, 1]} : vector<8x512xf32> to vector<8x384xf32>
    %296 = arith.negf %295 : vector<8x384xf32>
    %297 = math.exp %296 : vector<8x384xf32>
    %cst_58 = arith.constant 1.000000e+00 : f32
    %298 = vector.broadcast %cst_58 : f32 to vector<8x384xf32>
    %299 = arith.addf %298, %297 : vector<8x384xf32>
    %300 = arith.divf %298, %299 : vector<8x384xf32>
    %301 = vector.extract_strided_slice %300 {offsets = [0, 0], sizes = [8, 128], strides = [1, 1]} : vector<8x384xf32> to vector<8x128xf32>
    %302 = vector.extract_strided_slice %300 {offsets = [0, 128], sizes = [8, 128], strides = [1, 1]} : vector<8x384xf32> to vector<8x128xf32>
    %303 = vector.extract_strided_slice %300 {offsets = [0, 256], sizes = [8, 128], strides = [1, 1]} : vector<8x384xf32> to vector<8x128xf32>
    %304 = vector.extract_strided_slice %294 {offsets = [0, 384], sizes = [8, 128], strides = [1, 1]} : vector<8x512xf32> to vector<8x128xf32>
    %305 = math.tanh %304 : vector<8x128xf32>
    %306 = arith.mulf %302, %289 : vector<8x128xf32>
    %307 = arith.mulf %301, %305 : vector<8x128xf32>
    %308 = arith.addf %306, %307 : vector<8x128xf32>
    %309 = math.tanh %308 : vector<8x128xf32>
    %310 = arith.mulf %303, %309 : vector<8x128xf32>
    %311 = vector.extract_strided_slice %175 {offsets = [56, 0], sizes = [8, 512], strides = [1, 1]} : vector<64x512xf32> to vector<8x512xf32>
    %cst_59 = arith.constant dense<0.000000e+00> : vector<8x512xf32>
    %312 = tpu.matmul %310, %170, %cst_59 {dimension_numbers = #tpu.dot_dimension_numbers<[1], [0], [0], [1], [0, 0, 1, 1], [], []>} : vector<8x128xf32>, vector<128x512xf32>, vector<8x512xf32> -> vector<8x512xf32>
    %313 = arith.addf %311, %312 : vector<8x512xf32>
    %314 = vector.extract_strided_slice %313 {offsets = [0, 0], sizes = [8, 384], strides = [1, 1]} : vector<8x512xf32> to vector<8x384xf32>
    %315 = arith.negf %314 : vector<8x384xf32>
    %316 = math.exp %315 : vector<8x384xf32>
    %cst_60 = arith.constant 1.000000e+00 : f32
    %317 = vector.broadcast %cst_60 : f32 to vector<8x384xf32>
    %318 = arith.addf %317, %316 : vector<8x384xf32>
    %319 = arith.divf %317, %318 : vector<8x384xf32>
    %320 = vector.extract_strided_slice %319 {offsets = [0, 0], sizes = [8, 128], strides = [1, 1]} : vector<8x384xf32> to vector<8x128xf32>
    %321 = vector.extract_strided_slice %319 {offsets = [0, 128], sizes = [8, 128], strides = [1, 1]} : vector<8x384xf32> to vector<8x128xf32>
    %322 = vector.extract_strided_slice %319 {offsets = [0, 256], sizes = [8, 128], strides = [1, 1]} : vector<8x384xf32> to vector<8x128xf32>
    %323 = vector.extract_strided_slice %313 {offsets = [0, 384], sizes = [8, 128], strides = [1, 1]} : vector<8x512xf32> to vector<8x128xf32>
    %324 = math.tanh %323 : vector<8x128xf32>
    %325 = arith.mulf %321, %308 : vector<8x128xf32>
    %326 = arith.mulf %320, %324 : vector<8x128xf32>
    %327 = arith.addf %325, %326 : vector<8x128xf32>
    %328 = math.tanh %327 : vector<8x128xf32>
    %329 = arith.mulf %322, %328 : vector<8x128xf32>
    %c0_61 = arith.constant 0 : index
    %c0_62 = arith.constant 0 : index
    %330 = vector.load %arg7[%c0_61, %c0_62] : memref<128x128xf32, #tpu.memory_space<vmem>>, vector<128x128xf32>
    %cst_63 = arith.constant dense<0.000000e+00> : vector<8x128xf32>
    %331 = tpu.matmul %329, %330, %cst_63 {dimension_numbers = #tpu.dot_dimension_numbers<[1], [0], [0], [1], [0, 0, 1, 1], [], []>} : vector<8x128xf32>, vector<128x128xf32>, vector<8x128xf32> -> vector<8x128xf32>
    %c0_64 = arith.constant 0 : index
    %c0_65 = arith.constant 0 : index
    %332 = vector.load %arg8[%c0_64, %c0_65] : memref<1x128xf32, #tpu.memory_space<vmem>>, vector<1x128xf32>
    %333 = vector.broadcast %332 : vector<1x128xf32> to vector<8x128xf32>
    %334 = arith.addf %331, %333 : vector<8x128xf32>
    %c0_66 = arith.constant 0 : index
    %c0_67 = arith.constant 0 : index
    %335 = vector.load %arg9[%c0_66, %c0_67] : memref<8x128xf32, #tpu.memory_space<vmem>>, vector<8x128xf32>
    tpu.vector_store %arg9[%c0_66, %c0_67], %334 {strides = array<i32>} : memref<8x128xf32, #tpu.memory_space<vmem>>, vector<8x128xf32>,
    return
  }
}

</mosaic_0001>

<llo_original>
// kernel: tpu_custom_call.1
$region0: #{tpu_custom_call.1}
  #allocation0 [shape = 'u32[]', space=smem, size = 0x4, offset = 0x4, fixed_abs, tag = 'smem constant byte address 0x4 - core index']
  #allocation1 [shape = 'u32[144,128]{1,0:T(1,128)}', space=vmem, size = 0x12000, scoped, tag = 'internal scratch']
  #allocation2 [shape = 'f32[64,128]{1,0:T(8,128)}', space=vmem, size = 0x8000, scoped, tag = 'scratch operand']
  %s0 = inlined_call_operand.vmem [shape: f32[64,4], index: 0, kind: input, shape index: {}]
  %s1 = inlined_call_operand.vmem [shape: f32[4,512], index: 1, kind: input, shape index: {}]
  %s2 = inlined_call_operand.hbm [shape: f32[128,512], index: 2, kind: input, shape index: {}]
  %s3 = inlined_call_operand.vmem [shape: f32[1,512], index: 3, kind: input, shape index: {}]
  %s4 = inlined_call_operand.hbm [shape: f32[128,512], index: 4, kind: input, shape index: {}]
  %s5 = inlined_call_operand.hbm [shape: f32[128,512], index: 5, kind: input, shape index: {}]
  %s6 = inlined_call_operand.vmem [shape: f32[1,512], index: 6, kind: input, shape index: {}]
  %s7 = inlined_call_operand.hbm [shape: f32[128,128], index: 7, kind: input, shape index: {}]
  %s8 = inlined_call_operand.vmem [shape: f32[1,128], index: 8, kind: input, shape index: {}]
  %s9 = inlined_call_operand.hbm [shape: f32[8,128], index: 9, kind: output, shape index: {}]
  %s10 = sld [smem:[#allocation0]]
  $region62: #{tpu_custom_call.1} parent=0
    _
  %s12 = ssub.s32 1, %s10
  %s13 = scalar_select 0, %s12, %s10
  $region1: #{tpu_custom_call.1} parent=0
    #allocation3 [shape = 'u8[262144]{0}', space=vmem, size = 0x40000, scoped, tag = 'input window, operand 2, single buffered']
    #allocation4 [shape = 's32[1]{0}', space=sflag, size = 0x4, scoped, tag = 'scoped memory for tpu_custom_call.1']
    #allocation5 [shape = 's32[1]{0}', space=sflag, size = 0x4, scoped, tag = 'scoped memory for tpu_custom_call.1']
    #allocation6 [shape = 'u8[262144]{0}', space=vmem, size = 0x40000, scoped, tag = 'input window, operand 4, single buffered']
    #allocation7 [shape = 's32[1]{0}', space=sflag, size = 0x4, scoped, tag = 'scoped memory for tpu_custom_call.1']
    #allocation8 [shape = 'u8[262144]{0}', space=vmem, size = 0x40000, scoped, tag = 'input window, operand 5, single buffered']
    #allocation9 [shape = 'u8[65536]{0}', space=vmem, size = 0x10000, scoped, tag = 'input window, operand 7, single buffered']
    #allocation10 [shape = 's32[1]{0}', space=sflag, size = 0x4, scoped, tag = 'scoped memory for tpu_custom_call.1']
    #allocation11 [shape = 'u8[4096]{0}', space=vmem, size = 0x1000, scoped, tag = 'output window, operand 0, single buffered']
    %14 = vsyncpa [#allocation4], 0
    %15 = vsyncpa [#allocation7], 0
    %16 = vsyncpa [#allocation10], 0
    %17 = vsyncpa [#allocation5], 0
    // Predicated region
    $region2: #{tpu_custom_call.1} parent=1 // pred_check
      _
    $region3: #{tpu_custom_call.1} parent=1 // pred_check_branch
      %19 = sbr.rel (0) target = $region5
    $region4: #{tpu_custom_call.1} parent=1 // pred_region
      _
    $region5: #{tpu_custom_call.1} parent=1 // pred_fallthru
      _
    // Predicated region
    $region6: #{tpu_custom_call.1} parent=1 // pred_check
      _
    $region7: #{tpu_custom_call.1} parent=1 // pred_check_branch
      %21 = sbr.rel (0) target = $region9
    $region8: #{tpu_custom_call.1} parent=1 // pred_region
      _
    $region9: #{tpu_custom_call.1} parent=1 // pred_fallthru
      _
    // Predicated region
    $region10: #{tpu_custom_call.1} parent=1 // pred_check
      _
    $region11: #{tpu_custom_call.1} parent=1 // pred_check_branch
      %23 = sbr.rel (0) target = $region13
    $region12: #{tpu_custom_call.1} parent=1 // pred_region
      %s25 = ssub.s32 8192, 8192
      %26 = vsyncadd [#allocation4], %s25
      %s27 = sshll.u32 [#allocation3], 4
      %s28 = int_to_ptr.vmem [resolvable:$true] %s27
      %33 = dma.hbm_to_vmem [thread:$0]  %s2, 8192, %s28, [#allocation4], 512, 512, 32
    $region13: #{tpu_custom_call.1} parent=1 // pred_fallthru
      _
    // Predicated region
    $region14: #{tpu_custom_call.1} parent=1 // pred_check
      _
    $region15: #{tpu_custom_call.1} parent=1 // pred_check_branch
      %35 = sbr.rel (0) target = $region17
    $region16: #{tpu_custom_call.1} parent=1 // pred_region
      _
    $region17: #{tpu_custom_call.1} parent=1 // pred_fallthru
      _
    // Predicated region
    $region18: #{tpu_custom_call.1} parent=1 // pred_check
      _
    $region19: #{tpu_custom_call.1} parent=1 // pred_check_branch
      %37 = sbr.rel (0) target = $region21
    $region20: #{tpu_custom_call.1} parent=1 // pred_region
      %s39 = ssub.s32 8192, 8192
      %40 = vsyncadd [#allocation7], %s39
      %s41 = sshll.u32 [#allocation6], 4
      %s42 = int_to_ptr.vmem [resolvable:$true] %s41
      %47 = dma.hbm_to_vmem [thread:$0]  %s4, 8192, %s42, [#allocation7], 512, 512, 32
    $region21: #{tpu_custom_call.1} parent=1 // pred_fallthru
      _
    // Predicated region
    $region22: #{tpu_custom_call.1} parent=1 // pred_check
      _
    $region23: #{tpu_custom_call.1} parent=1 // pred_check_branch
      %49 = sbr.rel (0) target = $region25
    $region24: #{tpu_custom_call.1} parent=1 // pred_region
      %s51 = ssub.s32 8192, 8192
      %52 = vsyncadd [#allocation7], %s51
      %s53 = sshll.u32 [#allocation8], 4
      %s54 = int_to_ptr.vmem [resolvable:$true] %s53
      %59 = dma.hbm_to_vmem [thread:$0]  %s5, 8192, %s54, [#allocation7], 512, 512, 32
    $region25: #{tpu_custom_call.1} parent=1 // pred_fallthru
      _
    // Predicated region
    $region26: #{tpu_custom_call.1} parent=1 // pred_check
      _
    $region27: #{tpu_custom_call.1} parent=1 // pred_check_branch
      %61 = sbr.rel (0) target = $region29
    $region28: #{tpu_custom_call.1} parent=1 // pred_region
      _
    $region29: #{tpu_custom_call.1} parent=1 // pred_fallthru
      _
    // Predicated region
    $region30: #{tpu_custom_call.1} parent=1 // pred_check
      _
    $region31: #{tpu_custom_call.1} parent=1 // pred_check_branch
      %63 = sbr.rel (0) target = $region33
    $region32: #{tpu_custom_call.1} parent=1 // pred_region
      %s65 = ssub.s32 2048, 2048
      %66 = vsyncadd [#allocation10], %s65
      %s67 = sshll.u32 [#allocation9], 4
      %s68 = int_to_ptr.vmem [resolvable:$true] %s67
      %73 = dma.hbm_to_vmem [thread:$0]  %s7, 2048, %s68, [#allocation10], 128, 128, 8
    $region33: #{tpu_custom_call.1} parent=1 // pred_fallthru
      _
    // Predicated region
    $region34: #{tpu_custom_call.1} parent=1 // pred_check
      _
    $region35: #{tpu_custom_call.1} parent=1 // pred_check_branch
      %75 = sbr.rel (0) target = $region37
    $region36: #{tpu_custom_call.1} parent=1 // pred_region
      _
    $region37: #{tpu_custom_call.1} parent=1 // pred_fallthru
      _
    // Predicated region
    $region38: #{tpu_custom_call.1} parent=1 // pred_check
      _
    $region39: #{tpu_custom_call.1} parent=1 // pred_check_branch
      %77 = sbr.rel (0) target = $region41
    $region40: #{tpu_custom_call.1} parent=1 // pred_region
      %78 = dma.done [#allocation4], 8192
    $region41: #{tpu_custom_call.1} parent=1 // pred_fallthru
      _
    // Predicated region
    $region42: #{tpu_custom_call.1} parent=1 // pred_check
      _
    $region43: #{tpu_custom_call.1} parent=1 // pred_check_branch
      %80 = sbr.rel (0) target = $region45
    $region44: #{tpu_custom_call.1} parent=1 // pred_region
      %81 = dma.done [#allocation7], 8192
    $region45: #{tpu_custom_call.1} parent=1 // pred_fallthru
      _
    // Predicated region
    $region46: #{tpu_custom_call.1} parent=1 // pred_check
      _
    $region47: #{tpu_custom_call.1} parent=1 // pred_check_branch
      %83 = sbr.rel (0) target = $region49
    $region48: #{tpu_custom_call.1} parent=1 // pred_region
      %84 = dma.done [#allocation7], 8192
    $region49: #{tpu_custom_call.1} parent=1 // pred_fallthru
      _
    // Predicated region
    $region50: #{tpu_custom_call.1} parent=1 // pred_check
      _
    $region51: #{tpu_custom_call.1} parent=1 // pred_check_branch
      %86 = sbr.rel (0) target = $region53
    $region52: #{tpu_custom_call.1} parent=1 // pred_region
      %87 = dma.done [#allocation10], 2048
    $region53: #{tpu_custom_call.1} parent=1 // pred_fallthru
      _
    %v88 = vld [vmem:[%s1] sm:$0xff]
    %v89 = vld [vmem:[%s1 + $0x8] sm:$0xff]
    %v90 = vld [vmem:[#allocation3] sm:$0xff]
    %v91 = vld [vmem:[#allocation3 + $0x8] sm:$0xff]
    %v92 = vld [vmem:[#allocation3 + $0x10] sm:$0xff]
    %v93 = vld [vmem:[#allocation3 + $0x18] sm:$0xff]
    %v94 = vld [vmem:[#allocation3 + $0x20] sm:$0xff]
    %v95 = vld [vmem:[#allocation3 + $0x28] sm:$0xff]
    %v96 = vld [vmem:[#allocation3 + $0x30] sm:$0xff]
    %v97 = vld [vmem:[#allocation3 + $0x38] sm:$0xff]
    %v98 = vld [vmem:[#allocation3 + $0x40] sm:$0xff]
    %v99 = vld [vmem:[#allocation3 + $0x48] sm:$0xff]
    %v100 = vld [vmem:[#allocation3 + $0x50] sm:$0xff]
    %v101 = vld [vmem:[#allocation3 + $0x58] sm:$0xff]
    %v102 = vld [vmem:[#allocation3 + $0x60] sm:$0xff]
    %v103 = vld [vmem:[#allocation3 + $0x68] sm:$0xff]
    %v104 = vld [vmem:[#allocation3 + $0x70] sm:$0xff]
    %v105 = vld [vmem:[#allocation3 + $0x78] sm:$0xff]
    %v106 = vld [vmem:[#allocation3 + $0x80] sm:$0xff]
    %v107 = vld [vmem:[#allocation3 + $0x88] sm:$0xff]
    %v108 = vld [vmem:[#allocation3 + $0x90] sm:$0xff]
    %v109 = vld [vmem:[#allocation3 + $0x98] sm:$0xff]
    %v110 = vld [vmem:[#allocation3 + $0xa0] sm:$0xff]
    %v111 = vld [vmem:[#allocation3 + $0xa8] sm:$0xff]
    %v112 = vld [vmem:[#allocation3 + $0xb0] sm:$0xff]
    %v113 = vld [vmem:[#allocation3 + $0xb8] sm:$0xff]
    %v114 = vld [vmem:[#allocation3 + $0xc0] sm:$0xff]
    %v115 = vld [vmem:[#allocation3 + $0xc8] sm:$0xff]
    %v116 = vld [vmem:[#allocation3 + $0xd0] sm:$0xff]
    %v117 = vld [vmem:[#allocation3 + $0xd8] sm:$0xff]
    %v118 = vld [vmem:[#allocation3 + $0xe0] sm:$0xff]
    %v119 = vld [vmem:[#allocation3 + $0xe8] sm:$0xff]
    %v120 = vld [vmem:[#allocation3 + $0xf0] sm:$0xff]
    %v121 = vld [vmem:[#allocation3 + $0xf8] sm:$0xff]
    %v122 = vld [vmem:[#allocation3 + $0x100] sm:$0xff]
    %v123 = vld [vmem:[#allocation3 + $0x108] sm:$0xff]
    %v124 = vld [vmem:[#allocation3 + $0x110] sm:$0xff]
    %v125 = vld [vmem:[#allocation3 + $0x118] sm:$0xff]
    %v126 = vld [vmem:[#allocation3 + $0x120] sm:$0xff]
    %v127 = vld [vmem:[#allocation3 + $0x128] sm:$0xff]
    %v128 = vld [vmem:[#allocation3 + $0x130] sm:$0xff]
    %v129 = vld [vmem:[#allocation3 + $0x138] sm:$0xff]
    %v130 = vld [vmem:[#allocation3 + $0x140] sm:$0xff]
    %v131 = vld [vmem:[#allocation3 + $0x148] sm:$0xff]
    %v132 = vld [vmem:[#allocation3 + $0x150] sm:$0xff]
    %v133 = vld [vmem:[#allocation3 + $0x158] sm:$0xff]
    %v134 = vld [vmem:[#allocation3 + $0x160] sm:$0xff]
    %v135 = vld [vmem:[#allocation3 + $0x168] sm:$0xff]
    %v136 = vld [vmem:[#allocation3 + $0x170] sm:$0xff]
    %v137 = vld [vmem:[#allocation3 + $0x178] sm:$0xff]
    %v138 = vld [vmem:[#allocation3 + $0x180] sm:$0xff]
    %v139 = vld [vmem:[#allocation3 + $0x188] sm:$0xff]
    %v140 = vld [vmem:[#allocation3 + $0x190] sm:$0xff]
    %v141 = vld [vmem:[#allocation3 + $0x198] sm:$0xff]
    %v142 = vld [vmem:[#allocation3 + $0x1a0] sm:$0xff]
    %v143 = vld [vmem:[#allocation3 + $0x1a8] sm:$0xff]
    %v144 = vld [vmem:[#allocation3 + $0x1b0] sm:$0xff]
    %v145 = vld [vmem:[#allocation3 + $0x1b8] sm:$0xff]
    %v146 = vld [vmem:[#allocation3 + $0x1c0] sm:$0xff]
    %v147 = vld [vmem:[#allocation3 + $0x1c8] sm:$0xff]
    %v148 = vld [vmem:[#allocation3 + $0x1d0] sm:$0xff]
    %v149 = vld [vmem:[#allocation3 + $0x1d8] sm:$0xff]
    %v150 = vld [vmem:[#allocation3 + $0x1e0] sm:$0xff]
    %v151 = vld [vmem:[#allocation3 + $0x1e8] sm:$0xff]
    %v152 = vld [vmem:[#allocation3 + $0x1f0] sm:$0xff]
    %v153 = vld [vmem:[#allocation3 + $0x1f8] sm:$0xff]
    %v154 = vld [vmem:[%s3] sm:$0xf]
    %v155 = vld [vmem:[%s0] sm:$0xff]
    %v156 = vld [vmem:[%s0 + $0x8] sm:$0xff]
    %v157 = vld [vmem:[%s0 + $0x10] sm:$0xff]
    %v158 = vld [vmem:[%s0 + $0x18] sm:$0xff]
    %v159 = vld [vmem:[%s0 + $0x20] sm:$0xff]
    %v160 = vld [vmem:[%s0 + $0x28] sm:$0xff]
    %v161 = vld [vmem:[%s0 + $0x30] sm:$0xff]
    %v162 = vld [vmem:[%s0 + $0x38] sm:$0xff]
    %v164 = vlaneseq
    %v165 = vshrl.u32 %v164, 7
    %v166 = vsub.s32 0, %v165
    %v167 = vrot.slane %v154, %v166
    %v168 = vlaneseq
    %v169 = vshrl.u32 %v168, 7
    %v170 = vsub.s32 1, %v169
    %v171 = vrot.slane %v154, %v170
    %v172 = vlaneseq
    %v173 = vshrl.u32 %v172, 7
    %v174 = vsub.s32 2, %v173
    %v175 = vrot.slane %v154, %v174
    %v176 = vlaneseq
    %v177 = vshrl.u32 %v176, 7
    %v178 = vsub.s32 3, %v177
    %v179 = vrot.slane %v154, %v178
    %v186 = vcombine.high %v88, %v88
    %v187 = vcombine.high %v89, %v89
    %vm188 = vcmask 31744
    %v190 = vsel %vm188, %v155, 0
    %v193 = vsel %vm188, %v156, 0
    %v196 = vsel %vm188, %v157, 0
    %v199 = vsel %vm188, %v158, 0
    %v202 = vsel %vm188, %v159, 0
    %v205 = vsel %vm188, %v160, 0
    %v208 = vsel %vm188, %v161, 0
    %v211 = vsel %vm188, %v162, 0
    %vm213 = vcmask 1043456
    %v214 = vsel %vm213, %v88, 0
    %v216 = vsel %vm213, %v186, 0
    %v218 = vsel %vm213, %v89, 0
    %v220 = vsel %vm213, %v187, 0
    %222 = vmatprep.subr.mxu0 0.0
    %223 = vmatpush1.msra.mxu0 0.0
    %224 = vmatprep.subr.mxu0 0.0
    %225 = vmatpush1.msra.mxu0 0.0
    %226 = vmatprep.subr.mxu0 0.0
    %227 = vmatpush1.msra.mxu0 0.0
    %228 = vmatprep.subr.mxu0 0.0
    %229 = vmatpush1.msra.mxu0 0.0
    %230 = vmatprep.subr.mxu0 0.0
    %231 = vmatpush1.msra.mxu0 0.0
    %232 = vmatprep.subr.mxu0 0.0
    %233 = vmatpush1.msra.mxu0 0.0
    %234 = vmatprep.subr.mxu0 0.0
    %235 = vmatpush1.msra.mxu0 0.0
    %236 = vmatprep.subr.mxu0 0.0
    %237 = vmatpush1.msra.mxu0 0.0
    %238 = vmatprep.subr.mxu0 0.0
    %239 = vmatpush1.msra.mxu0 0.0
    %240 = vmatprep.subr.mxu0 0.0
    %241 = vmatpush1.msra.mxu0 0.0
    %242 = vmatprep.subr.mxu0 0.0
    %243 = vmatpush1.msra.mxu0 0.0
    %244 = vmatprep.subr.mxu0 0.0
    %245 = vmatpush1.msra.mxu0 0.0
    %246 = vmatprep.subr.mxu0 0.0
    %247 = vmatpush1.msra.mxu0 0.0
    %248 = vmatprep.subr.mxu0 0.0
    %249 = vmatpush1.msra.mxu0 0.0
    %250 = vmatprep.subr.mxu0 0.0
    %251 = vmatpush1.msra.mxu0 0.0
    %252 = vmatprep.subr.mxu0 %v216
    %253 = vmatpush1.msra.mxu0 %v214
    %254 = vmatprep.subr.mxu0 0.0
    %255 = vmatpush2.msra.mxu0 0.0
    %256 = vmatprep.subr.mxu0 0.0
    %257 = vmatpush2.msra.mxu0 0.0
    %258 = vmatprep.subr.mxu0 0.0
    %259 = vmatpush2.msra.mxu0 0.0
    %260 = vmatprep.subr.mxu0 0.0
    %261 = vmatpush2.msra.mxu0 0.0
    %262 = vmatprep.subr.mxu0 0.0
    %263 = vmatpush2.msra.mxu0 0.0
    %264 = vmatprep.subr.mxu0 0.0
    %265 = vmatpush2.msra.mxu0 0.0
    %266 = vmatprep.subr.mxu0 0.0
    %267 = vmatpush2.msra.mxu0 0.0
    %268 = vmatprep.subr.mxu0 0.0
    %269 = vmatpush2.msra.mxu0 0.0
    %270 = vmatprep.subr.mxu0 0.0
    %271 = vmatpush2.msra.mxu0 0.0
    %272 = vmatprep.subr.mxu0 0.0
    %273 = vmatpush2.msra.mxu0 0.0
    %274 = vmatprep.subr.mxu0 0.0
    %275 = vmatpush2.msra.mxu0 0.0
    %276 = vmatprep.subr.mxu0 0.0
    %277 = vmatpush2.msra.mxu0 0.0
    %278 = vmatprep.subr.mxu0 0.0
    %279 = vmatpush2.msra.mxu0 0.0
    %280 = vmatprep.subr.mxu0 0.0
    %281 = vmatpush2.msra.mxu0 0.0
    %282 = vmatprep.subr.mxu0 0.0
    %283 = vmatpush2.msra.mxu0 0.0
    %284 = vmatprep.subr.mxu0 0.0
    %285 = vmatpush2.msra.mxu0 0.0
    %286 = vmatprep.mubr.f32.mxu0 0.0
    %287 = vmatmul.mubr.f32.gmra.mxu0 %v190
    %v288 = vpop.f32.mrf.mxu0
    %v289 = vadd.f32 %v167, %v288
    %v290 = vpop.f32.mrf.mxu0
    %v291 = vadd.f32 %v171, %v290
    %292 = vmatprep.mubr.f32.mxu0 0.0
    %293 = vmatmul.mubr.f32.gmra.mxu0 %v193
    %v294 = vpop.f32.mrf.mxu0
    %v295 = vadd.f32 %v167, %v294
    %v296 = vpop.f32.mrf.mxu0
    %v297 = vadd.f32 %v171, %v296
    %298 = vmatprep.mubr.f32.mxu0 0.0
    %299 = vmatmul.mubr.f32.gmra.mxu0 %v196
    %v300 = vpop.f32.mrf.mxu0
    %v301 = vadd.f32 %v167, %v300
    %v302 = vpop.f32.mrf.mxu0
    %v303 = vadd.f32 %v171, %v302
    %304 = vmatprep.mubr.f32.mxu0 0.0
    %305 = vmatmul.mubr.f32.gmra.mxu0 %v199
    %v306 = vpop.f32.mrf.mxu0
    %v307 = vadd.f32 %v167, %v306
    %v308 = vpop.f32.mrf.mxu0
    %v309 = vadd.f32 %v171, %v308
    %310 = vmatprep.mubr.f32.mxu0 0.0
    %311 = vmatmul.mubr.f32.gmra.mxu0 %v202
    %v312 = vpop.f32.mrf.mxu0
    %v313 = vadd.f32 %v167, %v312
    %v314 = vpop.f32.mrf.mxu0
    %v315 = vadd.f32 %v171, %v314
    %316 = vmatprep.mubr.f32.mxu0 0.0
    %317 = vmatmul.mubr.f32.gmra.mxu0 %v205
    %v318 = vpop.f32.mrf.mxu0
    %v319 = vadd.f32 %v167, %v318
    %v320 = vpop.f32.mrf.mxu0
    %v321 = vadd.f32 %v171, %v320
    %322 = vmatprep.mubr.f32.mxu0 0.0
    %323 = vmatmul.mubr.f32.gmra.mxu0 %v208
    %v324 = vpop.f32.mrf.mxu0
    %v325 = vadd.f32 %v167, %v324
    %v326 = vpop.f32.mrf.mxu0
    %v327 = vadd.f32 %v171, %v326
    %328 = vmatprep.mubr.f32.mxu0 0.0
    %329 = vmatmul.mubr.f32.gmra.mxu0 %v211
    %v330 = vpop.f32.mrf.mxu0
    %v331 = vadd.f32 %v167, %v330
    %v332 = vpop.f32.mrf.mxu0
    %v333 = vadd.f32 %v171, %v332
    %334 = vdwg.mxu0
    %335 = vmatprep.subr.mxu0 0.0
    %336 = vmatpush1.msra.mxu0 0.0
    %337 = vmatprep.subr.mxu0 0.0
    %338 = vmatpush1.msra.mxu0 0.0
    %339 = vmatprep.subr.mxu0 0.0
    %340 = vmatpush1.msra.mxu0 0.0
    %341 = vmatprep.subr.mxu0 0.0
    %342 = vmatpush1.msra.mxu0 0.0
    %343 = vmatprep.subr.mxu0 0.0
    %344 = vmatpush1.msra.mxu0 0.0
    %345 = vmatprep.subr.mxu0 0.0
    %346 = vmatpush1.msra.mxu0 0.0
    %347 = vmatprep.subr.mxu0 0.0
    %348 = vmatpush1.msra.mxu0 0.0
    %349 = vmatprep.subr.mxu0 0.0
    %350 = vmatpush1.msra.mxu0 0.0
    %351 = vmatprep.subr.mxu0 0.0
    %352 = vmatpush1.msra.mxu0 0.0
    %353 = vmatprep.subr.mxu0 0.0
    %354 = vmatpush1.msra.mxu0 0.0
    %355 = vmatprep.subr.mxu0 0.0
    %356 = vmatpush1.msra.mxu0 0.0
    %357 = vmatprep.subr.mxu0 0.0
    %358 = vmatpush1.msra.mxu0 0.0
    %359 = vmatprep.subr.mxu0 0.0
    %360 = vmatpush1.msra.mxu0 0.0
    %361 = vmatprep.subr.mxu0 0.0
    %362 = vmatpush1.msra.mxu0 0.0
    %363 = vmatprep.subr.mxu0 0.0
    %364 = vmatpush1.msra.mxu0 0.0
    %365 = vmatprep.subr.mxu0 %v220
    %366 = vmatpush1.msra.mxu0 %v218
    %367 = vmatprep.subr.mxu0 0.0
    %368 = vmatpush2.msra.mxu0 0.0
    %369 = vmatprep.subr.mxu0 0.0
    %370 = vmatpush2.msra.mxu0 0.0
    %371 = vmatprep.subr.mxu0 0.0
    %372 = vmatpush2.msra.mxu0 0.0
    %373 = vmatprep.subr.mxu0 0.0
    %374 = vmatpush2.msra.mxu0 0.0
    %375 = vmatprep.subr.mxu0 0.0
    %376 = vmatpush2.msra.mxu0 0.0
    %377 = vmatprep.subr.mxu0 0.0
    %378 = vmatpush2.msra.mxu0 0.0
    %379 = vmatprep.subr.mxu0 0.0
    %380 = vmatpush2.msra.mxu0 0.0
    %381 = vmatprep.subr.mxu0 0.0
    %382 = vmatpush2.msra.mxu0 0.0
    %383 = vmatprep.subr.mxu0 0.0
    %384 = vmatpush2.msra.mxu0 0.0
    %385 = vmatprep.subr.mxu0 0.0
    %386 = vmatpush2.msra.mxu0 0.0
    %387 = vmatprep.subr.mxu0 0.0
    %388 = vmatpush2.msra.mxu0 0.0
    %389 = vmatprep.subr.mxu0 0.0
    %390 = vmatpush2.msra.mxu0 0.0
    %391 = vmatprep.subr.mxu0 0.0
    %392 = vmatpush2.msra.mxu0 0.0
    %393 = vmatprep.subr.mxu0 0.0
    %394 = vmatpush2.msra.mxu0 0.0
    %395 = vmatprep.subr.mxu0 0.0
    %396 = vmatpush2.msra.mxu0 0.0
    %397 = vmatprep.subr.mxu0 0.0
    %398 = vmatpush2.msra.mxu0 0.0
    %399 = vmatprep.mubr.f32.mxu0 0.0
    %400 = vmatmul.mubr.f32.gmra.mxu0 %v190
    %v401 = vpop.f32.mrf.mxu0
    %v402 = vadd.f32 %v175, %v401
    %v403 = vpop.f32.mrf.mxu0
    %v404 = vadd.f32 %v179, %v403
    %405 = vmatprep.mubr.f32.mxu0 0.0
    %406 = vmatmul.mubr.f32.gmra.mxu0 %v193
    %v407 = vpop.f32.mrf.mxu0
    %v408 = vadd.f32 %v175, %v407
    %v409 = vpop.f32.mrf.mxu0
    %v410 = vadd.f32 %v179, %v409
    %411 = vmatprep.mubr.f32.mxu0 0.0
    %412 = vmatmul.mubr.f32.gmra.mxu0 %v196
    %v413 = vpop.f32.mrf.mxu0
    %v414 = vadd.f32 %v175, %v413
    %v415 = vpop.f32.mrf.mxu0
    %v416 = vadd.f32 %v179, %v415
    %417 = vmatprep.mubr.f32.mxu0 0.0
    %418 = vmatmul.mubr.f32.gmra.mxu0 %v199
    %v419 = vpop.f32.mrf.mxu0
    %v420 = vadd.f32 %v175, %v419
    %v421 = vpop.f32.mrf.mxu0
    %v422 = vadd.f32 %v179, %v421
    %423 = vmatprep.mubr.f32.mxu0 0.0
    %424 = vmatmul.mubr.f32.gmra.mxu0 %v202
    %v425 = vpop.f32.mrf.mxu0
    %v426 = vadd.f32 %v175, %v425
    %v427 = vpop.f32.mrf.mxu0
    %v428 = vadd.f32 %v179, %v427
    %429 = vmatprep.mubr.f32.mxu0 0.0
    %430 = vmatmul.mubr.f32.gmra.mxu0 %v205
    %v431 = vpop.f32.mrf.mxu0
    %v432 = vadd.f32 %v175, %v431
    %v433 = vpop.f32.mrf.mxu0
    %v434 = vadd.f32 %v179, %v433
    %435 = vmatprep.mubr.f32.mxu0 0.0
    %436 = vmatmul.mubr.f32.gmra.mxu0 %v208
    %v437 = vpop.f32.mrf.mxu0
    %v438 = vadd.f32 %v175, %v437
    %v439 = vpop.f32.mrf.mxu0
    %v440 = vadd.f32 %v179, %v439
    %441 = vmatprep.mubr.f32.mxu0 0.0
    %442 = vmatmul.mubr.f32.gmra.mxu0 %v211
    %v443 = vpop.f32.mrf.mxu0
    %v444 = vadd.f32 %v175, %v443
    %v445 = vpop.f32.mrf.mxu0
    %v446 = vadd.f32 %v179, %v445
    %447 = vdwg.mxu0
    %448 = vmatprep.subr.mxu0 %v151
    %449 = vmatpush1.msra.mxu0 %v150
    %450 = vmatprep.subr.mxu0 %v147
    %451 = vmatpush1.msra.mxu0 %v146
    %452 = vmatprep.subr.mxu0 %v143
    %453 = vmatpush1.msra.mxu0 %v142
    %454 = vmatprep.subr.mxu0 %v139
    %455 = vmatpush1.msra.mxu0 %v138
    %456 = vmatprep.subr.mxu0 %v135
    %457 = vmatpush1.msra.mxu0 %v134
    %458 = vmatprep.subr.mxu0 %v131
    %459 = vmatpush1.msra.mxu0 %v130
    %460 = vmatprep.subr.mxu0 %v127
    %461 = vmatpush1.msra.mxu0 %v126
    %462 = vmatprep.subr.mxu0 %v123
    %463 = vmatpush1.msra.mxu0 %v122
    %464 = vmatprep.subr.mxu0 %v119
    %465 = vmatpush1.msra.mxu0 %v118
    %466 = vmatprep.subr.mxu0 %v115
    %467 = vmatpush1.msra.mxu0 %v114
    %468 = vmatprep.subr.mxu0 %v111
    %469 = vmatpush1.msra.mxu0 %v110
    %470 = vmatprep.subr.mxu0 %v107
    %471 = vmatpush1.msra.mxu0 %v106
    %472 = vmatprep.subr.mxu0 %v103
    %473 = vmatpush1.msra.mxu0 %v102
    %474 = vmatprep.subr.mxu0 %v99
    %475 = vmatpush1.msra.mxu0 %v98
    %476 = vmatprep.subr.mxu0 %v95
    %477 = vmatpush1.msra.mxu0 %v94
    %478 = vmatprep.subr.mxu0 %v91
    %479 = vmatpush1.msra.mxu0 %v90
    %480 = vmatprep.subr.mxu0 0.0
    %481 = vmatpush2.msra.mxu0 0.0
    %482 = vmatprep.subr.mxu0 0.0
    %483 = vmatpush2.msra.mxu0 0.0
    %484 = vmatprep.subr.mxu0 0.0
    %485 = vmatpush2.msra.mxu0 0.0
    %486 = vmatprep.subr.mxu0 0.0
    %487 = vmatpush2.msra.mxu0 0.0
    %488 = vmatprep.subr.mxu0 0.0
    %489 = vmatpush2.msra.mxu0 0.0
    %490 = vmatprep.subr.mxu0 0.0
    %491 = vmatpush2.msra.mxu0 0.0
    %492 = vmatprep.subr.mxu0 0.0
    %493 = vmatpush2.msra.mxu0 0.0
    %494 = vmatprep.subr.mxu0 0.0
    %495 = vmatpush2.msra.mxu0 0.0
    %496 = vmatprep.subr.mxu0 0.0
    %497 = vmatpush2.msra.mxu0 0.0
    %498 = vmatprep.subr.mxu0 0.0
    %499 = vmatpush2.msra.mxu0 0.0
    %500 = vmatprep.subr.mxu0 0.0
    %501 = vmatpush2.msra.mxu0 0.0
    %502 = vmatprep.subr.mxu0 0.0
    %503 = vmatpush2.msra.mxu0 0.0
    %504 = vmatprep.subr.mxu0 0.0
    %505 = vmatpush2.msra.mxu0 0.0
    %506 = vmatprep.subr.mxu0 0.0
    %507 = vmatpush2.msra.mxu0 0.0
    %508 = vmatprep.subr.mxu0 0.0
    %509 = vmatpush2.msra.mxu0 0.0
    %510 = vmatprep.subr.mxu0 0.0
    %511 = vmatpush2.msra.mxu0 0.0
    %512 = vmatprep.mubr.f32.mxu0 0.0
    %513 = vmatmul.mubr.f32.gmra.mxu0 0.0
    %v514 = vpop.f32.mrf.mxu0
    %v515 = vadd.f32 0.0, %v514
    %v516 = vpop.f32.mrf.mxu0
    %v517 = vadd.f32 0.0, %v516
    %518 = vdwg.mxu0
    %519 = vmatprep.subr.mxu0 %v153
    %520 = vmatpush1.msra.mxu0 %v152
    %521 = vmatprep.subr.mxu0 %v149
    %522 = vmatpush1.msra.mxu0 %v148
    %523 = vmatprep.subr.mxu0 %v145
    %524 = vmatpush1.msra.mxu0 %v144
    %525 = vmatprep.subr.mxu0 %v141
    %526 = vmatpush1.msra.mxu0 %v140
    %527 = vmatprep.subr.mxu0 %v137
    %528 = vmatpush1.msra.mxu0 %v136
    %529 = vmatprep.subr.mxu0 %v133
    %530 = vmatpush1.msra.mxu0 %v132
    %531 = vmatprep.subr.mxu0 %v129
    %532 = vmatpush1.msra.mxu0 %v128
    %533 = vmatprep.subr.mxu0 %v125
    %534 = vmatpush1.msra.mxu0 %v124
    %535 = vmatprep.subr.mxu0 %v121
    %536 = vmatpush1.msra.mxu0 %v120
    %537 = vmatprep.subr.mxu0 %v117
    %538 = vmatpush1.msra.mxu0 %v116
    %539 = vmatprep.subr.mxu0 %v113
    %540 = vmatpush1.msra.mxu0 %v112
    %541 = vmatprep.subr.mxu0 %v109
    %542 = vmatpush1.msra.mxu0 %v108
    %543 = vmatprep.subr.mxu0 %v105
    %544 = vmatpush1.msra.mxu0 %v104
    %545 = vmatprep.subr.mxu0 %v101
    %546 = vmatpush1.msra.mxu0 %v100
    %547 = vmatprep.subr.mxu0 %v97
    %548 = vmatpush1.msra.mxu0 %v96
    %549 = vmatprep.subr.mxu0 %v93
    %550 = vmatpush1.msra.mxu0 %v92
    %551 = vmatprep.subr.mxu0 0.0
    %552 = vmatpush2.msra.mxu0 0.0
    %553 = vmatprep.subr.mxu0 0.0
    %554 = vmatpush2.msra.mxu0 0.0
    %555 = vmatprep.subr.mxu0 0.0
    %556 = vmatpush2.msra.mxu0 0.0
    %557 = vmatprep.subr.mxu0 0.0
    %558 = vmatpush2.msra.mxu0 0.0
    %559 = vmatprep.subr.mxu0 0.0
    %560 = vmatpush2.msra.mxu0 0.0
    %561 = vmatprep.subr.mxu0 0.0
    %562 = vmatpush2.msra.mxu0 0.0
    %563 = vmatprep.subr.mxu0 0.0
    %564 = vmatpush2.msra.mxu0 0.0
    %565 = vmatprep.subr.mxu0 0.0
    %566 = vmatpush2.msra.mxu0 0.0
    %567 = vmatprep.subr.mxu0 0.0
    %568 = vmatpush2.msra.mxu0 0.0
    %569 = vmatprep.subr.mxu0 0.0
    %570 = vmatpush2.msra.mxu0 0.0
    %571 = vmatprep.subr.mxu0 0.0
    %572 = vmatpush2.msra.mxu0 0.0
    %573 = vmatprep.subr.mxu0 0.0
    %574 = vmatpush2.msra.mxu0 0.0
    %575 = vmatprep.subr.mxu0 0.0
    %576 = vmatpush2.msra.mxu0 0.0
    %577 = vmatprep.subr.mxu0 0.0
    %578 = vmatpush2.msra.mxu0 0.0
    %579 = vmatprep.subr.mxu0 0.0
    %580 = vmatpush2.msra.mxu0 0.0
    %581 = vmatprep.subr.mxu0 0.0
    %582 = vmatpush2.msra.mxu0 0.0
    %583 = vmatprep.mubr.f32.mxu0 0.0
    %584 = vmatmul.mubr.f32.gmra.mxu0 0.0
    %v585 = vpop.f32.mrf.mxu0
    %v586 = vadd.f32 0.0, %v585
    %v587 = vpop.f32.mrf.mxu0
    %v588 = vadd.f32 0.0, %v587
    %589 = vdwg.mxu0
    %v590 = vadd.f32 %v289, %v515
    %v591 = vadd.f32 %v291, %v517
    %v592 = vadd.f32 %v402, %v586
    %v593 = vadd.f32 %v404, %v588
    %v594 = vxor.u32 %v590, 2147483648
    %v595 = vxor.u32 %v591, 2147483648
    %v596 = vxor.u32 %v592, 2147483648
    %v597 = vmul.f32 %v594, 1.442695
    %v598 = vpow.pop %v597
    %v599 = vmul.f32 %v595, 1.442695
    %v600 = vpow.pop %v599
    %v601 = vmul.f32 %v596, 1.442695
    %v602 = vpow.pop %v601
    %v603 = vadd.f32 %v598, 1.0
    %v604 = vadd.f32 %v600, 1.0
    %v605 = vadd.f32 %v602, 1.0
    %v606 = vrcp.pop %v603
    %v607 = vmul.f32 1.0, %v606
    %v608 = vrcp.pop %v604
    %v609 = vmul.f32 1.0, %v608
    %v610 = vrcp.pop %v605
    %v611 = vmul.f32 1.0, %v610
    %v612 = vtanh.pop %v593
    %v613 = vmul.f32 %v609, 0.0
    %v614 = vmul.f32 %v607, %v612
    %v615 = vadd.f32 %v613, %v614
    %v616 = vtanh.pop %v615
    %v617 = vmul.f32 %v611, %v616
    %618 = vst [vmem:[#allocation2] sm:$0xff] %v617
    %619 = vmatprep.subr.mxu0 %v151
    %620 = vmatpush1.msra.mxu0 %v150
    %621 = vmatprep.subr.mxu0 %v147
    %622 = vmatpush1.msra.mxu0 %v146
    %623 = vmatprep.subr.mxu0 %v143
    %624 = vmatpush1.msra.mxu0 %v142
    %625 = vmatprep.subr.mxu0 %v139
    %626 = vmatpush1.msra.mxu0 %v138
    %627 = vmatprep.subr.mxu0 %v135
    %628 = vmatpush1.msra.mxu0 %v134
    %629 = vmatprep.subr.mxu0 %v131
    %630 = vmatpush1.msra.mxu0 %v130
    %631 = vmatprep.subr.mxu0 %v127
    %632 = vmatpush1.msra.mxu0 %v126
    %633 = vmatprep.subr.mxu0 %v123
    %634 = vmatpush1.msra.mxu0 %v122
    %635 = vmatprep.subr.mxu0 %v119
    %636 = vmatpush1.msra.mxu0 %v118
    %637 = vmatprep.subr.mxu0 %v115
    %638 = vmatpush1.msra.mxu0 %v114
    %639 = vmatprep.subr.mxu0 %v111
    %640 = vmatpush1.msra.mxu0 %v110
    %641 = vmatprep.subr.mxu0 %v107
    %642 = vmatpush1.msra.mxu0 %v106
    %643 = vmatprep.subr.mxu0 %v103
    %644 = vmatpush1.msra.mxu0 %v102
    %645 = vmatprep.subr.mxu0 %v99
    %646 = vmatpush1.msra.mxu0 %v98
    %647 = vmatprep.subr.mxu0 %v95
    %648 = vmatpush1.msra.mxu0 %v94
    %649 = vmatprep.subr.mxu0 %v91
    %650 = vmatpush1.msra.mxu0 %v90
    %651 = vmatprep.subr.mxu0 0.0
    %652 = vmatpush2.msra.mxu0 0.0
    %653 = vmatprep.subr.mxu0 0.0
    %654 = vmatpush2.msra.mxu0 0.0
    %655 = vmatprep.subr.mxu0 0.0
    %656 = vmatpush2.msra.mxu0 0.0
    %657 = vmatprep.subr.mxu0 0.0
    %658 = vmatpush2.msra.mxu0 0.0
    %659 = vmatprep.subr.mxu0 0.0
    %660 = vmatpush2.msra.mxu0 0.0
    %661 = vmatprep.subr.mxu0 0.0
    %662 = vmatpush2.msra.mxu0 0.0
    %663 = vmatprep.subr.mxu0 0.0
    %664 = vmatpush2.msra.mxu0 0.0
    %665 = vmatprep.subr.mxu0 0.0
    %666 = vmatpush2.msra.mxu0 0.0
    %667 = vmatprep.subr.mxu0 0.0
    %668 = vmatpush2.msra.mxu0 0.0
    %669 = vmatprep.subr.mxu0 0.0
    %670 = vmatpush2.msra.mxu0 0.0
    %671 = vmatprep.subr.mxu0 0.0
    %672 = vmatpush2.msra.mxu0 0.0
    %673 = vmatprep.subr.mxu0 0.0
    %674 = vmatpush2.msra.mxu0 0.0
    %675 = vmatprep.subr.mxu0 0.0
    %676 = vmatpush2.msra.mxu0 0.0
    %677 = vmatprep.subr.mxu0 0.0
    %678 = vmatpush2.msra.mxu0 0.0
    %679 = vmatprep.subr.mxu0 0.0
    %680 = vmatpush2.msra.mxu0 0.0
    %681 = vmatprep.subr.mxu0 0.0
    %682 = vmatpush2.msra.mxu0 0.0
    %683 = vmatprep.mubr.f32.mxu0 0.0
    %684 = vmatmul.mubr.f32.gmra.mxu0 %v617
    %v685 = vpop.f32.mrf.mxu0
    %v686 = vadd.f32 0.0, %v685
    %v687 = vpop.f32.mrf.mxu0
    %v688 = vadd.f32 0.0, %v687
    %689 = vdwg.mxu0
    %690 = vmatprep.subr.mxu0 %v153
    %691 = vmatpush1.msra.mxu0 %v152
    %692 = vmatprep.subr.mxu0 %v149
    %693 = vmatpush1.msra.mxu0 %v148
    %694 = vmatprep.subr.mxu0 %v145
    %695 = vmatpush1.msra.mxu0 %v144
    %696 = vmatprep.subr.mxu0 %v141
    %697 = vmatpush1.msra.mxu0 %v140
    %698 = vmatprep.subr.mxu0 %v137
    %699 = vmatpush1.msra.mxu0 %v136
    %700 = vmatprep.subr.mxu0 %v133
    %701 = vmatpush1.msra.mxu0 %v132
    %702 = vmatprep.subr.mxu0 %v129
    %703 = vmatpush1.msra.mxu0 %v128
    %704 = vmatprep.subr.mxu0 %v125
    %705 = vmatpush1.msra.mxu0 %v124
    %706 = vmatprep.subr.mxu0 %v121
    %707 = vmatpush1.msra.mxu0 %v120
    %708 = vmatprep.subr.mxu0 %v117
    %709 = vmatpush1.msra.mxu0 %v116
    %710 = vmatprep.subr.mxu0 %v113
    %711 = vmatpush1.msra.mxu0 %v112
    %712 = vmatprep.subr.mxu0 %v109
    %713 = vmatpush1.msra.mxu0 %v108
    %714 = vmatprep.subr.mxu0 %v105
    %715 = vmatpush1.msra.mxu0 %v104
    %716 = vmatprep.subr.mxu0 %v101
    %717 = vmatpush1.msra.mxu0 %v100
    %718 = vmatprep.subr.mxu0 %v97
    %719 = vmatpush1.msra.mxu0 %v96
    %720 = vmatprep.subr.mxu0 %v93
    %721 = vmatpush1.msra.mxu0 %v92
    %722 = vmatprep.subr.mxu0 0.0
    %723 = vmatpush2.msra.mxu0 0.0
    %724 = vmatprep.subr.mxu0 0.0
    %725 = vmatpush2.msra.mxu0 0.0
    %726 = vmatprep.subr.mxu0 0.0
    %727 = vmatpush2.msra.mxu0 0.0
    %728 = vmatprep.subr.mxu0 0.0
    %729 = vmatpush2.msra.mxu0 0.0
    %730 = vmatprep.subr.mxu0 0.0
    %731 = vmatpush2.msra.mxu0 0.0
    %732 = vmatprep.subr.mxu0 0.0
    %733 = vmatpush2.msra.mxu0 0.0
    %734 = vmatprep.subr.mxu0 0.0
    %735 = vmatpush2.msra.mxu0 0.0
    %736 = vmatprep.subr.mxu0 0.0
    %737 = vmatpush2.msra.mxu0 0.0
    %738 = vmatprep.subr.mxu0 0.0
    %739 = vmatpush2.msra.mxu0 0.0
    %740 = vmatprep.subr.mxu0 0.0
    %741 = vmatpush2.msra.mxu0 0.0
    %742 = vmatprep.subr.mxu0 0.0
    %743 = vmatpush2.msra.mxu0 0.0
    %744 = vmatprep.subr.mxu0 0.0
    %745 = vmatpush2.msra.mxu0 0.0
    %746 = vmatprep.subr.mxu0 0.0
    %747 = vmatpush2.msra.mxu0 0.0
    %748 = vmatprep.subr.mxu0 0.0
    %749 = vmatpush2.msra.mxu0 0.0
    %750 = vmatprep.subr.mxu0 0.0
    %751 = vmatpush2.msra.mxu0 0.0
    %752 = vmatprep.subr.mxu0 0.0
    %753 = vmatpush2.msra.mxu0 0.0
    %754 = vmatprep.mubr.f32.mxu0 0.0
    %755 = vmatmul.mubr.f32.gmra.mxu0 %v617
    %v756 = vpop.f32.mrf.mxu0
    %v757 = vadd.f32 0.0, %v756
    %v758 = vpop.f32.mrf.mxu0
    %v759 = vadd.f32 0.0, %v758
    %760 = vdwg.mxu0
    %v761 = vadd.f32 %v295, %v686
    %v762 = vadd.f32 %v297, %v688
    %v763 = vadd.f32 %v408, %v757
    %v764 = vadd.f32 %v410, %v759
    %v765 = vxor.u32 %v761, 2147483648
    %v766 = vxor.u32 %v762, 2147483648
    %v767 = vxor.u32 %v763, 2147483648
    %v768 = vmul.f32 %v765, 1.442695
    %v769 = vpow.pop %v768
    %v770 = vmul.f32 %v766, 1.442695
    %v771 = vpow.pop %v770
    %v772 = vmul.f32 %v767, 1.442695
    %v773 = vpow.pop %v772
    %v774 = vadd.f32 %v769, 1.0
    %v775 = vadd.f32 %v771, 1.0
    %v776 = vadd.f32 %v773, 1.0
    %v777 = vrcp.pop %v774
    %v778 = vmul.f32 1.0, %v777
    %v779 = vrcp.pop %v775
    %v780 = vmul.f32 1.0, %v779
    %v781 = vrcp.pop %v776
    %v782 = vmul.f32 1.0, %v781
    %v783 = vtanh.pop %v764
    %v784 = vmul.f32 %v780, %v615
    %v785 = vmul.f32 %v778, %v783
    %v786 = vadd.f32 %v784, %v785
    %v787 = vtanh.pop %v786
    %v788 = vmul.f32 %v782, %v787
    %789 = vst [vmem:[#allocation2 + $0x8] sm:$0xff] %v788
    %790 = vmatprep.subr.mxu0 %v151
    %791 = vmatpush1.msra.mxu0 %v150
    %792 = vmatprep.subr.mxu0 %v147
    %793 = vmatpush1.msra.mxu0 %v146
    %794 = vmatprep.subr.mxu0 %v143
    %795 = vmatpush1.msra.mxu0 %v142
    %796 = vmatprep.subr.mxu0 %v139
    %797 = vmatpush1.msra.mxu0 %v138
    %798 = vmatprep.subr.mxu0 %v135
    %799 = vmatpush1.msra.mxu0 %v134
    %800 = vmatprep.subr.mxu0 %v131
    %801 = vmatpush1.msra.mxu0 %v130
    %802 = vmatprep.subr.mxu0 %v127
    %803 = vmatpush1.msra.mxu0 %v126
    %804 = vmatprep.subr.mxu0 %v123
    %805 = vmatpush1.msra.mxu0 %v122
    %806 = vmatprep.subr.mxu0 %v119
    %807 = vmatpush1.msra.mxu0 %v118
    %808 = vmatprep.subr.mxu0 %v115
    %809 = vmatpush1.msra.mxu0 %v114
    %810 = vmatprep.subr.mxu0 %v111
    %811 = vmatpush1.msra.mxu0 %v110
    %812 = vmatprep.subr.mxu0 %v107
    %813 = vmatpush1.msra.mxu0 %v106
    %814 = vmatprep.subr.mxu0 %v103
    %815 = vmatpush1.msra.mxu0 %v102
    %816 = vmatprep.subr.mxu0 %v99
    %817 = vmatpush1.msra.mxu0 %v98
    %818 = vmatprep.subr.mxu0 %v95
    %819 = vmatpush1.msra.mxu0 %v94
    %820 = vmatprep.subr.mxu0 %v91
    %821 = vmatpush1.msra.mxu0 %v90
    %822 = vmatprep.subr.mxu0 0.0
    %823 = vmatpush2.msra.mxu0 0.0
    %824 = vmatprep.subr.mxu0 0.0
    %825 = vmatpush2.msra.mxu0 0.0
    %826 = vmatprep.subr.mxu0 0.0
    %827 = vmatpush2.msra.mxu0 0.0
    %828 = vmatprep.subr.mxu0 0.0
    %829 = vmatpush2.msra.mxu0 0.0
    %830 = vmatprep.subr.mxu0 0.0
    %831 = vmatpush2.msra.mxu0 0.0
    %832 = vmatprep.subr.mxu0 0.0
    %833 = vmatpush2.msra.mxu0 0.0
    %834 = vmatprep.subr.mxu0 0.0
    %835 = vmatpush2.msra.mxu0 0.0
    %836 = vmatprep.subr.mxu0 0.0
    %837 = vmatpush2.msra.mxu0 0.0
    %838 = vmatprep.subr.mxu0 0.0
    %839 = vmatpush2.msra.mxu0 0.0
    %840 = vmatprep.subr.mxu0 0.0
    %841 = vmatpush2.msra.mxu0 0.0
    %842 = vmatprep.subr.mxu0 0.0
    %843 = vmatpush2.msra.mxu0 0.0
    %844 = vmatprep.subr.mxu0 0.0
    %845 = vmatpush2.msra.mxu0 0.0
    %846 = vmatprep.subr.mxu0 0.0
    %847 = vmatpush2.msra.mxu0 0.0
    %848 = vmatprep.subr.mxu0 0.0
    %849 = vmatpush2.msra.mxu0 0.0
    %850 = vmatprep.subr.mxu0 0.0
    %851 = vmatpush2.msra.mxu0 0.0
    %852 = vmatprep.subr.mxu0 0.0
    %853 = vmatpush2.msra.mxu0 0.0
    %854 = vmatprep.mubr.f32.mxu0 0.0
    %855 = vmatmul.mubr.f32.gmra.mxu0 %v788
    %v856 = vpop.f32.mrf.mxu0
    %v857 = vadd.f32 0.0, %v856
    %v858 = vpop.f32.mrf.mxu0
    %v859 = vadd.f32 0.0, %v858
    %860 = vdwg.mxu0
    %861 = vmatprep.subr.mxu0 %v153
    %862 = vmatpush1.msra.mxu0 %v152
    %863 = vmatprep.subr.mxu0 %v149
    %864 = vmatpush1.msra.mxu0 %v148
    %865 = vmatprep.subr.mxu0 %v145
    %866 = vmatpush1.msra.mxu0 %v144
    %867 = vmatprep.subr.mxu0 %v141
    %868 = vmatpush1.msra.mxu0 %v140
    %869 = vmatprep.subr.mxu0 %v137
    %870 = vmatpush1.msra.mxu0 %v136
    %871 = vmatprep.subr.mxu0 %v133
    %872 = vmatpush1.msra.mxu0 %v132
    %873 = vmatprep.subr.mxu0 %v129
    %874 = vmatpush1.msra.mxu0 %v128
    %875 = vmatprep.subr.mxu0 %v125
    %876 = vmatpush1.msra.mxu0 %v124
    %877 = vmatprep.subr.mxu0 %v121
    %878 = vmatpush1.msra.mxu0 %v120
    %879 = vmatprep.subr.mxu0 %v117
    %880 = vmatpush1.msra.mxu0 %v116
    %881 = vmatprep.subr.mxu0 %v113
    %882 = vmatpush1.msra.mxu0 %v112
    %883 = vmatprep.subr.mxu0 %v109
    %884 = vmatpush1.msra.mxu0 %v108
    %885 = vmatprep.subr.mxu0 %v105
    %886 = vmatpush1.msra.mxu0 %v104
    %887 = vmatprep.subr.mxu0 %v101
    %888 = vmatpush1.msra.mxu0 %v100
    %889 = vmatprep.subr.mxu0 %v97
    %890 = vmatpush1.msra.mxu0 %v96
    %891 = vmatprep.subr.mxu0 %v93
    %892 = vmatpush1.msra.mxu0 %v92
    %893 = vmatprep.subr.mxu0 0.0
    %894 = vmatpush2.msra.mxu0 0.0
    %895 = vmatprep.subr.mxu0 0.0
    %896 = vmatpush2.msra.mxu0 0.0
    %897 = vmatprep.subr.mxu0 0.0
    %898 = vmatpush2.msra.mxu0 0.0
    %899 = vmatprep.subr.mxu0 0.0
    %900 = vmatpush2.msra.mxu0 0.0
    %901 = vmatprep.subr.mxu0 0.0
    %902 = vmatpush2.msra.mxu0 0.0
    %903 = vmatprep.subr.mxu0 0.0
    %904 = vmatpush2.msra.mxu0 0.0
    %905 = vmatprep.subr.mxu0 0.0
    %906 = vmatpush2.msra.mxu0 0.0
    %907 = vmatprep.subr.mxu0 0.0
    %908 = vmatpush2.msra.mxu0 0.0
    %909 = vmatprep.subr.mxu0 0.0
    %910 = vmatpush2.msra.mxu0 0.0
    %911 = vmatprep.subr.mxu0 0.0
    %912 = vmatpush2.msra.mxu0 0.0
    %913 = vmatprep.subr.mxu0 0.0
    %914 = vmatpush2.msra.mxu0 0.0
    %915 = vmatprep.subr.mxu0 0.0
    %916 = vmatpush2.msra.mxu0 0.0
    %917 = vmatprep.subr.mxu0 0.0
    %918 = vmatpush2.msra.mxu0 0.0
    %919 = vmatprep.subr.mxu0 0.0
    %920 = vmatpush2.msra.mxu0 0.0
    %921 = vmatprep.subr.mxu0 0.0
    %922 = vmatpush2.msra.mxu0 0.0
    %923 = vmatprep.subr.mxu0 0.0
    %924 = vmatpush2.msra.mxu0 0.0
    %925 = vmatprep.mubr.f32.mxu0 0.0
    %926 = vmatmul.mubr.f32.gmra.mxu0 %v788
    %v927 = vpop.f32.mrf.mxu0
    %v928 = vadd.f32 0.0, %v927
    %v929 = vpop.f32.mrf.mxu0
    %v930 = vadd.f32 0.0, %v929
    %931 = vdwg.mxu0
    %v932 = vadd.f32 %v301, %v857
    %v933 = vadd.f32 %v303, %v859
    %v934 = vadd.f32 %v414, %v928
    %v935 = vadd.f32 %v416, %v930
    %v936 = vxor.u32 %v932, 2147483648
    %v937 = vxor.u32 %v933, 2147483648
    %v938 = vxor.u32 %v934, 2147483648
    %v939 = vmul.f32 %v936, 1.442695
    %v940 = vpow.pop %v939
    %v941 = vmul.f32 %v937, 1.442695
    %v942 = vpow.pop %v941
    %v943 = vmul.f32 %v938, 1.442695
    %v944 = vpow.pop %v943
    %v945 = vadd.f32 %v940, 1.0
    %v946 = vadd.f32 %v942, 1.0
    %v947 = vadd.f32 %v944, 1.0
    %v948 = vrcp.pop %v945
    %v949 = vmul.f32 1.0, %v948
    %v950 = vrcp.pop %v946
    %v951 = vmul.f32 1.0, %v950
    %v952 = vrcp.pop %v947
    %v953 = vmul.f32 1.0, %v952
    %v954 = vtanh.pop %v935
    %v955 = vmul.f32 %v951, %v786
    %v956 = vmul.f32 %v949, %v954
    %v957 = vadd.f32 %v955, %v956
    %v958 = vtanh.pop %v957
    %v959 = vmul.f32 %v953, %v958
    %960 = vst [vmem:[#allocation2 + $0x10] sm:$0xff] %v959
    %961 = vmatprep.subr.mxu0 %v151
    %962 = vmatpush1.msra.mxu0 %v150
    %963 = vmatprep.subr.mxu0 %v147
    %964 = vmatpush1.msra.mxu0 %v146
    %965 = vmatprep.subr.mxu0 %v143
    %966 = vmatpush1.msra.mxu0 %v142
    %967 = vmatprep.subr.mxu0 %v139
    %968 = vmatpush1.msra.mxu0 %v138
    %969 = vmatprep.subr.mxu0 %v135
    %970 = vmatpush1.msra.mxu0 %v134
    %971 = vmatprep.subr.mxu0 %v131
    %972 = vmatpush1.msra.mxu0 %v130
    %973 = vmatprep.subr.mxu0 %v127
    %974 = vmatpush1.msra.mxu0 %v126
    %975 = vmatprep.subr.mxu0 %v123
    %976 = vmatpush1.msra.mxu0 %v122
    %977 = vmatprep.subr.mxu0 %v119
    %978 = vmatpush1.msra.mxu0 %v118
    %979 = vmatprep.subr.mxu0 %v115
    %980 = vmatpush1.msra.mxu0 %v114
    %981 = vmatprep.subr.mxu0 %v111
    %982 = vmatpush1.msra.mxu0 %v110
    %983 = vmatprep.subr.mxu0 %v107
    %984 = vmatpush1.msra.mxu0 %v106
    %985 = vmatprep.subr.mxu0 %v103
    %986 = vmatpush1.msra.mxu0 %v102
    %987 = vmatprep.subr.mxu0 %v99
    %988 = vmatpush1.msra.mxu0 %v98
    %989 = vmatprep.subr.mxu0 %v95
    %990 = vmatpush1.msra.mxu0 %v94
    %991 = vmatprep.subr.mxu0 %v91
    %992 = vmatpush1.msra.mxu0 %v90
    %993 = vmatprep.subr.mxu0 0.0
    %994 = vmatpush2.msra.mxu0 0.0
    %995 = vmatprep.subr.mxu0 0.0
    %996 = vmatpush2.msra.mxu0 0.0
    %997 = vmatprep.subr.mxu0 0.0
    %998 = vmatpush2.msra.mxu0 0.0
    %999 = vmatprep.subr.mxu0 0.0
    %1000 = vmatpush2.msra.mxu0 0.0
    %1001 = vmatprep.subr.mxu0 0.0
    %1002 = vmatpush2.msra.mxu0 0.0
    %1003 = vmatprep.subr.mxu0 0.0
    %1004 = vmatpush2.msra.mxu0 0.0
    %1005 = vmatprep.subr.mxu0 0.0
    %1006 = vmatpush2.msra.mxu0 0.0
    %1007 = vmatprep.subr.mxu0 0.0
    %1008 = vmatpush2.msra.mxu0 0.0
    %1009 = vmatprep.subr.mxu0 0.0
    %1010 = vmatpush2.msra.mxu0 0.0
    %1011 = vmatprep.subr.mxu0 0.0
    %1012 = vmatpush2.msra.mxu0 0.0
    %1013 = vmatprep.subr.mxu0 0.0
    %1014 = vmatpush2.msra.mxu0 0.0
    %1015 = vmatprep.subr.mxu0 0.0
    %1016 = vmatpush2.msra.mxu0 0.0
    %1017 = vmatprep.subr.mxu0 0.0
    %1018 = vmatpush2.msra.mxu0 0.0
    %1019 = vmatprep.subr.mxu0 0.0
    %1020 = vmatpush2.msra.mxu0 0.0
    %1021 = vmatprep.subr.mxu0 0.0
    %1022 = vmatpush2.msra.mxu0 0.0
    %1023 = vmatprep.subr.mxu0 0.0
    %1024 = vmatpush2.msra.mxu0 0.0
    %1025 = vmatprep.mubr.f32.mxu0 0.0
    %1026 = vmatmul.mubr.f32.gmra.mxu0 %v959
    %v1027 = vpop.f32.mrf.mxu0
    %v1028 = vadd.f32 0.0, %v1027
    %v1029 = vpop.f32.mrf.mxu0
    %v1030 = vadd.f32 0.0, %v1029
    %1031 = vdwg.mxu0
    %1032 = vmatprep.subr.mxu0 %v153
    %1033 = vmatpush1.msra.mxu0 %v152
    %1034 = vmatprep.subr.mxu0 %v149
    %1035 = vmatpush1.msra.mxu0 %v148
    %1036 = vmatprep.subr.mxu0 %v145
    %1037 = vmatpush1.msra.mxu0 %v144
    %1038 = vmatprep.subr.mxu0 %v141
    %1039 = vmatpush1.msra.mxu0 %v140
    %1040 = vmatprep.subr.mxu0 %v137
    %1041 = vmatpush1.msra.mxu0 %v136
    %1042 = vmatprep.subr.mxu0 %v133
    %1043 = vmatpush1.msra.mxu0 %v132
    %1044 = vmatprep.subr.mxu0 %v129
    %1045 = vmatpush1.msra.mxu0 %v128
    %1046 = vmatprep.subr.mxu0 %v125
    %1047 = vmatpush1.msra.mxu0 %v124
    %1048 = vmatprep.subr.mxu0 %v121
    %1049 = vmatpush1.msra.mxu0 %v120
    %1050 = vmatprep.subr.mxu0 %v117
    %1051 = vmatpush1.msra.mxu0 %v116
    %1052 = vmatprep.subr.mxu0 %v113
    %1053 = vmatpush1.msra.mxu0 %v112
    %1054 = vmatprep.subr.mxu0 %v109
    %1055 = vmatpush1.msra.mxu0 %v108
    %1056 = vmatprep.subr.mxu0 %v105
    %1057 = vmatpush1.msra.mxu0 %v104
    %1058 = vmatprep.subr.mxu0 %v101
    %1059 = vmatpush1.msra.mxu0 %v100
    %1060 = vmatprep.subr.mxu0 %v97
    %1061 = vmatpush1.msra.mxu0 %v96
    %1062 = vmatprep.subr.mxu0 %v93
    %1063 = vmatpush1.msra.mxu0 %v92
    %1064 = vmatprep.subr.mxu0 0.0
    %1065 = vmatpush2.msra.mxu0 0.0
    %1066 = vmatprep.subr.mxu0 0.0
    %1067 = vmatpush2.msra.mxu0 0.0
    %1068 = vmatprep.subr.mxu0 0.0
    %1069 = vmatpush2.msra.mxu0 0.0
    %1070 = vmatprep.subr.mxu0 0.0
    %1071 = vmatpush2.msra.mxu0 0.0
    %1072 = vmatprep.subr.mxu0 0.0
    %1073 = vmatpush2.msra.mxu0 0.0
    %1074 = vmatprep.subr.mxu0 0.0
    %1075 = vmatpush2.msra.mxu0 0.0
    %1076 = vmatprep.subr.mxu0 0.0
    %1077 = vmatpush2.msra.mxu0 0.0
    %1078 = vmatprep.subr.mxu0 0.0
    %1079 = vmatpush2.msra.mxu0 0.0
    %1080 = vmatprep.subr.mxu0 0.0
    %1081 = vmatpush2.msra.mxu0 0.0
    %1082 = vmatprep.subr.mxu0 0.0
    %1083 = vmatpush2.msra.mxu0 0.0
    %1084 = vmatprep.subr.mxu0 0.0
    %1085 = vmatpush2.msra.mxu0 0.0
    %1086 = vmatprep.subr.mxu0 0.0
    %1087 = vmatpush2.msra.mxu0 0.0
    %1088 = vmatprep.subr.mxu0 0.0
    %1089 = vmatpush2.msra.mxu0 0.0
    %1090 = vmatprep.subr.mxu0 0.0
    %1091 = vmatpush2.msra.mxu0 0.0
    %1092 = vmatprep.subr.mxu0 0.0
    %1093 = vmatpush2.msra.mxu0 0.0
    %1094 = vmatprep.subr.mxu0 0.0
    %1095 = vmatpush2.msra.mxu0 0.0
    %1096 = vmatprep.mubr.f32.mxu0 0.0
    %1097 = vmatmul.mubr.f32.gmra.mxu0 %v959
    %v1098 = vpop.f32.mrf.mxu0
    %v1099 = vadd.f32 0.0, %v1098
    %v1100 = vpop.f32.mrf.mxu0
    %v1101 = vadd.f32 0.0, %v1100
    %1102 = vdwg.mxu0
    %v1103 = vadd.f32 %v307, %v1028
    %v1104 = vadd.f32 %v309, %v1030
    %v1105 = vadd.f32 %v420, %v1099
    %v1106 = vadd.f32 %v422, %v1101
    %v1107 = vxor.u32 %v1103, 2147483648
    %v1108 = vxor.u32 %v1104, 2147483648
    %v1109 = vxor.u32 %v1105, 2147483648
    %v1110 = vmul.f32 %v1107, 1.442695
    %v1111 = vpow.pop %v1110
    %v1112 = vmul.f32 %v1108, 1.442695
    %v1113 = vpow.pop %v1112
    %v1114 = vmul.f32 %v1109, 1.442695
    %v1115 = vpow.pop %v1114
    %v1116 = vadd.f32 %v1111, 1.0
    %v1117 = vadd.f32 %v1113, 1.0
    %v1118 = vadd.f32 %v1115, 1.0
    %v1119 = vrcp.pop %v1116
    %v1120 = vmul.f32 1.0, %v1119
    %v1121 = vrcp.pop %v1117
    %v1122 = vmul.f32 1.0, %v1121
    %v1123 = vrcp.pop %v1118
    %v1124 = vmul.f32 1.0, %v1123
    %v1125 = vtanh.pop %v1106
    %v1126 = vmul.f32 %v1122, %v957
    %v1127 = vmul.f32 %v1120, %v1125
    %v1128 = vadd.f32 %v1126, %v1127
    %v1129 = vtanh.pop %v1128
    %v1130 = vmul.f32 %v1124, %v1129
    %1131 = vst [vmem:[#allocation2 + $0x18] sm:$0xff] %v1130
    %1132 = vmatprep.subr.mxu0 %v151
    %1133 = vmatpush1.msra.mxu0 %v150
    %1134 = vmatprep.subr.mxu0 %v147
    %1135 = vmatpush1.msra.mxu0 %v146
    %1136 = vmatprep.subr.mxu0 %v143
    %1137 = vmatpush1.msra.mxu0 %v142
    %1138 = vmatprep.subr.mxu0 %v139
    %1139 = vmatpush1.msra.mxu0 %v138
    %1140 = vmatprep.subr.mxu0 %v135
    %1141 = vmatpush1.msra.mxu0 %v134
    %1142 = vmatprep.subr.mxu0 %v131
    %1143 = vmatpush1.msra.mxu0 %v130
    %1144 = vmatprep.subr.mxu0 %v127
    %1145 = vmatpush1.msra.mxu0 %v126
    %1146 = vmatprep.subr.mxu0 %v123
    %1147 = vmatpush1.msra.mxu0 %v122
    %1148 = vmatprep.subr.mxu0 %v119
    %1149 = vmatpush1.msra.mxu0 %v118
    %1150 = vmatprep.subr.mxu0 %v115
    %1151 = vmatpush1.msra.mxu0 %v114
    %1152 = vmatprep.subr.mxu0 %v111
    %1153 = vmatpush1.msra.mxu0 %v110
    %1154 = vmatprep.subr.mxu0 %v107
    %1155 = vmatpush1.msra.mxu0 %v106
    %1156 = vmatprep.subr.mxu0 %v103
    %1157 = vmatpush1.msra.mxu0 %v102
    %1158 = vmatprep.subr.mxu0 %v99
    %1159 = vmatpush1.msra.mxu0 %v98
    %1160 = vmatprep.subr.mxu0 %v95
    %1161 = vmatpush1.msra.mxu0 %v94
    %1162 = vmatprep.subr.mxu0 %v91
    %1163 = vmatpush1.msra.mxu0 %v90
    %1164 = vmatprep.subr.mxu0 0.0
    %1165 = vmatpush2.msra.mxu0 0.0
    %1166 = vmatprep.subr.mxu0 0.0
    %1167 = vmatpush2.msra.mxu0 0.0
    %1168 = vmatprep.subr.mxu0 0.0
    %1169 = vmatpush2.msra.mxu0 0.0
    %1170 = vmatprep.subr.mxu0 0.0
    %1171 = vmatpush2.msra.mxu0 0.0
    %1172 = vmatprep.subr.mxu0 0.0
    %1173 = vmatpush2.msra.mxu0 0.0
    %1174 = vmatprep.subr.mxu0 0.0
    %1175 = vmatpush2.msra.mxu0 0.0
    %1176 = vmatprep.subr.mxu0 0.0
    %1177 = vmatpush2.msra.mxu0 0.0
    %1178 = vmatprep.subr.mxu0 0.0
    %1179 = vmatpush2.msra.mxu0 0.0
    %1180 = vmatprep.subr.mxu0 0.0
    %1181 = vmatpush2.msra.mxu0 0.0
    %1182 = vmatprep.subr.mxu0 0.0
    %1183 = vmatpush2.msra.mxu0 0.0
    %1184 = vmatprep.subr.mxu0 0.0
    %1185 = vmatpush2.msra.mxu0 0.0
    %1186 = vmatprep.subr.mxu0 0.0
    %1187 = vmatpush2.msra.mxu0 0.0
    %1188 = vmatprep.subr.mxu0 0.0
    %1189 = vmatpush2.msra.mxu0 0.0
    %1190 = vmatprep.subr.mxu0 0.0
    %1191 = vmatpush2.msra.mxu0 0.0
    %1192 = vmatprep.subr.mxu0 0.0
    %1193 = vmatpush2.msra.mxu0 0.0
    %1194 = vmatprep.subr.mxu0 0.0
    %1195 = vmatpush2.msra.mxu0 0.0
    %1196 = vmatprep.mubr.f32.mxu0 0.0
    %1197 = vmatmul.mubr.f32.gmra.mxu0 %v1130
    %v1198 = vpop.f32.mrf.mxu0
    %v1199 = vadd.f32 0.0, %v1198
    %v1200 = vpop.f32.mrf.mxu0
    %v1201 = vadd.f32 0.0, %v1200
    %1202 = vdwg.mxu0
    %1203 = vmatprep.subr.mxu0 %v153
    %1204 = vmatpush1.msra.mxu0 %v152
    %1205 = vmatprep.subr.mxu0 %v149
    %1206 = vmatpush1.msra.mxu0 %v148
    %1207 = vmatprep.subr.mxu0 %v145
    %1208 = vmatpush1.msra.mxu0 %v144
    %1209 = vmatprep.subr.mxu0 %v141
    %1210 = vmatpush1.msra.mxu0 %v140
    %1211 = vmatprep.subr.mxu0 %v137
    %1212 = vmatpush1.msra.mxu0 %v136
    %1213 = vmatprep.subr.mxu0 %v133
    %1214 = vmatpush1.msra.mxu0 %v132
    %1215 = vmatprep.subr.mxu0 %v129
    %1216 = vmatpush1.msra.mxu0 %v128
    %1217 = vmatprep.subr.mxu0 %v125
    %1218 = vmatpush1.msra.mxu0 %v124
    %1219 = vmatprep.subr.mxu0 %v121
    %1220 = vmatpush1.msra.mxu0 %v120
    %1221 = vmatprep.subr.mxu0 %v117
    %1222 = vmatpush1.msra.mxu0 %v116
    %1223 = vmatprep.subr.mxu0 %v113
    %1224 = vmatpush1.msra.mxu0 %v112
    %1225 = vmatprep.subr.mxu0 %v109
    %1226 = vmatpush1.msra.mxu0 %v108
    %1227 = vmatprep.subr.mxu0 %v105
    %1228 = vmatpush1.msra.mxu0 %v104
    %1229 = vmatprep.subr.mxu0 %v101
    %1230 = vmatpush1.msra.mxu0 %v100
    %1231 = vmatprep.subr.mxu0 %v97
    %1232 = vmatpush1.msra.mxu0 %v96
    %1233 = vmatprep.subr.mxu0 %v93
    %1234 = vmatpush1.msra.mxu0 %v92
    %1235 = vmatprep.subr.mxu0 0.0
    %1236 = vmatpush2.msra.mxu0 0.0
    %1237 = vmatprep.subr.mxu0 0.0
    %1238 = vmatpush2.msra.mxu0 0.0
    %1239 = vmatprep.subr.mxu0 0.0
    %1240 = vmatpush2.msra.mxu0 0.0
    %1241 = vmatprep.subr.mxu0 0.0
    %1242 = vmatpush2.msra.mxu0 0.0
    %1243 = vmatprep.subr.mxu0 0.0
    %1244 = vmatpush2.msra.mxu0 0.0
    %1245 = vmatprep.subr.mxu0 0.0
    %1246 = vmatpush2.msra.mxu0 0.0
    %1247 = vmatprep.subr.mxu0 0.0
    %1248 = vmatpush2.msra.mxu0 0.0
    %1249 = vmatprep.subr.mxu0 0.0
    %1250 = vmatpush2.msra.mxu0 0.0
    %1251 = vmatprep.subr.mxu0 0.0
    %1252 = vmatpush2.msra.mxu0 0.0
    %1253 = vmatprep.subr.mxu0 0.0
    %1254 = vmatpush2.msra.mxu0 0.0
    %1255 = vmatprep.subr.mxu0 0.0
    %1256 = vmatpush2.msra.mxu0 0.0
    %1257 = vmatprep.subr.mxu0 0.0
    %1258 = vmatpush2.msra.mxu0 0.0
    %1259 = vmatprep.subr.mxu0 0.0
    %1260 = vmatpush2.msra.mxu0 0.0
    %1261 = vmatprep.subr.mxu0 0.0
    %1262 = vmatpush2.msra.mxu0 0.0
    %1263 = vmatprep.subr.mxu0 0.0
    %1264 = vmatpush2.msra.mxu0 0.0
    %1265 = vmatprep.subr.mxu0 0.0
    %1266 = vmatpush2.msra.mxu0 0.0
    %1267 = vmatprep.mubr.f32.mxu0 0.0
    %1268 = vmatmul.mubr.f32.gmra.mxu0 %v1130
    %v1269 = vpop.f32.mrf.mxu0
    %v1270 = vadd.f32 0.0, %v1269
    %v1271 = vpop.f32.mrf.mxu0
    %v1272 = vadd.f32 0.0, %v1271
    %1273 = vdwg.mxu0
    %v1274 = vadd.f32 %v313, %v1199
    %v1275 = vadd.f32 %v315, %v1201
    %v1276 = vadd.f32 %v426, %v1270
    %v1277 = vadd.f32 %v428, %v1272
    %v1278 = vxor.u32 %v1274, 2147483648
    %v1279 = vxor.u32 %v1275, 2147483648
    %v1280 = vxor.u32 %v1276, 2147483648
    %v1281 = vmul.f32 %v1278, 1.442695
    %v1282 = vpow.pop %v1281
    %v1283 = vmul.f32 %v1279, 1.442695
    %v1284 = vpow.pop %v1283
    %v1285 = vmul.f32 %v1280, 1.442695
    %v1286 = vpow.pop %v1285
    %v1287 = vadd.f32 %v1282, 1.0
    %v1288 = vadd.f32 %v1284, 1.0
    %v1289 = vadd.f32 %v1286, 1.0
    %v1290 = vrcp.pop %v1287
    %v1291 = vmul.f32 1.0, %v1290
    %v1292 = vrcp.pop %v1288
    %v1293 = vmul.f32 1.0, %v1292
    %v1294 = vrcp.pop %v1289
    %v1295 = vmul.f32 1.0, %v1294
    %v1296 = vtanh.pop %v1277
    %v1297 = vmul.f32 %v1293, %v1128
    %v1298 = vmul.f32 %v1291, %v1296
    %v1299 = vadd.f32 %v1297, %v1298
    %v1300 = vtanh.pop %v1299
    %v1301 = vmul.f32 %v1295, %v1300
    %1302 = vst [vmem:[#allocation2 + $0x20] sm:$0xff] %v1301
    %1303 = vmatprep.subr.mxu0 %v151
    %1304 = vmatpush1.msra.mxu0 %v150
    %1305 = vmatprep.subr.mxu0 %v147
    %1306 = vmatpush1.msra.mxu0 %v146
    %1307 = vmatprep.subr.mxu0 %v143
    %1308 = vmatpush1.msra.mxu0 %v142
    %1309 = vmatprep.subr.mxu0 %v139
    %1310 = vmatpush1.msra.mxu0 %v138
    %1311 = vmatprep.subr.mxu0 %v135
    %1312 = vmatpush1.msra.mxu0 %v134
    %1313 = vmatprep.subr.mxu0 %v131
    %1314 = vmatpush1.msra.mxu0 %v130
    %1315 = vmatprep.subr.mxu0 %v127
    %1316 = vmatpush1.msra.mxu0 %v126
    %1317 = vmatprep.subr.mxu0 %v123
    %1318 = vmatpush1.msra.mxu0 %v122
    %1319 = vmatprep.subr.mxu0 %v119
    %1320 = vmatpush1.msra.mxu0 %v118
    %1321 = vmatprep.subr.mxu0 %v115
    %1322 = vmatpush1.msra.mxu0 %v114
    %1323 = vmatprep.subr.mxu0 %v111
    %1324 = vmatpush1.msra.mxu0 %v110
    %1325 = vmatprep.subr.mxu0 %v107
    %1326 = vmatpush1.msra.mxu0 %v106
    %1327 = vmatprep.subr.mxu0 %v103
    %1328 = vmatpush1.msra.mxu0 %v102
    %1329 = vmatprep.subr.mxu0 %v99
    %1330 = vmatpush1.msra.mxu0 %v98
    %1331 = vmatprep.subr.mxu0 %v95
    %1332 = vmatpush1.msra.mxu0 %v94
    %1333 = vmatprep.subr.mxu0 %v91
    %1334 = vmatpush1.msra.mxu0 %v90
    %1335 = vmatprep.subr.mxu0 0.0
    %1336 = vmatpush2.msra.mxu0 0.0
    %1337 = vmatprep.subr.mxu0 0.0
    %1338 = vmatpush2.msra.mxu0 0.0
    %1339 = vmatprep.subr.mxu0 0.0
    %1340 = vmatpush2.msra.mxu0 0.0
    %1341 = vmatprep.subr.mxu0 0.0
    %1342 = vmatpush2.msra.mxu0 0.0
    %1343 = vmatprep.subr.mxu0 0.0
    %1344 = vmatpush2.msra.mxu0 0.0
    %1345 = vmatprep.subr.mxu0 0.0
    %1346 = vmatpush2.msra.mxu0 0.0
    %1347 = vmatprep.subr.mxu0 0.0
    %1348 = vmatpush2.msra.mxu0 0.0
    %1349 = vmatprep.subr.mxu0 0.0
    %1350 = vmatpush2.msra.mxu0 0.0
    %1351 = vmatprep.subr.mxu0 0.0
    %1352 = vmatpush2.msra.mxu0 0.0
    %1353 = vmatprep.subr.mxu0 0.0
    %1354 = vmatpush2.msra.mxu0 0.0
    %1355 = vmatprep.subr.mxu0 0.0
    %1356 = vmatpush2.msra.mxu0 0.0
    %1357 = vmatprep.subr.mxu0 0.0
    %1358 = vmatpush2.msra.mxu0 0.0
    %1359 = vmatprep.subr.mxu0 0.0
    %1360 = vmatpush2.msra.mxu0 0.0
    %1361 = vmatprep.subr.mxu0 0.0
    %1362 = vmatpush2.msra.mxu0 0.0
    %1363 = vmatprep.subr.mxu0 0.0
    %1364 = vmatpush2.msra.mxu0 0.0
    %1365 = vmatprep.subr.mxu0 0.0
    %1366 = vmatpush2.msra.mxu0 0.0
    %1367 = vmatprep.mubr.f32.mxu0 0.0
    %1368 = vmatmul.mubr.f32.gmra.mxu0 %v1301
    %v1369 = vpop.f32.mrf.mxu0
    %v1370 = vadd.f32 0.0, %v1369
    %v1371 = vpop.f32.mrf.mxu0
    %v1372 = vadd.f32 0.0, %v1371
    %1373 = vdwg.mxu0
    %1374 = vmatprep.subr.mxu0 %v153
    %1375 = vmatpush1.msra.mxu0 %v152
    %1376 = vmatprep.subr.mxu0 %v149
    %1377 = vmatpush1.msra.mxu0 %v148
    %1378 = vmatprep.subr.mxu0 %v145
    %1379 = vmatpush1.msra.mxu0 %v144
    %1380 = vmatprep.subr.mxu0 %v141
    %1381 = vmatpush1.msra.mxu0 %v140
    %1382 = vmatprep.subr.mxu0 %v137
    %1383 = vmatpush1.msra.mxu0 %v136
    %1384 = vmatprep.subr.mxu0 %v133
    %1385 = vmatpush1.msra.mxu0 %v132
    %1386 = vmatprep.subr.mxu0 %v129
    %1387 = vmatpush1.msra.mxu0 %v128
    %1388 = vmatprep.subr.mxu0 %v125
    %1389 = vmatpush1.msra.mxu0 %v124
    %1390 = vmatprep.subr.mxu0 %v121
    %1391 = vmatpush1.msra.mxu0 %v120
    %1392 = vmatprep.subr.mxu0 %v117
    %1393 = vmatpush1.msra.mxu0 %v116
    %1394 = vmatprep.subr.mxu0 %v113
    %1395 = vmatpush1.msra.mxu0 %v112
    %1396 = vmatprep.subr.mxu0 %v109
    %1397 = vmatpush1.msra.mxu0 %v108
    %1398 = vmatprep.subr.mxu0 %v105
    %1399 = vmatpush1.msra.mxu0 %v104
    %1400 = vmatprep.subr.mxu0 %v101
    %1401 = vmatpush1.msra.mxu0 %v100
    %1402 = vmatprep.subr.mxu0 %v97
    %1403 = vmatpush1.msra.mxu0 %v96
    %1404 = vmatprep.subr.mxu0 %v93
    %1405 = vmatpush1.msra.mxu0 %v92
    %1406 = vmatprep.subr.mxu0 0.0
    %1407 = vmatpush2.msra.mxu0 0.0
    %1408 = vmatprep.subr.mxu0 0.0
    %1409 = vmatpush2.msra.mxu0 0.0
    %1410 = vmatprep.subr.mxu0 0.0
    %1411 = vmatpush2.msra.mxu0 0.0
    %1412 = vmatprep.subr.mxu0 0.0
    %1413 = vmatpush2.msra.mxu0 0.0
    %1414 = vmatprep.subr.mxu0 0.0
    %1415 = vmatpush2.msra.mxu0 0.0
    %1416 = vmatprep.subr.mxu0 0.0
    %1417 = vmatpush2.msra.mxu0 0.0
    %1418 = vmatprep.subr.mxu0 0.0
    %1419 = vmatpush2.msra.mxu0 0.0
    %1420 = vmatprep.subr.mxu0 0.0
    %1421 = vmatpush2.msra.mxu0 0.0
    %1422 = vmatprep.subr.mxu0 0.0
    %1423 = vmatpush2.msra.mxu0 0.0
    %1424 = vmatprep.subr.mxu0 0.0
    %1425 = vmatpush2.msra.mxu0 0.0
    %1426 = vmatprep.subr.mxu0 0.0
    %1427 = vmatpush2.msra.mxu0 0.0
    %1428 = vmatprep.subr.mxu0 0.0
    %1429 = vmatpush2.msra.mxu0 0.0
    %1430 = vmatprep.subr.mxu0 0.0
    %1431 = vmatpush2.msra.mxu0 0.0
    %1432 = vmatprep.subr.mxu0 0.0
    %1433 = vmatpush2.msra.mxu0 0.0
    %1434 = vmatprep.subr.mxu0 0.0
    %1435 = vmatpush2.msra.mxu0 0.0
    %1436 = vmatprep.subr.mxu0 0.0
    %1437 = vmatpush2.msra.mxu0 0.0
    %1438 = vmatprep.mubr.f32.mxu0 0.0
    %1439 = vmatmul.mubr.f32.gmra.mxu0 %v1301
    %v1440 = vpop.f32.mrf.mxu0
    %v1441 = vadd.f32 0.0, %v1440
    %v1442 = vpop.f32.mrf.mxu0
    %v1443 = vadd.f32 0.0, %v1442
    %1444 = vdwg.mxu0
    %v1445 = vadd.f32 %v319, %v1370
    %v1446 = vadd.f32 %v321, %v1372
    %v1447 = vadd.f32 %v432, %v1441
    %v1448 = vadd.f32 %v434, %v1443
    %v1449 = vxor.u32 %v1445, 2147483648
    %v1450 = vxor.u32 %v1446, 2147483648
    %v1451 = vxor.u32 %v1447, 2147483648
    %v1452 = vmul.f32 %v1449, 1.442695
    %v1453 = vpow.pop %v1452
    %v1454 = vmul.f32 %v1450, 1.442695
    %v1455 = vpow.pop %v1454
    %v1456 = vmul.f32 %v1451, 1.442695
    %v1457 = vpow.pop %v1456
    %v1458 = vadd.f32 %v1453, 1.0
    %v1459 = vadd.f32 %v1455, 1.0
    %v1460 = vadd.f32 %v1457, 1.0
    %v1461 = vrcp.pop %v1458
    %v1462 = vmul.f32 1.0, %v1461
    %v1463 = vrcp.pop %v1459
    %v1464 = vmul.f32 1.0, %v1463
    %v1465 = vrcp.pop %v1460
    %v1466 = vmul.f32 1.0, %v1465
    %v1467 = vtanh.pop %v1448
    %v1468 = vmul.f32 %v1464, %v1299
    %v1469 = vmul.f32 %v1462, %v1467
    %v1470 = vadd.f32 %v1468, %v1469
    %v1471 = vtanh.pop %v1470
    %v1472 = vmul.f32 %v1466, %v1471
    %1473 = vst [vmem:[#allocation2 + $0x28] sm:$0xff] %v1472
    %1474 = vmatprep.subr.mxu0 %v151
    %1475 = vmatpush1.msra.mxu0 %v150
    %1476 = vmatprep.subr.mxu0 %v147
    %1477 = vmatpush1.msra.mxu0 %v146
    %1478 = vmatprep.subr.mxu0 %v143
    %1479 = vmatpush1.msra.mxu0 %v142
    %1480 = vmatprep.subr.mxu0 %v139
    %1481 = vmatpush1.msra.mxu0 %v138
    %1482 = vmatprep.subr.mxu0 %v135
    %1483 = vmatpush1.msra.mxu0 %v134
    %1484 = vmatprep.subr.mxu0 %v131
    %1485 = vmatpush1.msra.mxu0 %v130
    %1486 = vmatprep.subr.mxu0 %v127
    %1487 = vmatpush1.msra.mxu0 %v126
    %1488 = vmatprep.subr.mxu0 %v123
    %1489 = vmatpush1.msra.mxu0 %v122
    %1490 = vmatprep.subr.mxu0 %v119
    %1491 = vmatpush1.msra.mxu0 %v118
    %1492 = vmatprep.subr.mxu0 %v115
    %1493 = vmatpush1.msra.mxu0 %v114
    %1494 = vmatprep.subr.mxu0 %v111
    %1495 = vmatpush1.msra.mxu0 %v110
    %1496 = vmatprep.subr.mxu0 %v107
    %1497 = vmatpush1.msra.mxu0 %v106
    %1498 = vmatprep.subr.mxu0 %v103
    %1499 = vmatpush1.msra.mxu0 %v102
    %1500 = vmatprep.subr.mxu0 %v99
    %1501 = vmatpush1.msra.mxu0 %v98
    %1502 = vmatprep.subr.mxu0 %v95
    %1503 = vmatpush1.msra.mxu0 %v94
    %1504 = vmatprep.subr.mxu0 %v91
    %1505 = vmatpush1.msra.mxu0 %v90
    %1506 = vmatprep.subr.mxu0 0.0
    %1507 = vmatpush2.msra.mxu0 0.0
    %1508 = vmatprep.subr.mxu0 0.0
    %1509 = vmatpush2.msra.mxu0 0.0
    %1510 = vmatprep.subr.mxu0 0.0
    %1511 = vmatpush2.msra.mxu0 0.0
    %1512 = vmatprep.subr.mxu0 0.0
    %1513 = vmatpush2.msra.mxu0 0.0
    %1514 = vmatprep.subr.mxu0 0.0
    %1515 = vmatpush2.msra.mxu0 0.0
    %1516 = vmatprep.subr.mxu0 0.0
    %1517 = vmatpush2.msra.mxu0 0.0
    %1518 = vmatprep.subr.mxu0 0.0
    %1519 = vmatpush2.msra.mxu0 0.0
    %1520 = vmatprep.subr.mxu0 0.0
    %1521 = vmatpush2.msra.mxu0 0.0
    %1522 = vmatprep.subr.mxu0 0.0
    %1523 = vmatpush2.msra.mxu0 0.0
    %1524 = vmatprep.subr.mxu0 0.0
    %1525 = vmatpush2.msra.mxu0 0.0
    %1526 = vmatprep.subr.mxu0 0.0
    %1527 = vmatpush2.msra.mxu0 0.0
    %1528 = vmatprep.subr.mxu0 0.0
    %1529 = vmatpush2.msra.mxu0 0.0
    %1530 = vmatprep.subr.mxu0 0.0
    %1531 = vmatpush2.msra.mxu0 0.0
    %1532 = vmatprep.subr.mxu0 0.0
    %1533 = vmatpush2.msra.mxu0 0.0
    %1534 = vmatprep.subr.mxu0 0.0
    %1535 = vmatpush2.msra.mxu0 0.0
    %1536 = vmatprep.subr.mxu0 0.0
    %1537 = vmatpush2.msra.mxu0 0.0
    %1538 = vmatprep.mubr.f32.mxu0 0.0
    %1539 = vmatmul.mubr.f32.gmra.mxu0 %v1472
    %v1540 = vpop.f32.mrf.mxu0
    %v1541 = vadd.f32 0.0, %v1540
    %v1542 = vpop.f32.mrf.mxu0
    %v1543 = vadd.f32 0.0, %v1542
    %1544 = vdwg.mxu0
    %1545 = vmatprep.subr.mxu0 %v153
    %1546 = vmatpush1.msra.mxu0 %v152
    %1547 = vmatprep.subr.mxu0 %v149
    %1548 = vmatpush1.msra.mxu0 %v148
    %1549 = vmatprep.subr.mxu0 %v145
    %1550 = vmatpush1.msra.mxu0 %v144
    %1551 = vmatprep.subr.mxu0 %v141
    %1552 = vmatpush1.msra.mxu0 %v140
    %1553 = vmatprep.subr.mxu0 %v137
    %1554 = vmatpush1.msra.mxu0 %v136
    %1555 = vmatprep.subr.mxu0 %v133
    %1556 = vmatpush1.msra.mxu0 %v132
    %1557 = vmatprep.subr.mxu0 %v129
    %1558 = vmatpush1.msra.mxu0 %v128
    %1559 = vmatprep.subr.mxu0 %v125
    %1560 = vmatpush1.msra.mxu0 %v124
    %1561 = vmatprep.subr.mxu0 %v121
    %1562 = vmatpush1.msra.mxu0 %v120
    %1563 = vmatprep.subr.mxu0 %v117
    %1564 = vmatpush1.msra.mxu0 %v116
    %1565 = vmatprep.subr.mxu0 %v113
    %1566 = vmatpush1.msra.mxu0 %v112
    %1567 = vmatprep.subr.mxu0 %v109
    %1568 = vmatpush1.msra.mxu0 %v108
    %1569 = vmatprep.subr.mxu0 %v105
    %1570 = vmatpush1.msra.mxu0 %v104
    %1571 = vmatprep.subr.mxu0 %v101
    %1572 = vmatpush1.msra.mxu0 %v100
    %1573 = vmatprep.subr.mxu0 %v97
    %1574 = vmatpush1.msra.mxu0 %v96
    %1575 = vmatprep.subr.mxu0 %v93
    %1576 = vmatpush1.msra.mxu0 %v92
    %1577 = vmatprep.subr.mxu0 0.0
    %1578 = vmatpush2.msra.mxu0 0.0
    %1579 = vmatprep.subr.mxu0 0.0
    %1580 = vmatpush2.msra.mxu0 0.0
    %1581 = vmatprep.subr.mxu0 0.0
    %1582 = vmatpush2.msra.mxu0 0.0
    %1583 = vmatprep.subr.mxu0 0.0
    %1584 = vmatpush2.msra.mxu0 0.0
    %1585 = vmatprep.subr.mxu0 0.0
    %1586 = vmatpush2.msra.mxu0 0.0
    %1587 = vmatprep.subr.mxu0 0.0
    %1588 = vmatpush2.msra.mxu0 0.0
    %1589 = vmatprep.subr.mxu0 0.0
    %1590 = vmatpush2.msra.mxu0 0.0
    %1591 = vmatprep.subr.mxu0 0.0
    %1592 = vmatpush2.msra.mxu0 0.0
    %1593 = vmatprep.subr.mxu0 0.0
    %1594 = vmatpush2.msra.mxu0 0.0
    %1595 = vmatprep.subr.mxu0 0.0
    %1596 = vmatpush2.msra.mxu0 0.0
    %1597 = vmatprep.subr.mxu0 0.0
    %1598 = vmatpush2.msra.mxu0 0.0
    %1599 = vmatprep.subr.mxu0 0.0
    %1600 = vmatpush2.msra.mxu0 0.0
    %1601 = vmatprep.subr.mxu0 0.0
    %1602 = vmatpush2.msra.mxu0 0.0
    %1603 = vmatprep.subr.mxu0 0.0
    %1604 = vmatpush2.msra.mxu0 0.0
    %1605 = vmatprep.subr.mxu0 0.0
    %1606 = vmatpush2.msra.mxu0 0.0
    %1607 = vmatprep.subr.mxu0 0.0
    %1608 = vmatpush2.msra.mxu0 0.0
    %1609 = vmatprep.mubr.f32.mxu0 0.0
    %1610 = vmatmul.mubr.f32.gmra.mxu0 %v1472
    %v1611 = vpop.f32.mrf.mxu0
    %v1612 = vadd.f32 0.0, %v1611
    %v1613 = vpop.f32.mrf.mxu0
    %v1614 = vadd.f32 0.0, %v1613
    %1615 = vdwg.mxu0
    %v1616 = vadd.f32 %v325, %v1541
    %v1617 = vadd.f32 %v327, %v1543
    %v1618 = vadd.f32 %v438, %v1612
    %v1619 = vadd.f32 %v440, %v1614
    %v1620 = vxor.u32 %v1616, 2147483648
    %v1621 = vxor.u32 %v1617, 2147483648
    %v1622 = vxor.u32 %v1618, 2147483648
    %v1623 = vmul.f32 %v1620, 1.442695
    %v1624 = vpow.pop %v1623
    %v1625 = vmul.f32 %v1621, 1.442695
    %v1626 = vpow.pop %v1625
    %v1627 = vmul.f32 %v1622, 1.442695
    %v1628 = vpow.pop %v1627
    %v1629 = vadd.f32 %v1624, 1.0
    %v1630 = vadd.f32 %v1626, 1.0
    %v1631 = vadd.f32 %v1628, 1.0
    %v1632 = vrcp.pop %v1629
    %v1633 = vmul.f32 1.0, %v1632
    %v1634 = vrcp.pop %v1630
    %v1635 = vmul.f32 1.0, %v1634
    %v1636 = vrcp.pop %v1631
    %v1637 = vmul.f32 1.0, %v1636
    %v1638 = vtanh.pop %v1619
    %v1639 = vmul.f32 %v1635, %v1470
    %v1640 = vmul.f32 %v1633, %v1638
    %v1641 = vadd.f32 %v1639, %v1640
    %v1642 = vtanh.pop %v1641
    %v1643 = vmul.f32 %v1637, %v1642
    %1644 = vst [vmem:[#allocation2 + $0x30] sm:$0xff] %v1643
    %1645 = vmatprep.subr.mxu0 %v151
    %1646 = vmatpush1.msra.mxu0 %v150
    %1647 = vmatprep.subr.mxu0 %v147
    %1648 = vmatpush1.msra.mxu0 %v146
    %1649 = vmatprep.subr.mxu0 %v143
    %1650 = vmatpush1.msra.mxu0 %v142
    %1651 = vmatprep.subr.mxu0 %v139
    %1652 = vmatpush1.msra.mxu0 %v138
    %1653 = vmatprep.subr.mxu0 %v135
    %1654 = vmatpush1.msra.mxu0 %v134
    %1655 = vmatprep.subr.mxu0 %v131
    %1656 = vmatpush1.msra.mxu0 %v130
    %1657 = vmatprep.subr.mxu0 %v127
    %1658 = vmatpush1.msra.mxu0 %v126
    %1659 = vmatprep.subr.mxu0 %v123
    %1660 = vmatpush1.msra.mxu0 %v122
    %1661 = vmatprep.subr.mxu0 %v119
    %1662 = vmatpush1.msra.mxu0 %v118
    %1663 = vmatprep.subr.mxu0 %v115
    %1664 = vmatpush1.msra.mxu0 %v114
    %1665 = vmatprep.subr.mxu0 %v111
    %1666 = vmatpush1.msra.mxu0 %v110
    %1667 = vmatprep.subr.mxu0 %v107
    %1668 = vmatpush1.msra.mxu0 %v106
    %1669 = vmatprep.subr.mxu0 %v103
    %1670 = vmatpush1.msra.mxu0 %v102
    %1671 = vmatprep.subr.mxu0 %v99
    %1672 = vmatpush1.msra.mxu0 %v98
    %1673 = vmatprep.subr.mxu0 %v95
    %1674 = vmatpush1.msra.mxu0 %v94
    %1675 = vmatprep.subr.mxu0 %v91
    %1676 = vmatpush1.msra.mxu0 %v90
    %1677 = vmatprep.subr.mxu0 0.0
    %1678 = vmatpush2.msra.mxu0 0.0
    %1679 = vmatprep.subr.mxu0 0.0
    %1680 = vmatpush2.msra.mxu0 0.0
    %1681 = vmatprep.subr.mxu0 0.0
    %1682 = vmatpush2.msra.mxu0 0.0
    %1683 = vmatprep.subr.mxu0 0.0
    %1684 = vmatpush2.msra.mxu0 0.0
    %1685 = vmatprep.subr.mxu0 0.0
    %1686 = vmatpush2.msra.mxu0 0.0
    %1687 = vmatprep.subr.mxu0 0.0
    %1688 = vmatpush2.msra.mxu0 0.0
    %1689 = vmatprep.subr.mxu0 0.0
    %1690 = vmatpush2.msra.mxu0 0.0
    %1691 = vmatprep.subr.mxu0 0.0
    %1692 = vmatpush2.msra.mxu0 0.0
    %1693 = vmatprep.subr.mxu0 0.0
    %1694 = vmatpush2.msra.mxu0 0.0
    %1695 = vmatprep.subr.mxu0 0.0
    %1696 = vmatpush2.msra.mxu0 0.0
    %1697 = vmatprep.subr.mxu0 0.0
    %1698 = vmatpush2.msra.mxu0 0.0
    %1699 = vmatprep.subr.mxu0 0.0
    %1700 = vmatpush2.msra.mxu0 0.0
    %1701 = vmatprep.subr.mxu0 0.0
    %1702 = vmatpush2.msra.mxu0 0.0
    %1703 = vmatprep.subr.mxu0 0.0
    %1704 = vmatpush2.msra.mxu0 0.0
    %1705 = vmatprep.subr.mxu0 0.0
    %1706 = vmatpush2.msra.mxu0 0.0
    %1707 = vmatprep.subr.mxu0 0.0
    %1708 = vmatpush2.msra.mxu0 0.0
    %1709 = vmatprep.mubr.f32.mxu0 0.0
    %1710 = vmatmul.mubr.f32.gmra.mxu0 %v1643
    %v1711 = vpop.f32.mrf.mxu0
    %v1712 = vadd.f32 0.0, %v1711
    %v1713 = vpop.f32.mrf.mxu0
    %v1714 = vadd.f32 0.0, %v1713
    %1715 = vdwg.mxu0
    %1716 = vmatprep.subr.mxu0 %v153
    %1717 = vmatpush1.msra.mxu0 %v152
    %1718 = vmatprep.subr.mxu0 %v149
    %1719 = vmatpush1.msra.mxu0 %v148
    %1720 = vmatprep.subr.mxu0 %v145
    %1721 = vmatpush1.msra.mxu0 %v144
    %1722 = vmatprep.subr.mxu0 %v141
    %1723 = vmatpush1.msra.mxu0 %v140
    %1724 = vmatprep.subr.mxu0 %v137
    %1725 = vmatpush1.msra.mxu0 %v136
    %1726 = vmatprep.subr.mxu0 %v133
    %1727 = vmatpush1.msra.mxu0 %v132
    %1728 = vmatprep.subr.mxu0 %v129
    %1729 = vmatpush1.msra.mxu0 %v128
    %1730 = vmatprep.subr.mxu0 %v125
    %1731 = vmatpush1.msra.mxu0 %v124
    %1732 = vmatprep.subr.mxu0 %v121
    %1733 = vmatpush1.msra.mxu0 %v120
    %1734 = vmatprep.subr.mxu0 %v117
    %1735 = vmatpush1.msra.mxu0 %v116
    %1736 = vmatprep.subr.mxu0 %v113
    %1737 = vmatpush1.msra.mxu0 %v112
    %1738 = vmatprep.subr.mxu0 %v109
    %1739 = vmatpush1.msra.mxu0 %v108
    %1740 = vmatprep.subr.mxu0 %v105
    %1741 = vmatpush1.msra.mxu0 %v104
    %1742 = vmatprep.subr.mxu0 %v101
    %1743 = vmatpush1.msra.mxu0 %v100
    %1744 = vmatprep.subr.mxu0 %v97
    %1745 = vmatpush1.msra.mxu0 %v96
    %1746 = vmatprep.subr.mxu0 %v93
    %1747 = vmatpush1.msra.mxu0 %v92
    %1748 = vmatprep.subr.mxu0 0.0
    %1749 = vmatpush2.msra.mxu0 0.0
    %1750 = vmatprep.subr.mxu0 0.0
    %1751 = vmatpush2.msra.mxu0 0.0
    %1752 = vmatprep.subr.mxu0 0.0
    %1753 = vmatpush2.msra.mxu0 0.0
    %1754 = vmatprep.subr.mxu0 0.0
    %1755 = vmatpush2.msra.mxu0 0.0
    %1756 = vmatprep.subr.mxu0 0.0
    %1757 = vmatpush2.msra.mxu0 0.0
    %1758 = vmatprep.subr.mxu0 0.0
    %1759 = vmatpush2.msra.mxu0 0.0
    %1760 = vmatprep.subr.mxu0 0.0
    %1761 = vmatpush2.msra.mxu0 0.0
    %1762 = vmatprep.subr.mxu0 0.0
    %1763 = vmatpush2.msra.mxu0 0.0
    %1764 = vmatprep.subr.mxu0 0.0
    %1765 = vmatpush2.msra.mxu0 0.0
    %1766 = vmatprep.subr.mxu0 0.0
    %1767 = vmatpush2.msra.mxu0 0.0
    %1768 = vmatprep.subr.mxu0 0.0
    %1769 = vmatpush2.msra.mxu0 0.0
    %1770 = vmatprep.subr.mxu0 0.0
    %1771 = vmatpush2.msra.mxu0 0.0
    %1772 = vmatprep.subr.mxu0 0.0
    %1773 = vmatpush2.msra.mxu0 0.0
    %1774 = vmatprep.subr.mxu0 0.0
    %1775 = vmatpush2.msra.mxu0 0.0
    %1776 = vmatprep.subr.mxu0 0.0
    %1777 = vmatpush2.msra.mxu0 0.0
    %1778 = vmatprep.subr.mxu0 0.0
    %1779 = vmatpush2.msra.mxu0 0.0
    %1780 = vmatprep.mubr.f32.mxu0 0.0
    %1781 = vmatmul.mubr.f32.gmra.mxu0 %v1643
    %v1782 = vpop.f32.mrf.mxu0
    %v1783 = vadd.f32 0.0, %v1782
    %v1784 = vpop.f32.mrf.mxu0
    %v1785 = vadd.f32 0.0, %v1784
    %1786 = vdwg.mxu0
    %v1787 = vadd.f32 %v331, %v1712
    %v1788 = vadd.f32 %v333, %v1714
    %v1789 = vadd.f32 %v444, %v1783
    %v1790 = vadd.f32 %v446, %v1785
    %v1791 = vxor.u32 %v1787, 2147483648
    %v1792 = vxor.u32 %v1788, 2147483648
    %v1793 = vxor.u32 %v1789, 2147483648
    %v1794 = vmul.f32 %v1791, 1.442695
    %v1795 = vpow.pop %v1794
    %v1796 = vmul.f32 %v1792, 1.442695
    %v1797 = vpow.pop %v1796
    %v1798 = vmul.f32 %v1793, 1.442695
    %v1799 = vpow.pop %v1798
    %v1800 = vadd.f32 %v1795, 1.0
    %v1801 = vadd.f32 %v1797, 1.0
    %v1802 = vadd.f32 %v1799, 1.0
    %v1803 = vrcp.pop %v1800
    %v1804 = vmul.f32 1.0, %v1803
    %v1805 = vrcp.pop %v1801
    %v1806 = vmul.f32 1.0, %v1805
    %v1807 = vrcp.pop %v1802
    %v1808 = vmul.f32 1.0, %v1807
    %v1809 = vtanh.pop %v1790
    %v1810 = vmul.f32 %v1806, %v1641
    %v1811 = vmul.f32 %v1804, %v1809
    %v1812 = vadd.f32 %v1810, %v1811
    %v1813 = vtanh.pop %v1812
    %v1814 = vmul.f32 %v1808, %v1813
    %1815 = vst [vmem:[#allocation2 + $0x38] sm:$0xff] %v1814
    %v1816 = vld [vmem:[#allocation6] sm:$0xff]
    %v1817 = vld [vmem:[#allocation6 + $0x8] sm:$0xff]
    %v1818 = vld [vmem:[#allocation6 + $0x10] sm:$0xff]
    %v1819 = vld [vmem:[#allocation6 + $0x18] sm:$0xff]
    %v1820 = vld [vmem:[#allocation6 + $0x20] sm:$0xff]
    %v1821 = vld [vmem:[#allocation6 + $0x28] sm:$0xff]
    %v1822 = vld [vmem:[#allocation6 + $0x30] sm:$0xff]
    %v1823 = vld [vmem:[#allocation6 + $0x38] sm:$0xff]
    %v1824 = vld [vmem:[#allocation6 + $0x40] sm:$0xff]
    %v1825 = vld [vmem:[#allocation6 + $0x48] sm:$0xff]
    %v1826 = vld [vmem:[#allocation6 + $0x50] sm:$0xff]
    %v1827 = vld [vmem:[#allocation6 + $0x58] sm:$0xff]
    %v1828 = vld [vmem:[#allocation6 + $0x60] sm:$0xff]
    %v1829 = vld [vmem:[#allocation6 + $0x68] sm:$0xff]
    %v1830 = vld [vmem:[#allocation6 + $0x70] sm:$0xff]
    %v1831 = vld [vmem:[#allocation6 + $0x78] sm:$0xff]
    %v1832 = vld [vmem:[#allocation6 + $0x80] sm:$0xff]
    %v1833 = vld [vmem:[#allocation6 + $0x88] sm:$0xff]
    %v1834 = vld [vmem:[#allocation6 + $0x90] sm:$0xff]
    %v1835 = vld [vmem:[#allocation6 + $0x98] sm:$0xff]
    %v1836 = vld [vmem:[#allocation6 + $0xa0] sm:$0xff]
    %v1837 = vld [vmem:[#allocation6 + $0xa8] sm:$0xff]
    %v1838 = vld [vmem:[#allocation6 + $0xb0] sm:$0xff]
    %v1839 = vld [vmem:[#allocation6 + $0xb8] sm:$0xff]
    %v1840 = vld [vmem:[#allocation6 + $0xc0] sm:$0xff]
    %v1841 = vld [vmem:[#allocation6 + $0xc8] sm:$0xff]
    %v1842 = vld [vmem:[#allocation6 + $0xd0] sm:$0xff]
    %v1843 = vld [vmem:[#allocation6 + $0xd8] sm:$0xff]
    %v1844 = vld [vmem:[#allocation6 + $0xe0] sm:$0xff]
    %v1845 = vld [vmem:[#allocation6 + $0xe8] sm:$0xff]
    %v1846 = vld [vmem:[#allocation6 + $0xf0] sm:$0xff]
    %v1847 = vld [vmem:[#allocation6 + $0xf8] sm:$0xff]
    %v1848 = vld [vmem:[#allocation6 + $0x100] sm:$0xff]
    %v1849 = vld [vmem:[#allocation6 + $0x108] sm:$0xff]
    %v1850 = vld [vmem:[#allocation6 + $0x110] sm:$0xff]
    %v1851 = vld [vmem:[#allocation6 + $0x118] sm:$0xff]
    %v1852 = vld [vmem:[#allocation6 + $0x120] sm:$0xff]
    %v1853 = vld [vmem:[#allocation6 + $0x128] sm:$0xff]
    %v1854 = vld [vmem:[#allocation6 + $0x130] sm:$0xff]
    %v1855 = vld [vmem:[#allocation6 + $0x138] sm:$0xff]
    %v1856 = vld [vmem:[#allocation6 + $0x140] sm:$0xff]
    %v1857 = vld [vmem:[#allocation6 + $0x148] sm:$0xff]
    %v1858 = vld [vmem:[#allocation6 + $0x150] sm:$0xff]
    %v1859 = vld [vmem:[#allocation6 + $0x158] sm:$0xff]
    %v1860 = vld [vmem:[#allocation6 + $0x160] sm:$0xff]
    %v1861 = vld [vmem:[#allocation6 + $0x168] sm:$0xff]
    %v1862 = vld [vmem:[#allocation6 + $0x170] sm:$0xff]
    %v1863 = vld [vmem:[#allocation6 + $0x178] sm:$0xff]
    %v1864 = vld [vmem:[#allocation6 + $0x180] sm:$0xff]
    %v1865 = vld [vmem:[#allocation6 + $0x188] sm:$0xff]
    %v1866 = vld [vmem:[#allocation6 + $0x190] sm:$0xff]
    %v1867 = vld [vmem:[#allocation6 + $0x198] sm:$0xff]
    %v1868 = vld [vmem:[#allocation6 + $0x1a0] sm:$0xff]
    %v1869 = vld [vmem:[#allocation6 + $0x1a8] sm:$0xff]
    %v1870 = vld [vmem:[#allocation6 + $0x1b0] sm:$0xff]
    %v1871 = vld [vmem:[#allocation6 + $0x1b8] sm:$0xff]
    %v1872 = vld [vmem:[#allocation6 + $0x1c0] sm:$0xff]
    %v1873 = vld [vmem:[#allocation6 + $0x1c8] sm:$0xff]
    %v1874 = vld [vmem:[#allocation6 + $0x1d0] sm:$0xff]
    %v1875 = vld [vmem:[#allocation6 + $0x1d8] sm:$0xff]
    %v1876 = vld [vmem:[#allocation6 + $0x1e0] sm:$0xff]
    %v1877 = vld [vmem:[#allocation6 + $0x1e8] sm:$0xff]
    %v1878 = vld [vmem:[#allocation6 + $0x1f0] sm:$0xff]
    %v1879 = vld [vmem:[#allocation6 + $0x1f8] sm:$0xff]
    %v1880 = vld [vmem:[#allocation8] sm:$0xff]
    %v1881 = vld [vmem:[#allocation8 + $0x8] sm:$0xff]
    %v1882 = vld [vmem:[#allocation8 + $0x10] sm:$0xff]
    %v1883 = vld [vmem:[#allocation8 + $0x18] sm:$0xff]
    %v1884 = vld [vmem:[#allocation8 + $0x20] sm:$0xff]
    %v1885 = vld [vmem:[#allocation8 + $0x28] sm:$0xff]
    %v1886 = vld [vmem:[#allocation8 + $0x30] sm:$0xff]
    %v1887 = vld [vmem:[#allocation8 + $0x38] sm:$0xff]
    %v1888 = vld [vmem:[#allocation8 + $0x40] sm:$0xff]
    %v1889 = vld [vmem:[#allocation8 + $0x48] sm:$0xff]
    %v1890 = vld [vmem:[#allocation8 + $0x50] sm:$0xff]
    %v1891 = vld [vmem:[#allocation8 + $0x58] sm:$0xff]
    %v1892 = vld [vmem:[#allocation8 + $0x60] sm:$0xff]
    %v1893 = vld [vmem:[#allocation8 + $0x68] sm:$0xff]
    %v1894 = vld [vmem:[#allocation8 + $0x70] sm:$0xff]
    %v1895 = vld [vmem:[#allocation8 + $0x78] sm:$0xff]
    %v1896 = vld [vmem:[#allocation8 + $0x80] sm:$0xff]
    %v1897 = vld [vmem:[#allocation8 + $0x88] sm:$0xff]
    %v1898 = vld [vmem:[#allocation8 + $0x90] sm:$0xff]
    %v1899 = vld [vmem:[#allocation8 + $0x98] sm:$0xff]
    %v1900 = vld [vmem:[#allocation8 + $0xa0] sm:$0xff]
    %v1901 = vld [vmem:[#allocation8 + $0xa8] sm:$0xff]
    %v1902 = vld [vmem:[#allocation8 + $0xb0] sm:$0xff]
    %v1903 = vld [vmem:[#allocation8 + $0xb8] sm:$0xff]
    %v1904 = vld [vmem:[#allocation8 + $0xc0] sm:$0xff]
    %v1905 = vld [vmem:[#allocation8 + $0xc8] sm:$0xff]
    %v1906 = vld [vmem:[#allocation8 + $0xd0] sm:$0xff]
    %v1907 = vld [vmem:[#allocation8 + $0xd8] sm:$0xff]
    %v1908 = vld [vmem:[#allocation8 + $0xe0] sm:$0xff]
    %v1909 = vld [vmem:[#allocation8 + $0xe8] sm:$0xff]
    %v1910 = vld [vmem:[#allocation8 + $0xf0] sm:$0xff]
    %v1911 = vld [vmem:[#allocation8 + $0xf8] sm:$0xff]
    %v1912 = vld [vmem:[#allocation8 + $0x100] sm:$0xff]
    %v1913 = vld [vmem:[#allocation8 + $0x108] sm:$0xff]
    %v1914 = vld [vmem:[#allocation8 + $0x110] sm:$0xff]
    %v1915 = vld [vmem:[#allocation8 + $0x118] sm:$0xff]
    %v1916 = vld [vmem:[#allocation8 + $0x120] sm:$0xff]
    %v1917 = vld [vmem:[#allocation8 + $0x128] sm:$0xff]
    %v1918 = vld [vmem:[#allocation8 + $0x130] sm:$0xff]
    %v1919 = vld [vmem:[#allocation8 + $0x138] sm:$0xff]
    %v1920 = vld [vmem:[#allocation8 + $0x140] sm:$0xff]
    %v1921 = vld [vmem:[#allocation8 + $0x148] sm:$0xff]
    %v1922 = vld [vmem:[#allocation8 + $0x150] sm:$0xff]
    %v1923 = vld [vmem:[#allocation8 + $0x158] sm:$0xff]
    %v1924 = vld [vmem:[#allocation8 + $0x160] sm:$0xff]
    %v1925 = vld [vmem:[#allocation8 + $0x168] sm:$0xff]
    %v1926 = vld [vmem:[#allocation8 + $0x170] sm:$0xff]
    %v1927 = vld [vmem:[#allocation8 + $0x178] sm:$0xff]
    %v1928 = vld [vmem:[#allocation8 + $0x180] sm:$0xff]
    %v1929 = vld [vmem:[#allocation8 + $0x188] sm:$0xff]
    %v1930 = vld [vmem:[#allocation8 + $0x190] sm:$0xff]
    %v1931 = vld [vmem:[#allocation8 + $0x198] sm:$0xff]
    %v1932 = vld [vmem:[#allocation8 + $0x1a0] sm:$0xff]
    %v1933 = vld [vmem:[#allocation8 + $0x1a8] sm:$0xff]
    %v1934 = vld [vmem:[#allocation8 + $0x1b0] sm:$0xff]
    %v1935 = vld [vmem:[#allocation8 + $0x1b8] sm:$0xff]
    %v1936 = vld [vmem:[#allocation8 + $0x1c0] sm:$0xff]
    %v1937 = vld [vmem:[#allocation8 + $0x1c8] sm:$0xff]
    %v1938 = vld [vmem:[#allocation8 + $0x1d0] sm:$0xff]
    %v1939 = vld [vmem:[#allocation8 + $0x1d8] sm:$0xff]
    %v1940 = vld [vmem:[#allocation8 + $0x1e0] sm:$0xff]
    %v1941 = vld [vmem:[#allocation8 + $0x1e8] sm:$0xff]
    %v1942 = vld [vmem:[#allocation8 + $0x1f0] sm:$0xff]
    %v1943 = vld [vmem:[#allocation8 + $0x1f8] sm:$0xff]
    %v1944 = vld [vmem:[%s6] sm:$0xf]
    %v1945 = vld [vmem:[#allocation2] sm:$0xff]
    %v1946 = vld [vmem:[#allocation2 + $0x8] sm:$0xff]
    %v1947 = vld [vmem:[#allocation2 + $0x10] sm:$0xff]
    %v1948 = vld [vmem:[#allocation2 + $0x18] sm:$0xff]
    %v1949 = vld [vmem:[#allocation2 + $0x20] sm:$0xff]
    %v1950 = vld [vmem:[#allocation2 + $0x28] sm:$0xff]
    %v1951 = vld [vmem:[#allocation2 + $0x30] sm:$0xff]
    %v1952 = vld [vmem:[#allocation2 + $0x38] sm:$0xff]
    %v1954 = vlaneseq
    %v1955 = vshrl.u32 %v1954, 7
    %v1956 = vsub.s32 0, %v1955
    %v1957 = vrot.slane %v1944, %v1956
    %v1958 = vlaneseq
    %v1959 = vshrl.u32 %v1958, 7
    %v1960 = vsub.s32 1, %v1959
    %v1961 = vrot.slane %v1944, %v1960
    %v1962 = vlaneseq
    %v1963 = vshrl.u32 %v1962, 7
    %v1964 = vsub.s32 2, %v1963
    %v1965 = vrot.slane %v1944, %v1964
    %v1966 = vlaneseq
    %v1967 = vshrl.u32 %v1966, 7
    %v1968 = vsub.s32 3, %v1967
    %v1969 = vrot.slane %v1944, %v1968
    %1974 = vmatprep.subr.mxu0 %v1877
    %1975 = vmatpush1.msra.mxu0 %v1876
    %1976 = vmatprep.subr.mxu0 %v1873
    %1977 = vmatpush1.msra.mxu0 %v1872
    %1978 = vmatprep.subr.mxu0 %v1869
    %1979 = vmatpush1.msra.mxu0 %v1868
    %1980 = vmatprep.subr.mxu0 %v1865
    %1981 = vmatpush1.msra.mxu0 %v1864
    %1982 = vmatprep.subr.mxu0 %v1861
    %1983 = vmatpush1.msra.mxu0 %v1860
    %1984 = vmatprep.subr.mxu0 %v1857
    %1985 = vmatpush1.msra.mxu0 %v1856
    %1986 = vmatprep.subr.mxu0 %v1853
    %1987 = vmatpush1.msra.mxu0 %v1852
    %1988 = vmatprep.subr.mxu0 %v1849
    %1989 = vmatpush1.msra.mxu0 %v1848
    %1990 = vmatprep.subr.mxu0 %v1845
    %1991 = vmatpush1.msra.mxu0 %v1844
    %1992 = vmatprep.subr.mxu0 %v1841
    %1993 = vmatpush1.msra.mxu0 %v1840
    %1994 = vmatprep.subr.mxu0 %v1837
    %1995 = vmatpush1.msra.mxu0 %v1836
    %1996 = vmatprep.subr.mxu0 %v1833
    %1997 = vmatpush1.msra.mxu0 %v1832
    %1998 = vmatprep.subr.mxu0 %v1829
    %1999 = vmatpush1.msra.mxu0 %v1828
    %2000 = vmatprep.subr.mxu0 %v1825
    %2001 = vmatpush1.msra.mxu0 %v1824
    %2002 = vmatprep.subr.mxu0 %v1821
    %2003 = vmatpush1.msra.mxu0 %v1820
    %2004 = vmatprep.subr.mxu0 %v1817
    %2005 = vmatpush1.msra.mxu0 %v1816
    %2006 = vmatprep.subr.mxu0 0.0
    %2007 = vmatpush2.msra.mxu0 0.0
    %2008 = vmatprep.subr.mxu0 0.0
    %2009 = vmatpush2.msra.mxu0 0.0
    %2010 = vmatprep.subr.mxu0 0.0
    %2011 = vmatpush2.msra.mxu0 0.0
    %2012 = vmatprep.subr.mxu0 0.0
    %2013 = vmatpush2.msra.mxu0 0.0
    %2014 = vmatprep.subr.mxu0 0.0
    %2015 = vmatpush2.msra.mxu0 0.0
    %2016 = vmatprep.subr.mxu0 0.0
    %2017 = vmatpush2.msra.mxu0 0.0
    %2018 = vmatprep.subr.mxu0 0.0
    %2019 = vmatpush2.msra.mxu0 0.0
    %2020 = vmatprep.subr.mxu0 0.0
    %2021 = vmatpush2.msra.mxu0 0.0
    %2022 = vmatprep.subr.mxu0 0.0
    %2023 = vmatpush2.msra.mxu0 0.0
    %2024 = vmatprep.subr.mxu0 0.0
    %2025 = vmatpush2.msra.mxu0 0.0
    %2026 = vmatprep.subr.mxu0 0.0
    %2027 = vmatpush2.msra.mxu0 0.0
    %2028 = vmatprep.subr.mxu0 0.0
    %2029 = vmatpush2.msra.mxu0 0.0
    %2030 = vmatprep.subr.mxu0 0.0
    %2031 = vmatpush2.msra.mxu0 0.0
    %2032 = vmatprep.subr.mxu0 0.0
    %2033 = vmatpush2.msra.mxu0 0.0
    %2034 = vmatprep.subr.mxu0 0.0
    %2035 = vmatpush2.msra.mxu0 0.0
    %2036 = vmatprep.subr.mxu0 0.0
    %2037 = vmatpush2.msra.mxu0 0.0
    %2038 = vmatprep.mubr.f32.mxu0 0.0
    %2039 = vmatmul.mubr.f32.gmra.mxu0 %v1945
    %v2040 = vpop.f32.mrf.mxu0
    %v2041 = vadd.f32 %v1957, %v2040
    %v2042 = vpop.f32.mrf.mxu0
    %v2043 = vadd.f32 %v1961, %v2042
    %2044 = vmatprep.mubr.f32.mxu0 0.0
    %2045 = vmatmul.mubr.f32.gmra.mxu0 %v1946
    %v2046 = vpop.f32.mrf.mxu0
    %v2047 = vadd.f32 %v1957, %v2046
    %v2048 = vpop.f32.mrf.mxu0
    %v2049 = vadd.f32 %v1961, %v2048
    %2050 = vmatprep.mubr.f32.mxu0 0.0
    %2051 = vmatmul.mubr.f32.gmra.mxu0 %v1947
    %v2052 = vpop.f32.mrf.mxu0
    %v2053 = vadd.f32 %v1957, %v2052
    %v2054 = vpop.f32.mrf.mxu0
    %v2055 = vadd.f32 %v1961, %v2054
    %2056 = vmatprep.mubr.f32.mxu0 0.0
    %2057 = vmatmul.mubr.f32.gmra.mxu0 %v1948
    %v2058 = vpop.f32.mrf.mxu0
    %v2059 = vadd.f32 %v1957, %v2058
    %v2060 = vpop.f32.mrf.mxu0
    %v2061 = vadd.f32 %v1961, %v2060
    %2062 = vmatprep.mubr.f32.mxu0 0.0
    %2063 = vmatmul.mubr.f32.gmra.mxu0 %v1949
    %v2064 = vpop.f32.mrf.mxu0
    %v2065 = vadd.f32 %v1957, %v2064
    %v2066 = vpop.f32.mrf.mxu0
    %v2067 = vadd.f32 %v1961, %v2066
    %2068 = vmatprep.mubr.f32.mxu0 0.0
    %2069 = vmatmul.mubr.f32.gmra.mxu0 %v1950
    %v2070 = vpop.f32.mrf.mxu0
    %v2071 = vadd.f32 %v1957, %v2070
    %v2072 = vpop.f32.mrf.mxu0
    %v2073 = vadd.f32 %v1961, %v2072
    %2074 = vmatprep.mubr.f32.mxu0 0.0
    %2075 = vmatmul.mubr.f32.gmra.mxu0 %v1951
    %v2076 = vpop.f32.mrf.mxu0
    %v2077 = vadd.f32 %v1957, %v2076
    %v2078 = vpop.f32.mrf.mxu0
    %v2079 = vadd.f32 %v1961, %v2078
    %2080 = vmatprep.mubr.f32.mxu0 0.0
    %2081 = vmatmul.mubr.f32.gmra.mxu0 %v1952
    %v2082 = vpop.f32.mrf.mxu0
    %v2083 = vadd.f32 %v1957, %v2082
    %v2084 = vpop.f32.mrf.mxu0
    %v2085 = vadd.f32 %v1961, %v2084
    %2086 = vdwg.mxu0
    %2087 = vmatprep.subr.mxu0 %v1879
    %2088 = vmatpush1.msra.mxu0 %v1878
    %2089 = vmatprep.subr.mxu0 %v1875
    %2090 = vmatpush1.msra.mxu0 %v1874
    %2091 = vmatprep.subr.mxu0 %v1871
    %2092 = vmatpush1.msra.mxu0 %v1870
    %2093 = vmatprep.subr.mxu0 %v1867
    %2094 = vmatpush1.msra.mxu0 %v1866
    %2095 = vmatprep.subr.mxu0 %v1863
    %2096 = vmatpush1.msra.mxu0 %v1862
    %2097 = vmatprep.subr.mxu0 %v1859
    %2098 = vmatpush1.msra.mxu0 %v1858
    %2099 = vmatprep.subr.mxu0 %v1855
    %2100 = vmatpush1.msra.mxu0 %v1854
    %2101 = vmatprep.subr.mxu0 %v1851
    %2102 = vmatpush1.msra.mxu0 %v1850
    %2103 = vmatprep.subr.mxu0 %v1847
    %2104 = vmatpush1.msra.mxu0 %v1846
    %2105 = vmatprep.subr.mxu0 %v1843
    %2106 = vmatpush1.msra.mxu0 %v1842
    %2107 = vmatprep.subr.mxu0 %v1839
    %2108 = vmatpush1.msra.mxu0 %v1838
    %2109 = vmatprep.subr.mxu0 %v1835
    %2110 = vmatpush1.msra.mxu0 %v1834
    %2111 = vmatprep.subr.mxu0 %v1831
    %2112 = vmatpush1.msra.mxu0 %v1830
    %2113 = vmatprep.subr.mxu0 %v1827
    %2114 = vmatpush1.msra.mxu0 %v1826
    %2115 = vmatprep.subr.mxu0 %v1823
    %2116 = vmatpush1.msra.mxu0 %v1822
    %2117 = vmatprep.subr.mxu0 %v1819
    %2118 = vmatpush1.msra.mxu0 %v1818
    %2119 = vmatprep.subr.mxu0 0.0
    %2120 = vmatpush2.msra.mxu0 0.0
    %2121 = vmatprep.subr.mxu0 0.0
    %2122 = vmatpush2.msra.mxu0 0.0
    %2123 = vmatprep.subr.mxu0 0.0
    %2124 = vmatpush2.msra.mxu0 0.0
    %2125 = vmatprep.subr.mxu0 0.0
    %2126 = vmatpush2.msra.mxu0 0.0
    %2127 = vmatprep.subr.mxu0 0.0
    %2128 = vmatpush2.msra.mxu0 0.0
    %2129 = vmatprep.subr.mxu0 0.0
    %2130 = vmatpush2.msra.mxu0 0.0
    %2131 = vmatprep.subr.mxu0 0.0
    %2132 = vmatpush2.msra.mxu0 0.0
    %2133 = vmatprep.subr.mxu0 0.0
    %2134 = vmatpush2.msra.mxu0 0.0
    %2135 = vmatprep.subr.mxu0 0.0
    %2136 = vmatpush2.msra.mxu0 0.0
    %2137 = vmatprep.subr.mxu0 0.0
    %2138 = vmatpush2.msra.mxu0 0.0
    %2139 = vmatprep.subr.mxu0 0.0
    %2140 = vmatpush2.msra.mxu0 0.0
    %2141 = vmatprep.subr.mxu0 0.0
    %2142 = vmatpush2.msra.mxu0 0.0
    %2143 = vmatprep.subr.mxu0 0.0
    %2144 = vmatpush2.msra.mxu0 0.0
    %2145 = vmatprep.subr.mxu0 0.0
    %2146 = vmatpush2.msra.mxu0 0.0
    %2147 = vmatprep.subr.mxu0 0.0
    %2148 = vmatpush2.msra.mxu0 0.0
    %2149 = vmatprep.subr.mxu0 0.0
    %2150 = vmatpush2.msra.mxu0 0.0
    %2151 = vmatprep.mubr.f32.mxu0 0.0
    %2152 = vmatmul.mubr.f32.gmra.mxu0 %v1945
    %v2153 = vpop.f32.mrf.mxu0
    %v2154 = vadd.f32 %v1965, %v2153
    %v2155 = vpop.f32.mrf.mxu0
    %v2156 = vadd.f32 %v1969, %v2155
    %2157 = vmatprep.mubr.f32.mxu0 0.0
    %2158 = vmatmul.mubr.f32.gmra.mxu0 %v1946
    %v2159 = vpop.f32.mrf.mxu0
    %v2160 = vadd.f32 %v1965, %v2159
    %v2161 = vpop.f32.mrf.mxu0
    %v2162 = vadd.f32 %v1969, %v2161
    %2163 = vmatprep.mubr.f32.mxu0 0.0
    %2164 = vmatmul.mubr.f32.gmra.mxu0 %v1947
    %v2165 = vpop.f32.mrf.mxu0
    %v2166 = vadd.f32 %v1965, %v2165
    %v2167 = vpop.f32.mrf.mxu0
    %v2168 = vadd.f32 %v1969, %v2167
    %2169 = vmatprep.mubr.f32.mxu0 0.0
    %2170 = vmatmul.mubr.f32.gmra.mxu0 %v1948
    %v2171 = vpop.f32.mrf.mxu0
    %v2172 = vadd.f32 %v1965, %v2171
    %v2173 = vpop.f32.mrf.mxu0
    %v2174 = vadd.f32 %v1969, %v2173
    %2175 = vmatprep.mubr.f32.mxu0 0.0
    %2176 = vmatmul.mubr.f32.gmra.mxu0 %v1949
    %v2177 = vpop.f32.mrf.mxu0
    %v2178 = vadd.f32 %v1965, %v2177
    %v2179 = vpop.f32.mrf.mxu0
    %v2180 = vadd.f32 %v1969, %v2179
    %2181 = vmatprep.mubr.f32.mxu0 0.0
    %2182 = vmatmul.mubr.f32.gmra.mxu0 %v1950
    %v2183 = vpop.f32.mrf.mxu0
    %v2184 = vadd.f32 %v1965, %v2183
    %v2185 = vpop.f32.mrf.mxu0
    %v2186 = vadd.f32 %v1969, %v2185
    %2187 = vmatprep.mubr.f32.mxu0 0.0
    %2188 = vmatmul.mubr.f32.gmra.mxu0 %v1951
    %v2189 = vpop.f32.mrf.mxu0
    %v2190 = vadd.f32 %v1965, %v2189
    %v2191 = vpop.f32.mrf.mxu0
    %v2192 = vadd.f32 %v1969, %v2191
    %2193 = vmatprep.mubr.f32.mxu0 0.0
    %2194 = vmatmul.mubr.f32.gmra.mxu0 %v1952
    %v2195 = vpop.f32.mrf.mxu0
    %v2196 = vadd.f32 %v1965, %v2195
    %v2197 = vpop.f32.mrf.mxu0
    %v2198 = vadd.f32 %v1969, %v2197
    %2199 = vdwg.mxu0
    %2200 = vmatprep.subr.mxu0 %v1941
    %2201 = vmatpush1.msra.mxu0 %v1940
    %2202 = vmatprep.subr.mxu0 %v1937
    %2203 = vmatpush1.msra.mxu0 %v1936
    %2204 = vmatprep.subr.mxu0 %v1933
    %2205 = vmatpush1.msra.mxu0 %v1932
    %2206 = vmatprep.subr.mxu0 %v1929
    %2207 = vmatpush1.msra.mxu0 %v1928
    %2208 = vmatprep.subr.mxu0 %v1925
    %2209 = vmatpush1.msra.mxu0 %v1924
    %2210 = vmatprep.subr.mxu0 %v1921
    %2211 = vmatpush1.msra.mxu0 %v1920
    %2212 = vmatprep.subr.mxu0 %v1917
    %2213 = vmatpush1.msra.mxu0 %v1916
    %2214 = vmatprep.subr.mxu0 %v1913
    %2215 = vmatpush1.msra.mxu0 %v1912
    %2216 = vmatprep.subr.mxu0 %v1909
    %2217 = vmatpush1.msra.mxu0 %v1908
    %2218 = vmatprep.subr.mxu0 %v1905
    %2219 = vmatpush1.msra.mxu0 %v1904
    %2220 = vmatprep.subr.mxu0 %v1901
    %2221 = vmatpush1.msra.mxu0 %v1900
    %2222 = vmatprep.subr.mxu0 %v1897
    %2223 = vmatpush1.msra.mxu0 %v1896
    %2224 = vmatprep.subr.mxu0 %v1893
    %2225 = vmatpush1.msra.mxu0 %v1892
    %2226 = vmatprep.subr.mxu0 %v1889
    %2227 = vmatpush1.msra.mxu0 %v1888
    %2228 = vmatprep.subr.mxu0 %v1885
    %2229 = vmatpush1.msra.mxu0 %v1884
    %2230 = vmatprep.subr.mxu0 %v1881
    %2231 = vmatpush1.msra.mxu0 %v1880
    %2232 = vmatprep.subr.mxu0 0.0
    %2233 = vmatpush2.msra.mxu0 0.0
    %2234 = vmatprep.subr.mxu0 0.0
    %2235 = vmatpush2.msra.mxu0 0.0
    %2236 = vmatprep.subr.mxu0 0.0
    %2237 = vmatpush2.msra.mxu0 0.0
    %2238 = vmatprep.subr.mxu0 0.0
    %2239 = vmatpush2.msra.mxu0 0.0
    %2240 = vmatprep.subr.mxu0 0.0
    %2241 = vmatpush2.msra.mxu0 0.0
    %2242 = vmatprep.subr.mxu0 0.0
    %2243 = vmatpush2.msra.mxu0 0.0
    %2244 = vmatprep.subr.mxu0 0.0
    %2245 = vmatpush2.msra.mxu0 0.0
    %2246 = vmatprep.subr.mxu0 0.0
    %2247 = vmatpush2.msra.mxu0 0.0
    %2248 = vmatprep.subr.mxu0 0.0
    %2249 = vmatpush2.msra.mxu0 0.0
    %2250 = vmatprep.subr.mxu0 0.0
    %2251 = vmatpush2.msra.mxu0 0.0
    %2252 = vmatprep.subr.mxu0 0.0
    %2253 = vmatpush2.msra.mxu0 0.0
    %2254 = vmatprep.subr.mxu0 0.0
    %2255 = vmatpush2.msra.mxu0 0.0
    %2256 = vmatprep.subr.mxu0 0.0
    %2257 = vmatpush2.msra.mxu0 0.0
    %2258 = vmatprep.subr.mxu0 0.0
    %2259 = vmatpush2.msra.mxu0 0.0
    %2260 = vmatprep.subr.mxu0 0.0
    %2261 = vmatpush2.msra.mxu0 0.0
    %2262 = vmatprep.subr.mxu0 0.0
    %2263 = vmatpush2.msra.mxu0 0.0
    %2264 = vmatprep.mubr.f32.mxu0 0.0
    %2265 = vmatmul.mubr.f32.gmra.mxu0 0.0
    %v2266 = vpop.f32.mrf.mxu0
    %v2267 = vadd.f32 0.0, %v2266
    %v2268 = vpop.f32.mrf.mxu0
    %v2269 = vadd.f32 0.0, %v2268
    %2270 = vdwg.mxu0
    %2271 = vmatprep.subr.mxu0 %v1943
    %2272 = vmatpush1.msra.mxu0 %v1942
    %2273 = vmatprep.subr.mxu0 %v1939
    %2274 = vmatpush1.msra.mxu0 %v1938
    %2275 = vmatprep.subr.mxu0 %v1935
    %2276 = vmatpush1.msra.mxu0 %v1934
    %2277 = vmatprep.subr.mxu0 %v1931
    %2278 = vmatpush1.msra.mxu0 %v1930
    %2279 = vmatprep.subr.mxu0 %v1927
    %2280 = vmatpush1.msra.mxu0 %v1926
    %2281 = vmatprep.subr.mxu0 %v1923
    %2282 = vmatpush1.msra.mxu0 %v1922
    %2283 = vmatprep.subr.mxu0 %v1919
    %2284 = vmatpush1.msra.mxu0 %v1918
    %2285 = vmatprep.subr.mxu0 %v1915
    %2286 = vmatpush1.msra.mxu0 %v1914
    %2287 = vmatprep.subr.mxu0 %v1911
    %2288 = vmatpush1.msra.mxu0 %v1910
    %2289 = vmatprep.subr.mxu0 %v1907
    %2290 = vmatpush1.msra.mxu0 %v1906
    %2291 = vmatprep.subr.mxu0 %v1903
    %2292 = vmatpush1.msra.mxu0 %v1902
    %2293 = vmatprep.subr.mxu0 %v1899
    %2294 = vmatpush1.msra.mxu0 %v1898
    %2295 = vmatprep.subr.mxu0 %v1895
    %2296 = vmatpush1.msra.mxu0 %v1894
    %2297 = vmatprep.subr.mxu0 %v1891
    %2298 = vmatpush1.msra.mxu0 %v1890
    %2299 = vmatprep.subr.mxu0 %v1887
    %2300 = vmatpush1.msra.mxu0 %v1886
    %2301 = vmatprep.subr.mxu0 %v1883
    %2302 = vmatpush1.msra.mxu0 %v1882
    %2303 = vmatprep.subr.mxu0 0.0
    %2304 = vmatpush2.msra.mxu0 0.0
    %2305 = vmatprep.subr.mxu0 0.0
    %2306 = vmatpush2.msra.mxu0 0.0
    %2307 = vmatprep.subr.mxu0 0.0
    %2308 = vmatpush2.msra.mxu0 0.0
    %2309 = vmatprep.subr.mxu0 0.0
    %2310 = vmatpush2.msra.mxu0 0.0
    %2311 = vmatprep.subr.mxu0 0.0
    %2312 = vmatpush2.msra.mxu0 0.0
    %2313 = vmatprep.subr.mxu0 0.0
    %2314 = vmatpush2.msra.mxu0 0.0
    %2315 = vmatprep.subr.mxu0 0.0
    %2316 = vmatpush2.msra.mxu0 0.0
    %2317 = vmatprep.subr.mxu0 0.0
    %2318 = vmatpush2.msra.mxu0 0.0
    %2319 = vmatprep.subr.mxu0 0.0
    %2320 = vmatpush2.msra.mxu0 0.0
    %2321 = vmatprep.subr.mxu0 0.0
    %2322 = vmatpush2.msra.mxu0 0.0
    %2323 = vmatprep.subr.mxu0 0.0
    %2324 = vmatpush2.msra.mxu0 0.0
    %2325 = vmatprep.subr.mxu0 0.0
    %2326 = vmatpush2.msra.mxu0 0.0
    %2327 = vmatprep.subr.mxu0 0.0
    %2328 = vmatpush2.msra.mxu0 0.0
    %2329 = vmatprep.subr.mxu0 0.0
    %2330 = vmatpush2.msra.mxu0 0.0
    %2331 = vmatprep.subr.mxu0 0.0
    %2332 = vmatpush2.msra.mxu0 0.0
    %2333 = vmatprep.subr.mxu0 0.0
    %2334 = vmatpush2.msra.mxu0 0.0
    %2335 = vmatprep.mubr.f32.mxu0 0.0
    %2336 = vmatmul.mubr.f32.gmra.mxu0 0.0
    %v2337 = vpop.f32.mrf.mxu0
    %v2338 = vadd.f32 0.0, %v2337
    %v2339 = vpop.f32.mrf.mxu0
    %v2340 = vadd.f32 0.0, %v2339
    %2341 = vdwg.mxu0
    %v2342 = vadd.f32 %v2041, %v2267
    %v2343 = vadd.f32 %v2043, %v2269
    %v2344 = vadd.f32 %v2154, %v2338
    %v2345 = vadd.f32 %v2156, %v2340
    %v2346 = vxor.u32 %v2342, 2147483648
    %v2347 = vxor.u32 %v2343, 2147483648
    %v2348 = vxor.u32 %v2344, 2147483648
    %v2349 = vmul.f32 %v2346, 1.442695
    %v2350 = vpow.pop %v2349
    %v2351 = vmul.f32 %v2347, 1.442695
    %v2352 = vpow.pop %v2351
    %v2353 = vmul.f32 %v2348, 1.442695
    %v2354 = vpow.pop %v2353
    %v2355 = vadd.f32 %v2350, 1.0
    %v2356 = vadd.f32 %v2352, 1.0
    %v2357 = vadd.f32 %v2354, 1.0
    %v2358 = vrcp.pop %v2355
    %v2359 = vmul.f32 1.0, %v2358
    %v2360 = vrcp.pop %v2356
    %v2361 = vmul.f32 1.0, %v2360
    %v2362 = vrcp.pop %v2357
    %v2363 = vmul.f32 1.0, %v2362
    %v2364 = vtanh.pop %v2345
    %v2365 = vmul.f32 %v2361, 0.0
    %v2366 = vmul.f32 %v2359, %v2364
    %v2367 = vadd.f32 %v2365, %v2366
    %v2368 = vtanh.pop %v2367
    %v2369 = vmul.f32 %v2363, %v2368
    %2370 = vmatprep.subr.mxu0 %v1941
    %2371 = vmatpush1.msra.mxu0 %v1940
    %2372 = vmatprep.subr.mxu0 %v1937
    %2373 = vmatpush1.msra.mxu0 %v1936
    %2374 = vmatprep.subr.mxu0 %v1933
    %2375 = vmatpush1.msra.mxu0 %v1932
    %2376 = vmatprep.subr.mxu0 %v1929
    %2377 = vmatpush1.msra.mxu0 %v1928
    %2378 = vmatprep.subr.mxu0 %v1925
    %2379 = vmatpush1.msra.mxu0 %v1924
    %2380 = vmatprep.subr.mxu0 %v1921
    %2381 = vmatpush1.msra.mxu0 %v1920
    %2382 = vmatprep.subr.mxu0 %v1917
    %2383 = vmatpush1.msra.mxu0 %v1916
    %2384 = vmatprep.subr.mxu0 %v1913
    %2385 = vmatpush1.msra.mxu0 %v1912
    %2386 = vmatprep.subr.mxu0 %v1909
    %2387 = vmatpush1.msra.mxu0 %v1908
    %2388 = vmatprep.subr.mxu0 %v1905
    %2389 = vmatpush1.msra.mxu0 %v1904
    %2390 = vmatprep.subr.mxu0 %v1901
    %2391 = vmatpush1.msra.mxu0 %v1900
    %2392 = vmatprep.subr.mxu0 %v1897
    %2393 = vmatpush1.msra.mxu0 %v1896
    %2394 = vmatprep.subr.mxu0 %v1893
    %2395 = vmatpush1.msra.mxu0 %v1892
    %2396 = vmatprep.subr.mxu0 %v1889
    %2397 = vmatpush1.msra.mxu0 %v1888
    %2398 = vmatprep.subr.mxu0 %v1885
    %2399 = vmatpush1.msra.mxu0 %v1884
    %2400 = vmatprep.subr.mxu0 %v1881
    %2401 = vmatpush1.msra.mxu0 %v1880
    %2402 = vmatprep.subr.mxu0 0.0
    %2403 = vmatpush2.msra.mxu0 0.0
    %2404 = vmatprep.subr.mxu0 0.0
    %2405 = vmatpush2.msra.mxu0 0.0
    %2406 = vmatprep.subr.mxu0 0.0
    %2407 = vmatpush2.msra.mxu0 0.0
    %2408 = vmatprep.subr.mxu0 0.0
    %2409 = vmatpush2.msra.mxu0 0.0
    %2410 = vmatprep.subr.mxu0 0.0
    %2411 = vmatpush2.msra.mxu0 0.0
    %2412 = vmatprep.subr.mxu0 0.0
    %2413 = vmatpush2.msra.mxu0 0.0
    %2414 = vmatprep.subr.mxu0 0.0
    %2415 = vmatpush2.msra.mxu0 0.0
    %2416 = vmatprep.subr.mxu0 0.0
    %2417 = vmatpush2.msra.mxu0 0.0
    %2418 = vmatprep.subr.mxu0 0.0
    %2419 = vmatpush2.msra.mxu0 0.0
    %2420 = vmatprep.subr.mxu0 0.0
    %2421 = vmatpush2.msra.mxu0 0.0
    %2422 = vmatprep.subr.mxu0 0.0
    %2423 = vmatpush2.msra.mxu0 0.0
    %2424 = vmatprep.subr.mxu0 0.0
    %2425 = vmatpush2.msra.mxu0 0.0
    %2426 = vmatprep.subr.mxu0 0.0
    %2427 = vmatpush2.msra.mxu0 0.0
    %2428 = vmatprep.subr.mxu0 0.0
    %2429 = vmatpush2.msra.mxu0 0.0
    %2430 = vmatprep.subr.mxu0 0.0
    %2431 = vmatpush2.msra.mxu0 0.0
    %2432 = vmatprep.subr.mxu0 0.0
    %2433 = vmatpush2.msra.mxu0 0.0
    %2434 = vmatprep.mubr.f32.mxu0 0.0
    %2435 = vmatmul.mubr.f32.gmra.mxu0 %v2369
    %v2436 = vpop.f32.mrf.mxu0
    %v2437 = vadd.f32 0.0, %v2436
    %v2438 = vpop.f32.mrf.mxu0
    %v2439 = vadd.f32 0.0, %v2438
    %2440 = vdwg.mxu0
    %2441 = vmatprep.subr.mxu0 %v1943
    %2442 = vmatpush1.msra.mxu0 %v1942
    %2443 = vmatprep.subr.mxu0 %v1939
    %2444 = vmatpush1.msra.mxu0 %v1938
    %2445 = vmatprep.subr.mxu0 %v1935
    %2446 = vmatpush1.msra.mxu0 %v1934
    %2447 = vmatprep.subr.mxu0 %v1931
    %2448 = vmatpush1.msra.mxu0 %v1930
    %2449 = vmatprep.subr.mxu0 %v1927
    %2450 = vmatpush1.msra.mxu0 %v1926
    %2451 = vmatprep.subr.mxu0 %v1923
    %2452 = vmatpush1.msra.mxu0 %v1922
    %2453 = vmatprep.subr.mxu0 %v1919
    %2454 = vmatpush1.msra.mxu0 %v1918
    %2455 = vmatprep.subr.mxu0 %v1915
    %2456 = vmatpush1.msra.mxu0 %v1914
    %2457 = vmatprep.subr.mxu0 %v1911
    %2458 = vmatpush1.msra.mxu0 %v1910
    %2459 = vmatprep.subr.mxu0 %v1907
    %2460 = vmatpush1.msra.mxu0 %v1906
    %2461 = vmatprep.subr.mxu0 %v1903
    %2462 = vmatpush1.msra.mxu0 %v1902
    %2463 = vmatprep.subr.mxu0 %v1899
    %2464 = vmatpush1.msra.mxu0 %v1898
    %2465 = vmatprep.subr.mxu0 %v1895
    %2466 = vmatpush1.msra.mxu0 %v1894
    %2467 = vmatprep.subr.mxu0 %v1891
    %2468 = vmatpush1.msra.mxu0 %v1890
    %2469 = vmatprep.subr.mxu0 %v1887
    %2470 = vmatpush1.msra.mxu0 %v1886
    %2471 = vmatprep.subr.mxu0 %v1883
    %2472 = vmatpush1.msra.mxu0 %v1882
    %2473 = vmatprep.subr.mxu0 0.0
    %2474 = vmatpush2.msra.mxu0 0.0
    %2475 = vmatprep.subr.mxu0 0.0
    %2476 = vmatpush2.msra.mxu0 0.0
    %2477 = vmatprep.subr.mxu0 0.0
    %2478 = vmatpush2.msra.mxu0 0.0
    %2479 = vmatprep.subr.mxu0 0.0
    %2480 = vmatpush2.msra.mxu0 0.0
    %2481 = vmatprep.subr.mxu0 0.0
    %2482 = vmatpush2.msra.mxu0 0.0
    %2483 = vmatprep.subr.mxu0 0.0
    %2484 = vmatpush2.msra.mxu0 0.0
    %2485 = vmatprep.subr.mxu0 0.0
    %2486 = vmatpush2.msra.mxu0 0.0
    %2487 = vmatprep.subr.mxu0 0.0
    %2488 = vmatpush2.msra.mxu0 0.0
    %2489 = vmatprep.subr.mxu0 0.0
    %2490 = vmatpush2.msra.mxu0 0.0
    %2491 = vmatprep.subr.mxu0 0.0
    %2492 = vmatpush2.msra.mxu0 0.0
    %2493 = vmatprep.subr.mxu0 0.0
    %2494 = vmatpush2.msra.mxu0 0.0
    %2495 = vmatprep.subr.mxu0 0.0
    %2496 = vmatpush2.msra.mxu0 0.0
    %2497 = vmatprep.subr.mxu0 0.0
    %2498 = vmatpush2.msra.mxu0 0.0
    %2499 = vmatprep.subr.mxu0 0.0
    %2500 = vmatpush2.msra.mxu0 0.0
    %2501 = vmatprep.subr.mxu0 0.0
    %2502 = vmatpush2.msra.mxu0 0.0
    %2503 = vmatprep.subr.mxu0 0.0
    %2504 = vmatpush2.msra.mxu0 0.0
    %2505 = vmatprep.mubr.f32.mxu0 0.0
    %2506 = vmatmul.mubr.f32.gmra.mxu0 %v2369
    %v2507 = vpop.f32.mrf.mxu0
    %v2508 = vadd.f32 0.0, %v2507
    %v2509 = vpop.f32.mrf.mxu0
    %v2510 = vadd.f32 0.0, %v2509
    %2511 = vdwg.mxu0
    %v2512 = vadd.f32 %v2047, %v2437
    %v2513 = vadd.f32 %v2049, %v2439
    %v2514 = vadd.f32 %v2160, %v2508
    %v2515 = vadd.f32 %v2162, %v2510
    %v2516 = vxor.u32 %v2512, 2147483648
    %v2517 = vxor.u32 %v2513, 2147483648
    %v2518 = vxor.u32 %v2514, 2147483648
    %v2519 = vmul.f32 %v2516, 1.442695
    %v2520 = vpow.pop %v2519
    %v2521 = vmul.f32 %v2517, 1.442695
    %v2522 = vpow.pop %v2521
    %v2523 = vmul.f32 %v2518, 1.442695
    %v2524 = vpow.pop %v2523
    %v2525 = vadd.f32 %v2520, 1.0
    %v2526 = vadd.f32 %v2522, 1.0
    %v2527 = vadd.f32 %v2524, 1.0
    %v2528 = vrcp.pop %v2525
    %v2529 = vmul.f32 1.0, %v2528
    %v2530 = vrcp.pop %v2526
    %v2531 = vmul.f32 1.0, %v2530
    %v2532 = vrcp.pop %v2527
    %v2533 = vmul.f32 1.0, %v2532
    %v2534 = vtanh.pop %v2515
    %v2535 = vmul.f32 %v2531, %v2367
    %v2536 = vmul.f32 %v2529, %v2534
    %v2537 = vadd.f32 %v2535, %v2536
    %v2538 = vtanh.pop %v2537
    %v2539 = vmul.f32 %v2533, %v2538
    %2540 = vmatprep.subr.mxu0 %v1941
    %2541 = vmatpush1.msra.mxu0 %v1940
    %2542 = vmatprep.subr.mxu0 %v1937
    %2543 = vmatpush1.msra.mxu0 %v1936
    %2544 = vmatprep.subr.mxu0 %v1933
    %2545 = vmatpush1.msra.mxu0 %v1932
    %2546 = vmatprep.subr.mxu0 %v1929
    %2547 = vmatpush1.msra.mxu0 %v1928
    %2548 = vmatprep.subr.mxu0 %v1925
    %2549 = vmatpush1.msra.mxu0 %v1924
    %2550 = vmatprep.subr.mxu0 %v1921
    %2551 = vmatpush1.msra.mxu0 %v1920
    %2552 = vmatprep.subr.mxu0 %v1917
    %2553 = vmatpush1.msra.mxu0 %v1916
    %2554 = vmatprep.subr.mxu0 %v1913
    %2555 = vmatpush1.msra.mxu0 %v1912
    %2556 = vmatprep.subr.mxu0 %v1909
    %2557 = vmatpush1.msra.mxu0 %v1908
    %2558 = vmatprep.subr.mxu0 %v1905
    %2559 = vmatpush1.msra.mxu0 %v1904
    %2560 = vmatprep.subr.mxu0 %v1901
    %2561 = vmatpush1.msra.mxu0 %v1900
    %2562 = vmatprep.subr.mxu0 %v1897
    %2563 = vmatpush1.msra.mxu0 %v1896
    %2564 = vmatprep.subr.mxu0 %v1893
    %2565 = vmatpush1.msra.mxu0 %v1892
    %2566 = vmatprep.subr.mxu0 %v1889
    %2567 = vmatpush1.msra.mxu0 %v1888
    %2568 = vmatprep.subr.mxu0 %v1885
    %2569 = vmatpush1.msra.mxu0 %v1884
    %2570 = vmatprep.subr.mxu0 %v1881
    %2571 = vmatpush1.msra.mxu0 %v1880
    %2572 = vmatprep.subr.mxu0 0.0
    %2573 = vmatpush2.msra.mxu0 0.0
    %2574 = vmatprep.subr.mxu0 0.0
    %2575 = vmatpush2.msra.mxu0 0.0
    %2576 = vmatprep.subr.mxu0 0.0
    %2577 = vmatpush2.msra.mxu0 0.0
    %2578 = vmatprep.subr.mxu0 0.0
    %2579 = vmatpush2.msra.mxu0 0.0
    %2580 = vmatprep.subr.mxu0 0.0
    %2581 = vmatpush2.msra.mxu0 0.0
    %2582 = vmatprep.subr.mxu0 0.0
    %2583 = vmatpush2.msra.mxu0 0.0
    %2584 = vmatprep.subr.mxu0 0.0
    %2585 = vmatpush2.msra.mxu0 0.0
    %2586 = vmatprep.subr.mxu0 0.0
    %2587 = vmatpush2.msra.mxu0 0.0
    %2588 = vmatprep.subr.mxu0 0.0
    %2589 = vmatpush2.msra.mxu0 0.0
    %2590 = vmatprep.subr.mxu0 0.0
    %2591 = vmatpush2.msra.mxu0 0.0
    %2592 = vmatprep.subr.mxu0 0.0
    %2593 = vmatpush2.msra.mxu0 0.0
    %2594 = vmatprep.subr.mxu0 0.0
    %2595 = vmatpush2.msra.mxu0 0.0
    %2596 = vmatprep.subr.mxu0 0.0
    %2597 = vmatpush2.msra.mxu0 0.0
    %2598 = vmatprep.subr.mxu0 0.0
    %2599 = vmatpush2.msra.mxu0 0.0
    %2600 = vmatprep.subr.mxu0 0.0
    %2601 = vmatpush2.msra.mxu0 0.0
    %2602 = vmatprep.subr.mxu0 0.0
    %2603 = vmatpush2.msra.mxu0 0.0
    %2604 = vmatprep.mubr.f32.mxu0 0.0
    %2605 = vmatmul.mubr.f32.gmra.mxu0 %v2539
    %v2606 = vpop.f32.mrf.mxu0
    %v2607 = vadd.f32 0.0, %v2606
    %v2608 = vpop.f32.mrf.mxu0
    %v2609 = vadd.f32 0.0, %v2608
    %2610 = vdwg.mxu0
    %2611 = vmatprep.subr.mxu0 %v1943
    %2612 = vmatpush1.msra.mxu0 %v1942
    %2613 = vmatprep.subr.mxu0 %v1939
    %2614 = vmatpush1.msra.mxu0 %v1938
    %2615 = vmatprep.subr.mxu0 %v1935
    %2616 = vmatpush1.msra.mxu0 %v1934
    %2617 = vmatprep.subr.mxu0 %v1931
    %2618 = vmatpush1.msra.mxu0 %v1930
    %2619 = vmatprep.subr.mxu0 %v1927
    %2620 = vmatpush1.msra.mxu0 %v1926
    %2621 = vmatprep.subr.mxu0 %v1923
    %2622 = vmatpush1.msra.mxu0 %v1922
    %2623 = vmatprep.subr.mxu0 %v1919
    %2624 = vmatpush1.msra.mxu0 %v1918
    %2625 = vmatprep.subr.mxu0 %v1915
    %2626 = vmatpush1.msra.mxu0 %v1914
    %2627 = vmatprep.subr.mxu0 %v1911
    %2628 = vmatpush1.msra.mxu0 %v1910
    %2629 = vmatprep.subr.mxu0 %v1907
    %2630 = vmatpush1.msra.mxu0 %v1906
    %2631 = vmatprep.subr.mxu0 %v1903
    %2632 = vmatpush1.msra.mxu0 %v1902
    %2633 = vmatprep.subr.mxu0 %v1899
    %2634 = vmatpush1.msra.mxu0 %v1898
    %2635 = vmatprep.subr.mxu0 %v1895
    %2636 = vmatpush1.msra.mxu0 %v1894
    %2637 = vmatprep.subr.mxu0 %v1891
    %2638 = vmatpush1.msra.mxu0 %v1890
    %2639 = vmatprep.subr.mxu0 %v1887
    %2640 = vmatpush1.msra.mxu0 %v1886
    %2641 = vmatprep.subr.mxu0 %v1883
    %2642 = vmatpush1.msra.mxu0 %v1882
    %2643 = vmatprep.subr.mxu0 0.0
    %2644 = vmatpush2.msra.mxu0 0.0
    %2645 = vmatprep.subr.mxu0 0.0
    %2646 = vmatpush2.msra.mxu0 0.0
    %2647 = vmatprep.subr.mxu0 0.0
    %2648 = vmatpush2.msra.mxu0 0.0
    %2649 = vmatprep.subr.mxu0 0.0
    %2650 = vmatpush2.msra.mxu0 0.0
    %2651 = vmatprep.subr.mxu0 0.0
    %2652 = vmatpush2.msra.mxu0 0.0
    %2653 = vmatprep.subr.mxu0 0.0
    %2654 = vmatpush2.msra.mxu0 0.0
    %2655 = vmatprep.subr.mxu0 0.0
    %2656 = vmatpush2.msra.mxu0 0.0
    %2657 = vmatprep.subr.mxu0 0.0
    %2658 = vmatpush2.msra.mxu0 0.0
    %2659 = vmatprep.subr.mxu0 0.0
    %2660 = vmatpush2.msra.mxu0 0.0
    %2661 = vmatprep.subr.mxu0 0.0
    %2662 = vmatpush2.msra.mxu0 0.0
    %2663 = vmatprep.subr.mxu0 0.0
    %2664 = vmatpush2.msra.mxu0 0.0
    %2665 = vmatprep.subr.mxu0 0.0
    %2666 = vmatpush2.msra.mxu0 0.0
    %2667 = vmatprep.subr.mxu0 0.0
    %2668 = vmatpush2.msra.mxu0 0.0
    %2669 = vmatprep.subr.mxu0 0.0
    %2670 = vmatpush2.msra.mxu0 0.0
    %2671 = vmatprep.subr.mxu0 0.0
    %2672 = vmatpush2.msra.mxu0 0.0
    %2673 = vmatprep.subr.mxu0 0.0
    %2674 = vmatpush2.msra.mxu0 0.0
    %2675 = vmatprep.mubr.f32.mxu0 0.0
    %2676 = vmatmul.mubr.f32.gmra.mxu0 %v2539
    %v2677 = vpop.f32.mrf.mxu0
    %v2678 = vadd.f32 0.0, %v2677
    %v2679 = vpop.f32.mrf.mxu0
    %v2680 = vadd.f32 0.0, %v2679
    %2681 = vdwg.mxu0
    %v2682 = vadd.f32 %v2053, %v2607
    %v2683 = vadd.f32 %v2055, %v2609
    %v2684 = vadd.f32 %v2166, %v2678
    %v2685 = vadd.f32 %v2168, %v2680
    %v2686 = vxor.u32 %v2682, 2147483648
    %v2687 = vxor.u32 %v2683, 2147483648
    %v2688 = vxor.u32 %v2684, 2147483648
    %v2689 = vmul.f32 %v2686, 1.442695
    %v2690 = vpow.pop %v2689
    %v2691 = vmul.f32 %v2687, 1.442695
    %v2692 = vpow.pop %v2691
    %v2693 = vmul.f32 %v2688, 1.442695
    %v2694 = vpow.pop %v2693
    %v2695 = vadd.f32 %v2690, 1.0
    %v2696 = vadd.f32 %v2692, 1.0
    %v2697 = vadd.f32 %v2694, 1.0
    %v2698 = vrcp.pop %v2695
    %v2699 = vmul.f32 1.0, %v2698
    %v2700 = vrcp.pop %v2696
    %v2701 = vmul.f32 1.0, %v2700
    %v2702 = vrcp.pop %v2697
    %v2703 = vmul.f32 1.0, %v2702
    %v2704 = vtanh.pop %v2685
    %v2705 = vmul.f32 %v2701, %v2537
    %v2706 = vmul.f32 %v2699, %v2704
    %v2707 = vadd.f32 %v2705, %v2706
    %v2708 = vtanh.pop %v2707
    %v2709 = vmul.f32 %v2703, %v2708
    %2710 = vmatprep.subr.mxu0 %v1941
    %2711 = vmatpush1.msra.mxu0 %v1940
    %2712 = vmatprep.subr.mxu0 %v1937
    %2713 = vmatpush1.msra.mxu0 %v1936
    %2714 = vmatprep.subr.mxu0 %v1933
    %2715 = vmatpush1.msra.mxu0 %v1932
    %2716 = vmatprep.subr.mxu0 %v1929
    %2717 = vmatpush1.msra.mxu0 %v1928
    %2718 = vmatprep.subr.mxu0 %v1925
    %2719 = vmatpush1.msra.mxu0 %v1924
    %2720 = vmatprep.subr.mxu0 %v1921
    %2721 = vmatpush1.msra.mxu0 %v1920
    %2722 = vmatprep.subr.mxu0 %v1917
    %2723 = vmatpush1.msra.mxu0 %v1916
    %2724 = vmatprep.subr.mxu0 %v1913
    %2725 = vmatpush1.msra.mxu0 %v1912
    %2726 = vmatprep.subr.mxu0 %v1909
    %2727 = vmatpush1.msra.mxu0 %v1908
    %2728 = vmatprep.subr.mxu0 %v1905
    %2729 = vmatpush1.msra.mxu0 %v1904
    %2730 = vmatprep.subr.mxu0 %v1901
    %2731 = vmatpush1.msra.mxu0 %v1900
    %2732 = vmatprep.subr.mxu0 %v1897
    %2733 = vmatpush1.msra.mxu0 %v1896
    %2734 = vmatprep.subr.mxu0 %v1893
    %2735 = vmatpush1.msra.mxu0 %v1892
    %2736 = vmatprep.subr.mxu0 %v1889
    %2737 = vmatpush1.msra.mxu0 %v1888
    %2738 = vmatprep.subr.mxu0 %v1885
    %2739 = vmatpush1.msra.mxu0 %v1884
    %2740 = vmatprep.subr.mxu0 %v1881
    %2741 = vmatpush1.msra.mxu0 %v1880
    %2742 = vmatprep.subr.mxu0 0.0
    %2743 = vmatpush2.msra.mxu0 0.0
    %2744 = vmatprep.subr.mxu0 0.0
    %2745 = vmatpush2.msra.mxu0 0.0
    %2746 = vmatprep.subr.mxu0 0.0
    %2747 = vmatpush2.msra.mxu0 0.0
    %2748 = vmatprep.subr.mxu0 0.0
    %2749 = vmatpush2.msra.mxu0 0.0
    %2750 = vmatprep.subr.mxu0 0.0
    %2751 = vmatpush2.msra.mxu0 0.0
    %2752 = vmatprep.subr.mxu0 0.0
    %2753 = vmatpush2.msra.mxu0 0.0
    %2754 = vmatprep.subr.mxu0 0.0
    %2755 = vmatpush2.msra.mxu0 0.0
    %2756 = vmatprep.subr.mxu0 0.0
    %2757 = vmatpush2.msra.mxu0 0.0
    %2758 = vmatprep.subr.mxu0 0.0
    %2759 = vmatpush2.msra.mxu0 0.0
    %2760 = vmatprep.subr.mxu0 0.0
    %2761 = vmatpush2.msra.mxu0 0.0
    %2762 = vmatprep.subr.mxu0 0.0
    %2763 = vmatpush2.msra.mxu0 0.0
    %2764 = vmatprep.subr.mxu0 0.0
    %2765 = vmatpush2.msra.mxu0 0.0
    %2766 = vmatprep.subr.mxu0 0.0
    %2767 = vmatpush2.msra.mxu0 0.0
    %2768 = vmatprep.subr.mxu0 0.0
    %2769 = vmatpush2.msra.mxu0 0.0
    %2770 = vmatprep.subr.mxu0 0.0
    %2771 = vmatpush2.msra.mxu0 0.0
    %2772 = vmatprep.subr.mxu0 0.0
    %2773 = vmatpush2.msra.mxu0 0.0
    %2774 = vmatprep.mubr.f32.mxu0 0.0
    %2775 = vmatmul.mubr.f32.gmra.mxu0 %v2709
    %v2776 = vpop.f32.mrf.mxu0
    %v2777 = vadd.f32 0.0, %v2776
    %v2778 = vpop.f32.mrf.mxu0
    %v2779 = vadd.f32 0.0, %v2778
    %2780 = vdwg.mxu0
    %2781 = vmatprep.subr.mxu0 %v1943
    %2782 = vmatpush1.msra.mxu0 %v1942
    %2783 = vmatprep.subr.mxu0 %v1939
    %2784 = vmatpush1.msra.mxu0 %v1938
    %2785 = vmatprep.subr.mxu0 %v1935
    %2786 = vmatpush1.msra.mxu0 %v1934
    %2787 = vmatprep.subr.mxu0 %v1931
    %2788 = vmatpush1.msra.mxu0 %v1930
    %2789 = vmatprep.subr.mxu0 %v1927
    %2790 = vmatpush1.msra.mxu0 %v1926
    %2791 = vmatprep.subr.mxu0 %v1923
    %2792 = vmatpush1.msra.mxu0 %v1922
    %2793 = vmatprep.subr.mxu0 %v1919
    %2794 = vmatpush1.msra.mxu0 %v1918
    %2795 = vmatprep.subr.mxu0 %v1915
    %2796 = vmatpush1.msra.mxu0 %v1914
    %2797 = vmatprep.subr.mxu0 %v1911
    %2798 = vmatpush1.msra.mxu0 %v1910
    %2799 = vmatprep.subr.mxu0 %v1907
    %2800 = vmatpush1.msra.mxu0 %v1906
    %2801 = vmatprep.subr.mxu0 %v1903
    %2802 = vmatpush1.msra.mxu0 %v1902
    %2803 = vmatprep.subr.mxu0 %v1899
    %2804 = vmatpush1.msra.mxu0 %v1898
    %2805 = vmatprep.subr.mxu0 %v1895
    %2806 = vmatpush1.msra.mxu0 %v1894
    %2807 = vmatprep.subr.mxu0 %v1891
    %2808 = vmatpush1.msra.mxu0 %v1890
    %2809 = vmatprep.subr.mxu0 %v1887
    %2810 = vmatpush1.msra.mxu0 %v1886
    %2811 = vmatprep.subr.mxu0 %v1883
    %2812 = vmatpush1.msra.mxu0 %v1882
    %2813 = vmatprep.subr.mxu0 0.0
    %2814 = vmatpush2.msra.mxu0 0.0
    %2815 = vmatprep.subr.mxu0 0.0
    %2816 = vmatpush2.msra.mxu0 0.0
    %2817 = vmatprep.subr.mxu0 0.0
    %2818 = vmatpush2.msra.mxu0 0.0
    %2819 = vmatprep.subr.mxu0 0.0
    %2820 = vmatpush2.msra.mxu0 0.0
    %2821 = vmatprep.subr.mxu0 0.0
    %2822 = vmatpush2.msra.mxu0 0.0
    %2823 = vmatprep.subr.mxu0 0.0
    %2824 = vmatpush2.msra.mxu0 0.0
    %2825 = vmatprep.subr.mxu0 0.0
    %2826 = vmatpush2.msra.mxu0 0.0
    %2827 = vmatprep.subr.mxu0 0.0
    %2828 = vmatpush2.msra.mxu0 0.0
    %2829 = vmatprep.subr.mxu0 0.0
    %2830 = vmatpush2.msra.mxu0 0.0
    %2831 = vmatprep.subr.mxu0 0.0
    %2832 = vmatpush2.msra.mxu0 0.0
    %2833 = vmatprep.subr.mxu0 0.0
    %2834 = vmatpush2.msra.mxu0 0.0
    %2835 = vmatprep.subr.mxu0 0.0
    %2836 = vmatpush2.msra.mxu0 0.0
    %2837 = vmatprep.subr.mxu0 0.0
    %2838 = vmatpush2.msra.mxu0 0.0
    %2839 = vmatprep.subr.mxu0 0.0
    %2840 = vmatpush2.msra.mxu0 0.0
    %2841 = vmatprep.subr.mxu0 0.0
    %2842 = vmatpush2.msra.mxu0 0.0
    %2843 = vmatprep.subr.mxu0 0.0
    %2844 = vmatpush2.msra.mxu0 0.0
    %2845 = vmatprep.mubr.f32.mxu0 0.0
    %2846 = vmatmul.mubr.f32.gmra.mxu0 %v2709
    %v2847 = vpop.f32.mrf.mxu0
    %v2848 = vadd.f32 0.0, %v2847
    %v2849 = vpop.f32.mrf.mxu0
    %v2850 = vadd.f32 0.0, %v2849
    %2851 = vdwg.mxu0
    %v2852 = vadd.f32 %v2059, %v2777
    %v2853 = vadd.f32 %v2061, %v2779
    %v2854 = vadd.f32 %v2172, %v2848
    %v2855 = vadd.f32 %v2174, %v2850
    %v2856 = vxor.u32 %v2852, 2147483648
    %v2857 = vxor.u32 %v2853, 2147483648
    %v2858 = vxor.u32 %v2854, 2147483648
    %v2859 = vmul.f32 %v2856, 1.442695
    %v2860 = vpow.pop %v2859
    %v2861 = vmul.f32 %v2857, 1.442695
    %v2862 = vpow.pop %v2861
    %v2863 = vmul.f32 %v2858, 1.442695
    %v2864 = vpow.pop %v2863
    %v2865 = vadd.f32 %v2860, 1.0
    %v2866 = vadd.f32 %v2862, 1.0
    %v2867 = vadd.f32 %v2864, 1.0
    %v2868 = vrcp.pop %v2865
    %v2869 = vmul.f32 1.0, %v2868
    %v2870 = vrcp.pop %v2866
    %v2871 = vmul.f32 1.0, %v2870
    %v2872 = vrcp.pop %v2867
    %v2873 = vmul.f32 1.0, %v2872
    %v2874 = vtanh.pop %v2855
    %v2875 = vmul.f32 %v2871, %v2707
    %v2876 = vmul.f32 %v2869, %v2874
    %v2877 = vadd.f32 %v2875, %v2876
    %v2878 = vtanh.pop %v2877
    %v2879 = vmul.f32 %v2873, %v2878
    %2880 = vmatprep.subr.mxu0 %v1941
    %2881 = vmatpush1.msra.mxu0 %v1940
    %2882 = vmatprep.subr.mxu0 %v1937
    %2883 = vmatpush1.msra.mxu0 %v1936
    %2884 = vmatprep.subr.mxu0 %v1933
    %2885 = vmatpush1.msra.mxu0 %v1932
    %2886 = vmatprep.subr.mxu0 %v1929
    %2887 = vmatpush1.msra.mxu0 %v1928
    %2888 = vmatprep.subr.mxu0 %v1925
    %2889 = vmatpush1.msra.mxu0 %v1924
    %2890 = vmatprep.subr.mxu0 %v1921
    %2891 = vmatpush1.msra.mxu0 %v1920
    %2892 = vmatprep.subr.mxu0 %v1917
    %2893 = vmatpush1.msra.mxu0 %v1916
    %2894 = vmatprep.subr.mxu0 %v1913
    %2895 = vmatpush1.msra.mxu0 %v1912
    %2896 = vmatprep.subr.mxu0 %v1909
    %2897 = vmatpush1.msra.mxu0 %v1908
    %2898 = vmatprep.subr.mxu0 %v1905
    %2899 = vmatpush1.msra.mxu0 %v1904
    %2900 = vmatprep.subr.mxu0 %v1901
    %2901 = vmatpush1.msra.mxu0 %v1900
    %2902 = vmatprep.subr.mxu0 %v1897
    %2903 = vmatpush1.msra.mxu0 %v1896
    %2904 = vmatprep.subr.mxu0 %v1893
    %2905 = vmatpush1.msra.mxu0 %v1892
    %2906 = vmatprep.subr.mxu0 %v1889
    %2907 = vmatpush1.msra.mxu0 %v1888
    %2908 = vmatprep.subr.mxu0 %v1885
    %2909 = vmatpush1.msra.mxu0 %v1884
    %2910 = vmatprep.subr.mxu0 %v1881
    %2911 = vmatpush1.msra.mxu0 %v1880
    %2912 = vmatprep.subr.mxu0 0.0
    %2913 = vmatpush2.msra.mxu0 0.0
    %2914 = vmatprep.subr.mxu0 0.0
    %2915 = vmatpush2.msra.mxu0 0.0
    %2916 = vmatprep.subr.mxu0 0.0
    %2917 = vmatpush2.msra.mxu0 0.0
    %2918 = vmatprep.subr.mxu0 0.0
    %2919 = vmatpush2.msra.mxu0 0.0
    %2920 = vmatprep.subr.mxu0 0.0
    %2921 = vmatpush2.msra.mxu0 0.0
    %2922 = vmatprep.subr.mxu0 0.0
    %2923 = vmatpush2.msra.mxu0 0.0
    %2924 = vmatprep.subr.mxu0 0.0
    %2925 = vmatpush2.msra.mxu0 0.0
    %2926 = vmatprep.subr.mxu0 0.0
    %2927 = vmatpush2.msra.mxu0 0.0
    %2928 = vmatprep.subr.mxu0 0.0
    %2929 = vmatpush2.msra.mxu0 0.0
    %2930 = vmatprep.subr.mxu0 0.0
    %2931 = vmatpush2.msra.mxu0 0.0
    %2932 = vmatprep.subr.mxu0 0.0
    %2933 = vmatpush2.msra.mxu0 0.0
    %2934 = vmatprep.subr.mxu0 0.0
    %2935 = vmatpush2.msra.mxu0 0.0
    %2936 = vmatprep.subr.mxu0 0.0
    %2937 = vmatpush2.msra.mxu0 0.0
    %2938 = vmatprep.subr.mxu0 0.0
    %2939 = vmatpush2.msra.mxu0 0.0
    %2940 = vmatprep.subr.mxu0 0.0
    %2941 = vmatpush2.msra.mxu0 0.0
    %2942 = vmatprep.subr.mxu0 0.0
    %2943 = vmatpush2.msra.mxu0 0.0
    %2944 = vmatprep.mubr.f32.mxu0 0.0
    %2945 = vmatmul.mubr.f32.gmra.mxu0 %v2879
    %v2946 = vpop.f32.mrf.mxu0
    %v2947 = vadd.f32 0.0, %v2946
    %v2948 = vpop.f32.mrf.mxu0
    %v2949 = vadd.f32 0.0, %v2948
    %2950 = vdwg.mxu0
    %2951 = vmatprep.subr.mxu0 %v1943
    %2952 = vmatpush1.msra.mxu0 %v1942
    %2953 = vmatprep.subr.mxu0 %v1939
    %2954 = vmatpush1.msra.mxu0 %v1938
    %2955 = vmatprep.subr.mxu0 %v1935
    %2956 = vmatpush1.msra.mxu0 %v1934
    %2957 = vmatprep.subr.mxu0 %v1931
    %2958 = vmatpush1.msra.mxu0 %v1930
    %2959 = vmatprep.subr.mxu0 %v1927
    %2960 = vmatpush1.msra.mxu0 %v1926
    %2961 = vmatprep.subr.mxu0 %v1923
    %2962 = vmatpush1.msra.mxu0 %v1922
    %2963 = vmatprep.subr.mxu0 %v1919
    %2964 = vmatpush1.msra.mxu0 %v1918
    %2965 = vmatprep.subr.mxu0 %v1915
    %2966 = vmatpush1.msra.mxu0 %v1914
    %2967 = vmatprep.subr.mxu0 %v1911
    %2968 = vmatpush1.msra.mxu0 %v1910
    %2969 = vmatprep.subr.mxu0 %v1907
    %2970 = vmatpush1.msra.mxu0 %v1906
    %2971 = vmatprep.subr.mxu0 %v1903
    %2972 = vmatpush1.msra.mxu0 %v1902
    %2973 = vmatprep.subr.mxu0 %v1899
    %2974 = vmatpush1.msra.mxu0 %v1898
    %2975 = vmatprep.subr.mxu0 %v1895
    %2976 = vmatpush1.msra.mxu0 %v1894
    %2977 = vmatprep.subr.mxu0 %v1891
    %2978 = vmatpush1.msra.mxu0 %v1890
    %2979 = vmatprep.subr.mxu0 %v1887
    %2980 = vmatpush1.msra.mxu0 %v1886
    %2981 = vmatprep.subr.mxu0 %v1883
    %2982 = vmatpush1.msra.mxu0 %v1882
    %2983 = vmatprep.subr.mxu0 0.0
    %2984 = vmatpush2.msra.mxu0 0.0
    %2985 = vmatprep.subr.mxu0 0.0
    %2986 = vmatpush2.msra.mxu0 0.0
    %2987 = vmatprep.subr.mxu0 0.0
    %2988 = vmatpush2.msra.mxu0 0.0
    %2989 = vmatprep.subr.mxu0 0.0
    %2990 = vmatpush2.msra.mxu0 0.0
    %2991 = vmatprep.subr.mxu0 0.0
    %2992 = vmatpush2.msra.mxu0 0.0
    %2993 = vmatprep.subr.mxu0 0.0
    %2994 = vmatpush2.msra.mxu0 0.0
    %2995 = vmatprep.subr.mxu0 0.0
    %2996 = vmatpush2.msra.mxu0 0.0
    %2997 = vmatprep.subr.mxu0 0.0
    %2998 = vmatpush2.msra.mxu0 0.0
    %2999 = vmatprep.subr.mxu0 0.0
    %3000 = vmatpush2.msra.mxu0 0.0
    %3001 = vmatprep.subr.mxu0 0.0
    %3002 = vmatpush2.msra.mxu0 0.0
    %3003 = vmatprep.subr.mxu0 0.0
    %3004 = vmatpush2.msra.mxu0 0.0
    %3005 = vmatprep.subr.mxu0 0.0
    %3006 = vmatpush2.msra.mxu0 0.0
    %3007 = vmatprep.subr.mxu0 0.0
    %3008 = vmatpush2.msra.mxu0 0.0
    %3009 = vmatprep.subr.mxu0 0.0
    %3010 = vmatpush2.msra.mxu0 0.0
    %3011 = vmatprep.subr.mxu0 0.0
    %3012 = vmatpush2.msra.mxu0 0.0
    %3013 = vmatprep.subr.mxu0 0.0
    %3014 = vmatpush2.msra.mxu0 0.0
    %3015 = vmatprep.mubr.f32.mxu0 0.0
    %3016 = vmatmul.mubr.f32.gmra.mxu0 %v2879
    %v3017 = vpop.f32.mrf.mxu0
    %v3018 = vadd.f32 0.0, %v3017
    %v3019 = vpop.f32.mrf.mxu0
    %v3020 = vadd.f32 0.0, %v3019
    %3021 = vdwg.mxu0
    %v3022 = vadd.f32 %v2065, %v2947
    %v3023 = vadd.f32 %v2067, %v2949
    %v3024 = vadd.f32 %v2178, %v3018
    %v3025 = vadd.f32 %v2180, %v3020
    %v3026 = vxor.u32 %v3022, 2147483648
    %v3027 = vxor.u32 %v3023, 2147483648
    %v3028 = vxor.u32 %v3024, 2147483648
    %v3029 = vmul.f32 %v3026, 1.442695
    %v3030 = vpow.pop %v3029
    %v3031 = vmul.f32 %v3027, 1.442695
    %v3032 = vpow.pop %v3031
    %v3033 = vmul.f32 %v3028, 1.442695
    %v3034 = vpow.pop %v3033
    %v3035 = vadd.f32 %v3030, 1.0
    %v3036 = vadd.f32 %v3032, 1.0
    %v3037 = vadd.f32 %v3034, 1.0
    %v3038 = vrcp.pop %v3035
    %v3039 = vmul.f32 1.0, %v3038
    %v3040 = vrcp.pop %v3036
    %v3041 = vmul.f32 1.0, %v3040
    %v3042 = vrcp.pop %v3037
    %v3043 = vmul.f32 1.0, %v3042
    %v3044 = vtanh.pop %v3025
    %v3045 = vmul.f32 %v3041, %v2877
    %v3046 = vmul.f32 %v3039, %v3044
    %v3047 = vadd.f32 %v3045, %v3046
    %v3048 = vtanh.pop %v3047
    %v3049 = vmul.f32 %v3043, %v3048
    %3050 = vmatprep.subr.mxu0 %v1941
    %3051 = vmatpush1.msra.mxu0 %v1940
    %3052 = vmatprep.subr.mxu0 %v1937
    %3053 = vmatpush1.msra.mxu0 %v1936
    %3054 = vmatprep.subr.mxu0 %v1933
    %3055 = vmatpush1.msra.mxu0 %v1932
    %3056 = vmatprep.subr.mxu0 %v1929
    %3057 = vmatpush1.msra.mxu0 %v1928
    %3058 = vmatprep.subr.mxu0 %v1925
    %3059 = vmatpush1.msra.mxu0 %v1924
    %3060 = vmatprep.subr.mxu0 %v1921
    %3061 = vmatpush1.msra.mxu0 %v1920
    %3062 = vmatprep.subr.mxu0 %v1917
    %3063 = vmatpush1.msra.mxu0 %v1916
    %3064 = vmatprep.subr.mxu0 %v1913
    %3065 = vmatpush1.msra.mxu0 %v1912
    %3066 = vmatprep.subr.mxu0 %v1909
    %3067 = vmatpush1.msra.mxu0 %v1908
    %3068 = vmatprep.subr.mxu0 %v1905
    %3069 = vmatpush1.msra.mxu0 %v1904
    %3070 = vmatprep.subr.mxu0 %v1901
    %3071 = vmatpush1.msra.mxu0 %v1900
    %3072 = vmatprep.subr.mxu0 %v1897
    %3073 = vmatpush1.msra.mxu0 %v1896
    %3074 = vmatprep.subr.mxu0 %v1893
    %3075 = vmatpush1.msra.mxu0 %v1892
    %3076 = vmatprep.subr.mxu0 %v1889
    %3077 = vmatpush1.msra.mxu0 %v1888
    %3078 = vmatprep.subr.mxu0 %v1885
    %3079 = vmatpush1.msra.mxu0 %v1884
    %3080 = vmatprep.subr.mxu0 %v1881
    %3081 = vmatpush1.msra.mxu0 %v1880
    %3082 = vmatprep.subr.mxu0 0.0
    %3083 = vmatpush2.msra.mxu0 0.0
    %3084 = vmatprep.subr.mxu0 0.0
    %3085 = vmatpush2.msra.mxu0 0.0
    %3086 = vmatprep.subr.mxu0 0.0
    %3087 = vmatpush2.msra.mxu0 0.0
    %3088 = vmatprep.subr.mxu0 0.0
    %3089 = vmatpush2.msra.mxu0 0.0
    %3090 = vmatprep.subr.mxu0 0.0
    %3091 = vmatpush2.msra.mxu0 0.0
    %3092 = vmatprep.subr.mxu0 0.0
    %3093 = vmatpush2.msra.mxu0 0.0
    %3094 = vmatprep.subr.mxu0 0.0
    %3095 = vmatpush2.msra.mxu0 0.0
    %3096 = vmatprep.subr.mxu0 0.0
    %3097 = vmatpush2.msra.mxu0 0.0
    %3098 = vmatprep.subr.mxu0 0.0
    %3099 = vmatpush2.msra.mxu0 0.0
    %3100 = vmatprep.subr.mxu0 0.0
    %3101 = vmatpush2.msra.mxu0 0.0
    %3102 = vmatprep.subr.mxu0 0.0
    %3103 = vmatpush2.msra.mxu0 0.0
    %3104 = vmatprep.subr.mxu0 0.0
    %3105 = vmatpush2.msra.mxu0 0.0
    %3106 = vmatprep.subr.mxu0 0.0
    %3107 = vmatpush2.msra.mxu0 0.0
    %3108 = vmatprep.subr.mxu0 0.0
    %3109 = vmatpush2.msra.mxu0 0.0
    %3110 = vmatprep.subr.mxu0 0.0
    %3111 = vmatpush2.msra.mxu0 0.0
    %3112 = vmatprep.subr.mxu0 0.0
    %3113 = vmatpush2.msra.mxu0 0.0
    %3114 = vmatprep.mubr.f32.mxu0 0.0
    %3115 = vmatmul.mubr.f32.gmra.mxu0 %v3049
    %v3116 = vpop.f32.mrf.mxu0
    %v3117 = vadd.f32 0.0, %v3116
    %v3118 = vpop.f32.mrf.mxu0
    %v3119 = vadd.f32 0.0, %v3118
    %3120 = vdwg.mxu0
    %3121 = vmatprep.subr.mxu0 %v1943
    %3122 = vmatpush1.msra.mxu0 %v1942
    %3123 = vmatprep.subr.mxu0 %v1939
    %3124 = vmatpush1.msra.mxu0 %v1938
    %3125 = vmatprep.subr.mxu0 %v1935
    %3126 = vmatpush1.msra.mxu0 %v1934
    %3127 = vmatprep.subr.mxu0 %v1931
    %3128 = vmatpush1.msra.mxu0 %v1930
    %3129 = vmatprep.subr.mxu0 %v1927
    %3130 = vmatpush1.msra.mxu0 %v1926
    %3131 = vmatprep.subr.mxu0 %v1923
    %3132 = vmatpush1.msra.mxu0 %v1922
    %3133 = vmatprep.subr.mxu0 %v1919
    %3134 = vmatpush1.msra.mxu0 %v1918
    %3135 = vmatprep.subr.mxu0 %v1915
    %3136 = vmatpush1.msra.mxu0 %v1914
    %3137 = vmatprep.subr.mxu0 %v1911
    %3138 = vmatpush1.msra.mxu0 %v1910
    %3139 = vmatprep.subr.mxu0 %v1907
    %3140 = vmatpush1.msra.mxu0 %v1906
    %3141 = vmatprep.subr.mxu0 %v1903
    %3142 = vmatpush1.msra.mxu0 %v1902
    %3143 = vmatprep.subr.mxu0 %v1899
    %3144 = vmatpush1.msra.mxu0 %v1898
    %3145 = vmatprep.subr.mxu0 %v1895
    %3146 = vmatpush1.msra.mxu0 %v1894
    %3147 = vmatprep.subr.mxu0 %v1891
    %3148 = vmatpush1.msra.mxu0 %v1890
    %3149 = vmatprep.subr.mxu0 %v1887
    %3150 = vmatpush1.msra.mxu0 %v1886
    %3151 = vmatprep.subr.mxu0 %v1883
    %3152 = vmatpush1.msra.mxu0 %v1882
    %3153 = vmatprep.subr.mxu0 0.0
    %3154 = vmatpush2.msra.mxu0 0.0
    %3155 = vmatprep.subr.mxu0 0.0
    %3156 = vmatpush2.msra.mxu0 0.0
    %3157 = vmatprep.subr.mxu0 0.0
    %3158 = vmatpush2.msra.mxu0 0.0
    %3159 = vmatprep.subr.mxu0 0.0
    %3160 = vmatpush2.msra.mxu0 0.0
    %3161 = vmatprep.subr.mxu0 0.0
    %3162 = vmatpush2.msra.mxu0 0.0
    %3163 = vmatprep.subr.mxu0 0.0
    %3164 = vmatpush2.msra.mxu0 0.0
    %3165 = vmatprep.subr.mxu0 0.0
    %3166 = vmatpush2.msra.mxu0 0.0
    %3167 = vmatprep.subr.mxu0 0.0
    %3168 = vmatpush2.msra.mxu0 0.0
    %3169 = vmatprep.subr.mxu0 0.0
    %3170 = vmatpush2.msra.mxu0 0.0
    %3171 = vmatprep.subr.mxu0 0.0
    %3172 = vmatpush2.msra.mxu0 0.0
    %3173 = vmatprep.subr.mxu0 0.0
    %3174 = vmatpush2.msra.mxu0 0.0
    %3175 = vmatprep.subr.mxu0 0.0
    %3176 = vmatpush2.msra.mxu0 0.0
    %3177 = vmatprep.subr.mxu0 0.0
    %3178 = vmatpush2.msra.mxu0 0.0
    %3179 = vmatprep.subr.mxu0 0.0
    %3180 = vmatpush2.msra.mxu0 0.0
    %3181 = vmatprep.subr.mxu0 0.0
    %3182 = vmatpush2.msra.mxu0 0.0
    %3183 = vmatprep.subr.mxu0 0.0
    %3184 = vmatpush2.msra.mxu0 0.0
    %3185 = vmatprep.mubr.f32.mxu0 0.0
    %3186 = vmatmul.mubr.f32.gmra.mxu0 %v3049
    %v3187 = vpop.f32.mrf.mxu0
    %v3188 = vadd.f32 0.0, %v3187
    %v3189 = vpop.f32.mrf.mxu0
    %v3190 = vadd.f32 0.0, %v3189
    %3191 = vdwg.mxu0
    %v3192 = vadd.f32 %v2071, %v3117
    %v3193 = vadd.f32 %v2073, %v3119
    %v3194 = vadd.f32 %v2184, %v3188
    %v3195 = vadd.f32 %v2186, %v3190
    %v3196 = vxor.u32 %v3192, 2147483648
    %v3197 = vxor.u32 %v3193, 2147483648
    %v3198 = vxor.u32 %v3194, 2147483648
    %v3199 = vmul.f32 %v3196, 1.442695
    %v3200 = vpow.pop %v3199
    %v3201 = vmul.f32 %v3197, 1.442695
    %v3202 = vpow.pop %v3201
    %v3203 = vmul.f32 %v3198, 1.442695
    %v3204 = vpow.pop %v3203
    %v3205 = vadd.f32 %v3200, 1.0
    %v3206 = vadd.f32 %v3202, 1.0
    %v3207 = vadd.f32 %v3204, 1.0
    %v3208 = vrcp.pop %v3205
    %v3209 = vmul.f32 1.0, %v3208
    %v3210 = vrcp.pop %v3206
    %v3211 = vmul.f32 1.0, %v3210
    %v3212 = vrcp.pop %v3207
    %v3213 = vmul.f32 1.0, %v3212
    %v3214 = vtanh.pop %v3195
    %v3215 = vmul.f32 %v3211, %v3047
    %v3216 = vmul.f32 %v3209, %v3214
    %v3217 = vadd.f32 %v3215, %v3216
    %v3218 = vtanh.pop %v3217
    %v3219 = vmul.f32 %v3213, %v3218
    %3220 = vmatprep.subr.mxu0 %v1941
    %3221 = vmatpush1.msra.mxu0 %v1940
    %3222 = vmatprep.subr.mxu0 %v1937
    %3223 = vmatpush1.msra.mxu0 %v1936
    %3224 = vmatprep.subr.mxu0 %v1933
    %3225 = vmatpush1.msra.mxu0 %v1932
    %3226 = vmatprep.subr.mxu0 %v1929
    %3227 = vmatpush1.msra.mxu0 %v1928
    %3228 = vmatprep.subr.mxu0 %v1925
    %3229 = vmatpush1.msra.mxu0 %v1924
    %3230 = vmatprep.subr.mxu0 %v1921
    %3231 = vmatpush1.msra.mxu0 %v1920
    %3232 = vmatprep.subr.mxu0 %v1917
    %3233 = vmatpush1.msra.mxu0 %v1916
    %3234 = vmatprep.subr.mxu0 %v1913
    %3235 = vmatpush1.msra.mxu0 %v1912
    %3236 = vmatprep.subr.mxu0 %v1909
    %3237 = vmatpush1.msra.mxu0 %v1908
    %3238 = vmatprep.subr.mxu0 %v1905
    %3239 = vmatpush1.msra.mxu0 %v1904
    %3240 = vmatprep.subr.mxu0 %v1901
    %3241 = vmatpush1.msra.mxu0 %v1900
    %3242 = vmatprep.subr.mxu0 %v1897
    %3243 = vmatpush1.msra.mxu0 %v1896
    %3244 = vmatprep.subr.mxu0 %v1893
    %3245 = vmatpush1.msra.mxu0 %v1892
    %3246 = vmatprep.subr.mxu0 %v1889
    %3247 = vmatpush1.msra.mxu0 %v1888
    %3248 = vmatprep.subr.mxu0 %v1885
    %3249 = vmatpush1.msra.mxu0 %v1884
    %3250 = vmatprep.subr.mxu0 %v1881
    %3251 = vmatpush1.msra.mxu0 %v1880
    %3252 = vmatprep.subr.mxu0 0.0
    %3253 = vmatpush2.msra.mxu0 0.0
    %3254 = vmatprep.subr.mxu0 0.0
    %3255 = vmatpush2.msra.mxu0 0.0
    %3256 = vmatprep.subr.mxu0 0.0
    %3257 = vmatpush2.msra.mxu0 0.0
    %3258 = vmatprep.subr.mxu0 0.0
    %3259 = vmatpush2.msra.mxu0 0.0
    %3260 = vmatprep.subr.mxu0 0.0
    %3261 = vmatpush2.msra.mxu0 0.0
    %3262 = vmatprep.subr.mxu0 0.0
    %3263 = vmatpush2.msra.mxu0 0.0
    %3264 = vmatprep.subr.mxu0 0.0
    %3265 = vmatpush2.msra.mxu0 0.0
    %3266 = vmatprep.subr.mxu0 0.0
    %3267 = vmatpush2.msra.mxu0 0.0
    %3268 = vmatprep.subr.mxu0 0.0
    %3269 = vmatpush2.msra.mxu0 0.0
    %3270 = vmatprep.subr.mxu0 0.0
    %3271 = vmatpush2.msra.mxu0 0.0
    %3272 = vmatprep.subr.mxu0 0.0
    %3273 = vmatpush2.msra.mxu0 0.0
    %3274 = vmatprep.subr.mxu0 0.0
    %3275 = vmatpush2.msra.mxu0 0.0
    %3276 = vmatprep.subr.mxu0 0.0
    %3277 = vmatpush2.msra.mxu0 0.0
    %3278 = vmatprep.subr.mxu0 0.0
    %3279 = vmatpush2.msra.mxu0 0.0
    %3280 = vmatprep.subr.mxu0 0.0
    %3281 = vmatpush2.msra.mxu0 0.0
    %3282 = vmatprep.subr.mxu0 0.0
    %3283 = vmatpush2.msra.mxu0 0.0
    %3284 = vmatprep.mubr.f32.mxu0 0.0
    %3285 = vmatmul.mubr.f32.gmra.mxu0 %v3219
    %v3286 = vpop.f32.mrf.mxu0
    %v3287 = vadd.f32 0.0, %v3286
    %v3288 = vpop.f32.mrf.mxu0
    %v3289 = vadd.f32 0.0, %v3288
    %3290 = vdwg.mxu0
    %3291 = vmatprep.subr.mxu0 %v1943
    %3292 = vmatpush1.msra.mxu0 %v1942
    %3293 = vmatprep.subr.mxu0 %v1939
    %3294 = vmatpush1.msra.mxu0 %v1938
    %3295 = vmatprep.subr.mxu0 %v1935
    %3296 = vmatpush1.msra.mxu0 %v1934
    %3297 = vmatprep.subr.mxu0 %v1931
    %3298 = vmatpush1.msra.mxu0 %v1930
    %3299 = vmatprep.subr.mxu0 %v1927
    %3300 = vmatpush1.msra.mxu0 %v1926
    %3301 = vmatprep.subr.mxu0 %v1923
    %3302 = vmatpush1.msra.mxu0 %v1922
    %3303 = vmatprep.subr.mxu0 %v1919
    %3304 = vmatpush1.msra.mxu0 %v1918
    %3305 = vmatprep.subr.mxu0 %v1915
    %3306 = vmatpush1.msra.mxu0 %v1914
    %3307 = vmatprep.subr.mxu0 %v1911
    %3308 = vmatpush1.msra.mxu0 %v1910
    %3309 = vmatprep.subr.mxu0 %v1907
    %3310 = vmatpush1.msra.mxu0 %v1906
    %3311 = vmatprep.subr.mxu0 %v1903
    %3312 = vmatpush1.msra.mxu0 %v1902
    %3313 = vmatprep.subr.mxu0 %v1899
    %3314 = vmatpush1.msra.mxu0 %v1898
    %3315 = vmatprep.subr.mxu0 %v1895
    %3316 = vmatpush1.msra.mxu0 %v1894
    %3317 = vmatprep.subr.mxu0 %v1891
    %3318 = vmatpush1.msra.mxu0 %v1890
    %3319 = vmatprep.subr.mxu0 %v1887
    %3320 = vmatpush1.msra.mxu0 %v1886
    %3321 = vmatprep.subr.mxu0 %v1883
    %3322 = vmatpush1.msra.mxu0 %v1882
    %3323 = vmatprep.subr.mxu0 0.0
    %3324 = vmatpush2.msra.mxu0 0.0
    %3325 = vmatprep.subr.mxu0 0.0
    %3326 = vmatpush2.msra.mxu0 0.0
    %3327 = vmatprep.subr.mxu0 0.0
    %3328 = vmatpush2.msra.mxu0 0.0
    %3329 = vmatprep.subr.mxu0 0.0
    %3330 = vmatpush2.msra.mxu0 0.0
    %3331 = vmatprep.subr.mxu0 0.0
    %3332 = vmatpush2.msra.mxu0 0.0
    %3333 = vmatprep.subr.mxu0 0.0
    %3334 = vmatpush2.msra.mxu0 0.0
    %3335 = vmatprep.subr.mxu0 0.0
    %3336 = vmatpush2.msra.mxu0 0.0
    %3337 = vmatprep.subr.mxu0 0.0
    %3338 = vmatpush2.msra.mxu0 0.0
    %3339 = vmatprep.subr.mxu0 0.0
    %3340 = vmatpush2.msra.mxu0 0.0
    %3341 = vmatprep.subr.mxu0 0.0
    %3342 = vmatpush2.msra.mxu0 0.0
    %3343 = vmatprep.subr.mxu0 0.0
    %3344 = vmatpush2.msra.mxu0 0.0
    %3345 = vmatprep.subr.mxu0 0.0
    %3346 = vmatpush2.msra.mxu0 0.0
    %3347 = vmatprep.subr.mxu0 0.0
    %3348 = vmatpush2.msra.mxu0 0.0
    %3349 = vmatprep.subr.mxu0 0.0
    %3350 = vmatpush2.msra.mxu0 0.0
    %3351 = vmatprep.subr.mxu0 0.0
    %3352 = vmatpush2.msra.mxu0 0.0
    %3353 = vmatprep.subr.mxu0 0.0
    %3354 = vmatpush2.msra.mxu0 0.0
    %3355 = vmatprep.mubr.f32.mxu0 0.0
    %3356 = vmatmul.mubr.f32.gmra.mxu0 %v3219
    %v3357 = vpop.f32.mrf.mxu0
    %v3358 = vadd.f32 0.0, %v3357
    %v3359 = vpop.f32.mrf.mxu0
    %v3360 = vadd.f32 0.0, %v3359
    %3361 = vdwg.mxu0
    %v3362 = vadd.f32 %v2077, %v3287
    %v3363 = vadd.f32 %v2079, %v3289
    %v3364 = vadd.f32 %v2190, %v3358
    %v3365 = vadd.f32 %v2192, %v3360
    %v3366 = vxor.u32 %v3362, 2147483648
    %v3367 = vxor.u32 %v3363, 2147483648
    %v3368 = vxor.u32 %v3364, 2147483648
    %v3369 = vmul.f32 %v3366, 1.442695
    %v3370 = vpow.pop %v3369
    %v3371 = vmul.f32 %v3367, 1.442695
    %v3372 = vpow.pop %v3371
    %v3373 = vmul.f32 %v3368, 1.442695
    %v3374 = vpow.pop %v3373
    %v3375 = vadd.f32 %v3370, 1.0
    %v3376 = vadd.f32 %v3372, 1.0
    %v3377 = vadd.f32 %v3374, 1.0
    %v3378 = vrcp.pop %v3375
    %v3379 = vmul.f32 1.0, %v3378
    %v3380 = vrcp.pop %v3376
    %v3381 = vmul.f32 1.0, %v3380
    %v3382 = vrcp.pop %v3377
    %v3383 = vmul.f32 1.0, %v3382
    %v3384 = vtanh.pop %v3365
    %v3385 = vmul.f32 %v3381, %v3217
    %v3386 = vmul.f32 %v3379, %v3384
    %v3387 = vadd.f32 %v3385, %v3386
    %v3388 = vtanh.pop %v3387
    %v3389 = vmul.f32 %v3383, %v3388
    %3390 = vmatprep.subr.mxu0 %v1941
    %3391 = vmatpush1.msra.mxu0 %v1940
    %3392 = vmatprep.subr.mxu0 %v1937
    %3393 = vmatpush1.msra.mxu0 %v1936
    %3394 = vmatprep.subr.mxu0 %v1933
    %3395 = vmatpush1.msra.mxu0 %v1932
    %3396 = vmatprep.subr.mxu0 %v1929
    %3397 = vmatpush1.msra.mxu0 %v1928
    %3398 = vmatprep.subr.mxu0 %v1925
    %3399 = vmatpush1.msra.mxu0 %v1924
    %3400 = vmatprep.subr.mxu0 %v1921
    %3401 = vmatpush1.msra.mxu0 %v1920
    %3402 = vmatprep.subr.mxu0 %v1917
    %3403 = vmatpush1.msra.mxu0 %v1916
    %3404 = vmatprep.subr.mxu0 %v1913
    %3405 = vmatpush1.msra.mxu0 %v1912
    %3406 = vmatprep.subr.mxu0 %v1909
    %3407 = vmatpush1.msra.mxu0 %v1908
    %3408 = vmatprep.subr.mxu0 %v1905
    %3409 = vmatpush1.msra.mxu0 %v1904
    %3410 = vmatprep.subr.mxu0 %v1901
    %3411 = vmatpush1.msra.mxu0 %v1900
    %3412 = vmatprep.subr.mxu0 %v1897
    %3413 = vmatpush1.msra.mxu0 %v1896
    %3414 = vmatprep.subr.mxu0 %v1893
    %3415 = vmatpush1.msra.mxu0 %v1892
    %3416 = vmatprep.subr.mxu0 %v1889
    %3417 = vmatpush1.msra.mxu0 %v1888
    %3418 = vmatprep.subr.mxu0 %v1885
    %3419 = vmatpush1.msra.mxu0 %v1884
    %3420 = vmatprep.subr.mxu0 %v1881
    %3421 = vmatpush1.msra.mxu0 %v1880
    %3422 = vmatprep.subr.mxu0 0.0
    %3423 = vmatpush2.msra.mxu0 0.0
    %3424 = vmatprep.subr.mxu0 0.0
    %3425 = vmatpush2.msra.mxu0 0.0
    %3426 = vmatprep.subr.mxu0 0.0
    %3427 = vmatpush2.msra.mxu0 0.0
    %3428 = vmatprep.subr.mxu0 0.0
    %3429 = vmatpush2.msra.mxu0 0.0
    %3430 = vmatprep.subr.mxu0 0.0
    %3431 = vmatpush2.msra.mxu0 0.0
    %3432 = vmatprep.subr.mxu0 0.0
    %3433 = vmatpush2.msra.mxu0 0.0
    %3434 = vmatprep.subr.mxu0 0.0
    %3435 = vmatpush2.msra.mxu0 0.0
    %3436 = vmatprep.subr.mxu0 0.0
    %3437 = vmatpush2.msra.mxu0 0.0
    %3438 = vmatprep.subr.mxu0 0.0
    %3439 = vmatpush2.msra.mxu0 0.0
    %3440 = vmatprep.subr.mxu0 0.0
    %3441 = vmatpush2.msra.mxu0 0.0
    %3442 = vmatprep.subr.mxu0 0.0
    %3443 = vmatpush2.msra.mxu0 0.0
    %3444 = vmatprep.subr.mxu0 0.0
    %3445 = vmatpush2.msra.mxu0 0.0
    %3446 = vmatprep.subr.mxu0 0.0
    %3447 = vmatpush2.msra.mxu0 0.0
    %3448 = vmatprep.subr.mxu0 0.0
    %3449 = vmatpush2.msra.mxu0 0.0
    %3450 = vmatprep.subr.mxu0 0.0
    %3451 = vmatpush2.msra.mxu0 0.0
    %3452 = vmatprep.subr.mxu0 0.0
    %3453 = vmatpush2.msra.mxu0 0.0
    %3454 = vmatprep.mubr.f32.mxu0 0.0
    %3455 = vmatmul.mubr.f32.gmra.mxu0 %v3389
    %v3456 = vpop.f32.mrf.mxu0
    %v3457 = vadd.f32 0.0, %v3456
    %v3458 = vpop.f32.mrf.mxu0
    %v3459 = vadd.f32 0.0, %v3458
    %3460 = vdwg.mxu0
    %3461 = vmatprep.subr.mxu0 %v1943
    %3462 = vmatpush1.msra.mxu0 %v1942
    %3463 = vmatprep.subr.mxu0 %v1939
    %3464 = vmatpush1.msra.mxu0 %v1938
    %3465 = vmatprep.subr.mxu0 %v1935
    %3466 = vmatpush1.msra.mxu0 %v1934
    %3467 = vmatprep.subr.mxu0 %v1931
    %3468 = vmatpush1.msra.mxu0 %v1930
    %3469 = vmatprep.subr.mxu0 %v1927
    %3470 = vmatpush1.msra.mxu0 %v1926
    %3471 = vmatprep.subr.mxu0 %v1923
    %3472 = vmatpush1.msra.mxu0 %v1922
    %3473 = vmatprep.subr.mxu0 %v1919
    %3474 = vmatpush1.msra.mxu0 %v1918
    %3475 = vmatprep.subr.mxu0 %v1915
    %3476 = vmatpush1.msra.mxu0 %v1914
    %3477 = vmatprep.subr.mxu0 %v1911
    %3478 = vmatpush1.msra.mxu0 %v1910
    %3479 = vmatprep.subr.mxu0 %v1907
    %3480 = vmatpush1.msra.mxu0 %v1906
    %3481 = vmatprep.subr.mxu0 %v1903
    %3482 = vmatpush1.msra.mxu0 %v1902
    %3483 = vmatprep.subr.mxu0 %v1899
    %3484 = vmatpush1.msra.mxu0 %v1898
    %3485 = vmatprep.subr.mxu0 %v1895
    %3486 = vmatpush1.msra.mxu0 %v1894
    %3487 = vmatprep.subr.mxu0 %v1891
    %3488 = vmatpush1.msra.mxu0 %v1890
    %3489 = vmatprep.subr.mxu0 %v1887
    %3490 = vmatpush1.msra.mxu0 %v1886
    %3491 = vmatprep.subr.mxu0 %v1883
    %3492 = vmatpush1.msra.mxu0 %v1882
    %3493 = vmatprep.subr.mxu0 0.0
    %3494 = vmatpush2.msra.mxu0 0.0
    %3495 = vmatprep.subr.mxu0 0.0
    %3496 = vmatpush2.msra.mxu0 0.0
    %3497 = vmatprep.subr.mxu0 0.0
    %3498 = vmatpush2.msra.mxu0 0.0
    %3499 = vmatprep.subr.mxu0 0.0
    %3500 = vmatpush2.msra.mxu0 0.0
    %3501 = vmatprep.subr.mxu0 0.0
    %3502 = vmatpush2.msra.mxu0 0.0
    %3503 = vmatprep.subr.mxu0 0.0
    %3504 = vmatpush2.msra.mxu0 0.0
    %3505 = vmatprep.subr.mxu0 0.0
    %3506 = vmatpush2.msra.mxu0 0.0
    %3507 = vmatprep.subr.mxu0 0.0
    %3508 = vmatpush2.msra.mxu0 0.0
    %3509 = vmatprep.subr.mxu0 0.0
    %3510 = vmatpush2.msra.mxu0 0.0
    %3511 = vmatprep.subr.mxu0 0.0
    %3512 = vmatpush2.msra.mxu0 0.0
    %3513 = vmatprep.subr.mxu0 0.0
    %3514 = vmatpush2.msra.mxu0 0.0
    %3515 = vmatprep.subr.mxu0 0.0
    %3516 = vmatpush2.msra.mxu0 0.0
    %3517 = vmatprep.subr.mxu0 0.0
    %3518 = vmatpush2.msra.mxu0 0.0
    %3519 = vmatprep.subr.mxu0 0.0
    %3520 = vmatpush2.msra.mxu0 0.0
    %3521 = vmatprep.subr.mxu0 0.0
    %3522 = vmatpush2.msra.mxu0 0.0
    %3523 = vmatprep.subr.mxu0 0.0
    %3524 = vmatpush2.msra.mxu0 0.0
    %3525 = vmatprep.mubr.f32.mxu0 0.0
    %3526 = vmatmul.mubr.f32.gmra.mxu0 %v3389
    %v3527 = vpop.f32.mrf.mxu0
    %v3528 = vadd.f32 0.0, %v3527
    %v3529 = vpop.f32.mrf.mxu0
    %v3530 = vadd.f32 0.0, %v3529
    %3531 = vdwg.mxu0
    %v3532 = vadd.f32 %v2083, %v3457
    %v3533 = vadd.f32 %v2085, %v3459
    %v3534 = vadd.f32 %v2196, %v3528
    %v3535 = vadd.f32 %v2198, %v3530
    %v3536 = vxor.u32 %v3532, 2147483648
    %v3537 = vxor.u32 %v3533, 2147483648
    %v3538 = vxor.u32 %v3534, 2147483648
    %v3539 = vmul.f32 %v3536, 1.442695
    %v3540 = vpow.pop %v3539
    %v3541 = vmul.f32 %v3537, 1.442695
    %v3542 = vpow.pop %v3541
    %v3543 = vmul.f32 %v3538, 1.442695
    %v3544 = vpow.pop %v3543
    %v3545 = vadd.f32 %v3540, 1.0
    %v3546 = vadd.f32 %v3542, 1.0
    %v3547 = vadd.f32 %v3544, 1.0
    %v3548 = vrcp.pop %v3545
    %v3549 = vmul.f32 1.0, %v3548
    %v3550 = vrcp.pop %v3546
    %v3551 = vmul.f32 1.0, %v3550
    %v3552 = vrcp.pop %v3547
    %v3553 = vmul.f32 1.0, %v3552
    %v3554 = vtanh.pop %v3535
    %v3555 = vmul.f32 %v3551, %v3387
    %v3556 = vmul.f32 %v3549, %v3554
    %v3557 = vadd.f32 %v3555, %v3556
    %v3558 = vtanh.pop %v3557
    %v3559 = vmul.f32 %v3553, %v3558
    %v3560 = vld [vmem:[#allocation9] sm:$0xff]
    %v3561 = vld [vmem:[#allocation9 + $0x8] sm:$0xff]
    %v3562 = vld [vmem:[#allocation9 + $0x10] sm:$0xff]
    %v3563 = vld [vmem:[#allocation9 + $0x18] sm:$0xff]
    %v3564 = vld [vmem:[#allocation9 + $0x20] sm:$0xff]
    %v3565 = vld [vmem:[#allocation9 + $0x28] sm:$0xff]
    %v3566 = vld [vmem:[#allocation9 + $0x30] sm:$0xff]
    %v3567 = vld [vmem:[#allocation9 + $0x38] sm:$0xff]
    %v3568 = vld [vmem:[#allocation9 + $0x40] sm:$0xff]
    %v3569 = vld [vmem:[#allocation9 + $0x48] sm:$0xff]
    %v3570 = vld [vmem:[#allocation9 + $0x50] sm:$0xff]
    %v3571 = vld [vmem:[#allocation9 + $0x58] sm:$0xff]
    %v3572 = vld [vmem:[#allocation9 + $0x60] sm:$0xff]
    %v3573 = vld [vmem:[#allocation9 + $0x68] sm:$0xff]
    %v3574 = vld [vmem:[#allocation9 + $0x70] sm:$0xff]
    %v3575 = vld [vmem:[#allocation9 + $0x78] sm:$0xff]
    %v3576 = vld [vmem:[%s8] sm:$0x1]
    %v3578 = vlaneseq
    %v3579 = vshrl.u32 %v3578, 7
    %v3580 = vsub.s32 0, %v3579
    %v3581 = vrot.slane %v3576, %v3580
    %3583 = vmatprep.subr.mxu0 0.0
    %3584 = vmatpush1.msra.mxu0 %v3575
    %3585 = vmatprep.subr.mxu0 0.0
    %3586 = vmatpush1.msra.mxu0 %v3574
    %3587 = vmatprep.subr.mxu0 0.0
    %3588 = vmatpush1.msra.mxu0 %v3573
    %3589 = vmatprep.subr.mxu0 0.0
    %3590 = vmatpush1.msra.mxu0 %v3572
    %3591 = vmatprep.subr.mxu0 0.0
    %3592 = vmatpush1.msra.mxu0 %v3571
    %3593 = vmatprep.subr.mxu0 0.0
    %3594 = vmatpush1.msra.mxu0 %v3570
    %3595 = vmatprep.subr.mxu0 0.0
    %3596 = vmatpush1.msra.mxu0 %v3569
    %3597 = vmatprep.subr.mxu0 0.0
    %3598 = vmatpush1.msra.mxu0 %v3568
    %3599 = vmatprep.subr.mxu0 0.0
    %3600 = vmatpush1.msra.mxu0 %v3567
    %3601 = vmatprep.subr.mxu0 0.0
    %3602 = vmatpush1.msra.mxu0 %v3566
    %3603 = vmatprep.subr.mxu0 0.0
    %3604 = vmatpush1.msra.mxu0 %v3565
    %3605 = vmatprep.subr.mxu0 0.0
    %3606 = vmatpush1.msra.mxu0 %v3564
    %3607 = vmatprep.subr.mxu0 0.0
    %3608 = vmatpush1.msra.mxu0 %v3563
    %3609 = vmatprep.subr.mxu0 0.0
    %3610 = vmatpush1.msra.mxu0 %v3562
    %3611 = vmatprep.subr.mxu0 0.0
    %3612 = vmatpush1.msra.mxu0 %v3561
    %3613 = vmatprep.subr.mxu0 0.0
    %3614 = vmatpush1.msra.mxu0 %v3560
    %3615 = vmatprep.subr.mxu0 0.0
    %3616 = vmatpush2.msra.mxu0 0.0
    %3617 = vmatprep.subr.mxu0 0.0
    %3618 = vmatpush2.msra.mxu0 0.0
    %3619 = vmatprep.subr.mxu0 0.0
    %3620 = vmatpush2.msra.mxu0 0.0
    %3621 = vmatprep.subr.mxu0 0.0
    %3622 = vmatpush2.msra.mxu0 0.0
    %3623 = vmatprep.subr.mxu0 0.0
    %3624 = vmatpush2.msra.mxu0 0.0
    %3625 = vmatprep.subr.mxu0 0.0
    %3626 = vmatpush2.msra.mxu0 0.0
    %3627 = vmatprep.subr.mxu0 0.0
    %3628 = vmatpush2.msra.mxu0 0.0
    %3629 = vmatprep.subr.mxu0 0.0
    %3630 = vmatpush2.msra.mxu0 0.0
    %3631 = vmatprep.subr.mxu0 0.0
    %3632 = vmatpush2.msra.mxu0 0.0
    %3633 = vmatprep.subr.mxu0 0.0
    %3634 = vmatpush2.msra.mxu0 0.0
    %3635 = vmatprep.subr.mxu0 0.0
    %3636 = vmatpush2.msra.mxu0 0.0
    %3637 = vmatprep.subr.mxu0 0.0
    %3638 = vmatpush2.msra.mxu0 0.0
    %3639 = vmatprep.subr.mxu0 0.0
    %3640 = vmatpush2.msra.mxu0 0.0
    %3641 = vmatprep.subr.mxu0 0.0
    %3642 = vmatpush2.msra.mxu0 0.0
    %3643 = vmatprep.subr.mxu0 0.0
    %3644 = vmatpush2.msra.mxu0 0.0
    %3645 = vmatprep.subr.mxu0 0.0
    %3646 = vmatpush2.msra.mxu0 0.0
    %3647 = vmatprep.mubr.f32.mxu0 0.0
    %3648 = vmatmul.mubr.f32.gmra.mxu0 %v3559
    %v3649 = vpop.f32.mrf.mxu0
    %v3650 = vadd.f32 %v3581, %v3649
    %v3651 = vpop.f32.mrf.mxu0
    %3652 = vdwg.mxu0
    %3653 = vst [vmem:[#allocation11] sm:$0xff] %v3650
    // Predicated region
    $region54: #{tpu_custom_call.1} parent=1 // pred_check
      _
    $region55: #{tpu_custom_call.1} parent=1 // pred_check_branch
      %3655 = sbr.rel (0) target = $region57
    $region56: #{tpu_custom_call.1} parent=1 // pred_region
      %s3657 = ssub.s32 128, 128
      %3658 = vsyncadd [#allocation5], %s3657
      %s3660 = sshll.u32 [#allocation11], 4
      %s3661 = int_to_ptr.vmem [resolvable:$true] %s3660
      %3663 = dma.vmem_to_hbm [thread:$0]  %s3661, 128, %s9, [#allocation5]
    $region57: #{tpu_custom_call.1} parent=1 // pred_fallthru
      _
    // Predicated region
    $region58: #{tpu_custom_call.1} parent=1 // pred_check
      _
    $region59: #{tpu_custom_call.1} parent=1 // pred_check_branch
      %3665 = sbr.rel (0) target = $region61
    $region60: #{tpu_custom_call.1} parent=1 // pred_region
      %3666 = dma.done [#allocation5], 128
    $region61: #{tpu_custom_call.1} parent=1 // pred_fallthru
      _
    %3667 = vsyncpa [#allocation4], 1
    %3668 = vsyncpa [#allocation7], 1
    %3669 = vsyncpa [#allocation10], 1
    %3670 = vsyncpa [#allocation5], 1

</llo_original>
